<compile_context>
chip_gen: v6e
topology: v6e:2x2x1
jax: 0.10.0
libtpu: 0.0.40
codegen_flags: <defaults>
</compile_context>

<pallas_src>
import functools

import jax
import jax.numpy as jnp
from jax.experimental import pallas as pl
from jax.experimental.pallas import tpu as pltpu

EPS = 0.8          # BatchNorm1d eps (from BatchNorm1d(out_feat, 0.8))
NEG_SLOPE = 0.2    # LeakyReLU negative slope
HIDDEN = (128, 256, 512, 1024)


def _round_up(x, m):
    return ((x + m - 1) // m) * m


def _leaky(x):
    # max(x, 0.2*x) == LeakyReLU(0.2)
    return jnp.maximum(x, NEG_SLOPE * x)


def _mm(x_f32, w_ref):
    # Cast activations to bf16 only at the MXU boundary; weights are already
    # bf16 in VMEM; accumulate in f32.
    return jnp.dot(x_f32.astype(jnp.bfloat16), w_ref[...],
                   preferred_element_type=jnp.float32)


def _bn_leaky(h, gamma, beta, inv_b):
    """Training-mode BatchNorm1d (biased batch var, eps=0.8) with one-pass
    sum / sum-of-squares statistics, folded into a per-feature scale/shift,
    followed by LeakyReLU(0.2)."""
    s = jnp.sum(h, axis=0, keepdims=True)              # (1, F)
    ss = jnp.sum(h * h, axis=0, keepdims=True)         # (1, F)
    mu = s * inv_b                                      # E[x]
    var = ss * inv_b - mu * mu                          # E[x^2] - E[x]^2 (biased)
    scale = gamma * jax.lax.rsqrt(var + EPS)            # (1, F)
    shift = beta - mu * scale                           # (1, F)
    return _leaky(h * scale + shift)                    # (B, F) FMA-shaped


def generator_kernel(x_ref,
                     w1_ref, b1_ref,
                     w2_ref, g2_ref, be2_ref,
                     w3_ref, g3_ref, be3_ref,
                     w4_ref, g4_ref, be4_ref,
                     w5_ref, b5_ref,
                     out_ref, *, inv_b):
    # block 1: Linear (single padded matmul over concat(z,cond)) -> LeakyReLU
    h = _leaky(_mm(x_ref[...], w1_ref) + b1_ref[...])

    # blocks 2-4: Linear (bias dropped; cancelled by BN mean) -> BN(train) -> LeakyReLU
    h = _bn_leaky(_mm(h, w2_ref), g2_ref[...], be2_ref[...], inv_b)
    h = _bn_leaky(_mm(h, w3_ref), g3_ref[...], be3_ref[...], inv_b)
    h = _bn_leaky(_mm(h, w4_ref), g4_ref[...], be4_ref[...], inv_b)

    # head: Linear -> Tanh, stored into a lane-dense (B, Dpad) slab
    out_ref[...] = jnp.tanh(_mm(h, w5_ref) + b5_ref[...])


def prepare_params(params, latent_dim):
    """One-time parameter prep (do NOT call per step):
      - drop b2/b3/b4 (exactly cancelled by training-mode BN mean subtraction),
      - merge W1 (already (latent+cond, 128)) and zero-pad its rows to a
        bf16-sublane-tile multiple (16),
      - zero-pad W5 / b5 columns to a multiple of 128 lanes (lane-dense store),
      - cast all matmul weights to bf16 once; biases / BN affine stay f32."""
    (w1, b1, w2, _b2, g2, be2, w3, _b3, g3, be3,
     w4, _b4, g4, be4, w5, b5) = params
    bf = jnp.bfloat16

    k = w1.shape[0]
    k_pad = _round_up(max(k, 16), 16)
    w1p = jnp.zeros((k_pad, w1.shape[1]), jnp.float32).at[:k].set(w1).astype(bf)

    d = w5.shape[1]
    d_pad = _round_up(max(d, 128), 128)
    w5p = jnp.zeros((w5.shape[0], d_pad), jnp.float32).at[:, :d].set(w5).astype(bf)
    b5p = jnp.zeros((1, d_pad), jnp.float32).at[:, :d].set(b5)

    prepared = (w1p, b1,
                w2.astype(bf), g2, be2,
                w3.astype(bf), g3, be3,
                w4.astype(bf), g4, be4,
                w5p, b5p)
    return prepared, k_pad, d_pad, d


def _vmem_limit_bytes(batch, k_pad, d_pad):
    """Right-size the scoped VMEM limit from the actual footprint; cap at
    48 MiB so v7x (64 MiB physical per TC) keeps compiler/scratch headroom."""
    weight_bytes = 2 * (k_pad * 128 + 128 * 256 + 256 * 512 + 512 * 1024
                        + 1024 * d_pad)                      # bf16 weights
    small_bytes = 4 * (128 + 3 * (256 + 512 + 1024) + d_pad)  # biases + BN affine
    io_bytes = 4 * batch * (k_pad + d_pad)                    # f32 in/out
    act_bytes = 4 * batch * sum(HIDDEN)                       # live f32 activations
    need = 2 * (weight_bytes + small_bytes + io_bytes + act_bytes)
    return int(min(48 * 1024 * 1024, max(8 * 1024 * 1024, need)))


@functools.partial(jax.jit, static_argnums=(3,))
def simple_generator(z, cond, prepared, data_dim):
    """z: (B, latent_dim) f32, cond: (B, cond_dim) f32, prepared from
    prepare_params. Returns (B, data_dim) f32."""
    (w1, b1, w2, g2, be2, w3, g3, be3, w4, g4, be4, w5, b5) = prepared
    batch = z.shape[0]
    k_pad = w1.shape[0]
    d_pad = w5.shape[1]

    # implicit torch.cat([z, cond], 1), zero-padded to the padded W1 rows
    x = jnp.concatenate([z, cond], axis=1)
    x = jnp.pad(x, ((0, 0), (0, k_pad - x.shape[1])))

    args = (x, w1, b1, w2, g2, be2, w3, g3, be3, w4, g4, be4, w5, b5)
    vmem = pl.BlockSpec(memory_space=pltpu.MemorySpace.VMEM)

    out_padded = pl.pallas_call(
        functools.partial(generator_kernel, inv_b=1.0 / batch),
        out_shape=jax.ShapeDtypeStruct((batch, d_pad), jnp.float32),
        in_specs=[vmem] * len(args),
        out_specs=vmem,
        compiler_params=pltpu.CompilerParams(
            vmem_limit_bytes=_vmem_limit_bytes(batch, k_pad, d_pad)),
    )(*args)
    return out_padded[:, :data_dim]


def init_params(key, cond_dim, latent_dim, data_dim):
    """Deterministic PyTorch-style Linear init: U(-1/sqrt(fan_in), 1/sqrt(fan_in)).
    Returns the same layout a PyTorch state_dict would imply (biases for every
    Linear, BN gamma/beta for blocks 2-4)."""
    dims = [latent_dim + cond_dim, 128, 256, 512, 1024, data_dim]
    keys = jax.random.split(key, 2 * (len(dims) - 1))
    lin = []
    for i in range(len(dims) - 1):
        fan_in, fan_out = dims[i], dims[i + 1]
        bound = 1.0 / (fan_in ** 0.5)
        w = jax.random.uniform(keys[2 * i], (fan_in, fan_out),
                               minval=-bound, maxval=bound, dtype=jnp.float32)
        b = jax.random.uniform(keys[2 * i + 1], (1, fan_out),
                               minval=-bound, maxval=bound, dtype=jnp.float32)
        lin.append((w, b))
    bn = {f: (jnp.ones((1, f), jnp.float32), jnp.zeros((1, f), jnp.float32))
          for f in (256, 512, 1024)}
    (w1, b1), (w2, b2), (w3, b3), (w4, b4), (w5, b5) = lin
    (g2, be2), (g3, be3), (g4, be4) = bn[256], bn[512], bn[1024]
    return (w1, b1,
            w2, b2, g2, be2,
            w3, b3, g3, be3,
            w4, b4, g4, be4,
            w5, b5)


if __name__ == "__main__":
    cond_dim, latent_dim, data_dim = 4, 8, 16
    batch = 8

    key = jax.random.PRNGKey(0)
    k_z, k_c, k_p = jax.random.split(key, 3)
    z = jax.random.normal(k_z, (batch, latent_dim), dtype=jnp.float32)
    cond = jax.random.normal(k_c, (batch, cond_dim), dtype=jnp.float32)

    params = init_params(k_p, cond_dim, latent_dim, data_dim)
    prepared, _, _, _ = prepare_params(params, latent_dim)   # one-time bf16 cast / pad

    out = simple_generator(z, cond, prepared, data_dim)
    out = jax.block_until_ready(out)
    assert out.shape == (batch, data_dim)
    assert bool(jnp.all(jnp.isfinite(out)))
    assert bool(jnp.all(jnp.abs(out) <= 1.0))  # tanh range
    print("KERNEL_OK")
</pallas_src>

<mosaic_0001>
module attributes {stable_mosaic.version = 11 : i64} {
  func.func @generator_kernel(%arg0: memref<8x16xf32, #tpu.memory_space<vmem>>, %arg1: memref<16x128xbf16, #tpu.memory_space<vmem>>, %arg2: memref<1x128xf32, #tpu.memory_space<vmem>>, %arg3: memref<128x256xbf16, #tpu.memory_space<vmem>>, %arg4: memref<1x256xf32, #tpu.memory_space<vmem>>, %arg5: memref<1x256xf32, #tpu.memory_space<vmem>>, %arg6: memref<256x512xbf16, #tpu.memory_space<vmem>>, %arg7: memref<1x512xf32, #tpu.memory_space<vmem>>, %arg8: memref<1x512xf32, #tpu.memory_space<vmem>>, %arg9: memref<512x1024xbf16, #tpu.memory_space<vmem>>, %arg10: memref<1x1024xf32, #tpu.memory_space<vmem>>, %arg11: memref<1x1024xf32, #tpu.memory_space<vmem>>, %arg12: memref<1024x128xbf16, #tpu.memory_space<vmem>>, %arg13: memref<1x128xf32, #tpu.memory_space<vmem>>, %arg14: memref<8x128xf32, #tpu.memory_space<vmem>>) attributes {dimension_semantics = [], scalar_prefetch = 0 : i64, scratch_operands = 0 : i64, tpu.core_type = #tpu.core_type<tc>} {
    %c0 = arith.constant 0 : index
    %c0_0 = arith.constant 0 : index
    %0 = vector.load %arg0[%c0, %c0_0] : memref<8x16xf32, #tpu.memory_space<vmem>>, vector<8x16xf32>
    %1 = arith.truncf %0 : vector<8x16xf32> to vector<8x16xbf16>
    %c0_1 = arith.constant 0 : index
    %c0_2 = arith.constant 0 : index
    %2 = vector.load %arg1[%c0_1, %c0_2] : memref<16x128xbf16, #tpu.memory_space<vmem>>, vector<16x128xbf16>
    %cst = arith.constant dense<0.000000e+00> : vector<8x128xf32>
    %3 = tpu.matmul %1, %2, %cst {dimension_numbers = #tpu.dot_dimension_numbers<[1], [0], [0], [1], [0, 0, 1, 1], [], []>} : vector<8x16xbf16>, vector<16x128xbf16>, vector<8x128xf32> -> vector<8x128xf32>
    %c0_3 = arith.constant 0 : index
    %c0_4 = arith.constant 0 : index
    %4 = vector.load %arg2[%c0_3, %c0_4] : memref<1x128xf32, #tpu.memory_space<vmem>>, vector<1x128xf32>
    %5 = vector.broadcast %4 : vector<1x128xf32> to vector<8x128xf32>
    %6 = arith.addf %3, %5 : vector<8x128xf32>
    %cst_5 = arith.constant 2.000000e-01 : f32
    %7 = vector.broadcast %cst_5 : f32 to vector<8x128xf32>
    %8 = arith.mulf %7, %6 : vector<8x128xf32>
    %9 = arith.maximumf %6, %8 : vector<8x128xf32>
    %10 = arith.truncf %9 : vector<8x128xf32> to vector<8x128xbf16>
    %c0_6 = arith.constant 0 : index
    %c0_7 = arith.constant 0 : index
    %11 = vector.load %arg3[%c0_6, %c0_7] : memref<128x256xbf16, #tpu.memory_space<vmem>>, vector<128x256xbf16>
    %cst_8 = arith.constant dense<0.000000e+00> : vector<8x256xf32>
    %12 = tpu.matmul %10, %11, %cst_8 {dimension_numbers = #tpu.dot_dimension_numbers<[1], [0], [0], [1], [0, 0, 1, 1], [], []>} : vector<8x128xbf16>, vector<128x256xbf16>, vector<8x256xf32> -> vector<8x256xf32>
    %c0_9 = arith.constant 0 : index
    %c0_10 = arith.constant 0 : index
    %13 = vector.load %arg4[%c0_9, %c0_10] : memref<1x256xf32, #tpu.memory_space<vmem>>, vector<1x256xf32>
    %c0_11 = arith.constant 0 : index
    %c0_12 = arith.constant 0 : index
    %14 = vector.load %arg5[%c0_11, %c0_12] : memref<1x256xf32, #tpu.memory_space<vmem>>, vector<1x256xf32>
    %cst_13 = arith.constant dense<0.000000e+00> : vector<256xf32>
    %15 = vector.multi_reduction <add>, %12, %cst_13 [0] : vector<8x256xf32> to vector<256xf32>
    %16 = vector.shape_cast %15 : vector<256xf32> to vector<1x256xf32>
    %17 = arith.mulf %12, %12 : vector<8x256xf32>
    %cst_14 = arith.constant dense<0.000000e+00> : vector<256xf32>
    %18 = vector.multi_reduction <add>, %17, %cst_14 [0] : vector<8x256xf32> to vector<256xf32>
    %19 = vector.shape_cast %18 : vector<256xf32> to vector<1x256xf32>
    %cst_15 = arith.constant 1.250000e-01 : f32
    %20 = vector.broadcast %cst_15 : f32 to vector<1x256xf32>
    %21 = arith.mulf %16, %20 : vector<1x256xf32>
    %cst_16 = arith.constant 1.250000e-01 : f32
    %22 = vector.broadcast %cst_16 : f32 to vector<1x256xf32>
    %23 = arith.mulf %19, %22 : vector<1x256xf32>
    %24 = arith.mulf %21, %21 : vector<1x256xf32>
    %25 = arith.subf %23, %24 : vector<1x256xf32>
    %cst_17 = arith.constant 8.000000e-01 : f32
    %26 = vector.broadcast %cst_17 : f32 to vector<1x256xf32>
    %27 = arith.addf %25, %26 : vector<1x256xf32>
    %28 = math.rsqrt %27 : vector<1x256xf32>
    %29 = arith.mulf %13, %28 : vector<1x256xf32>
    %30 = arith.mulf %21, %29 : vector<1x256xf32>
    %31 = arith.subf %14, %30 : vector<1x256xf32>
    %32 = vector.broadcast %29 : vector<1x256xf32> to vector<8x256xf32>
    %33 = arith.mulf %12, %32 : vector<8x256xf32>
    %34 = vector.broadcast %31 : vector<1x256xf32> to vector<8x256xf32>
    %35 = arith.addf %33, %34 : vector<8x256xf32>
    %cst_18 = arith.constant 2.000000e-01 : f32
    %36 = vector.broadcast %cst_18 : f32 to vector<8x256xf32>
    %37 = arith.mulf %36, %35 : vector<8x256xf32>
    %38 = arith.maximumf %35, %37 : vector<8x256xf32>
    %39 = arith.truncf %38 : vector<8x256xf32> to vector<8x256xbf16>
    %c0_19 = arith.constant 0 : index
    %c0_20 = arith.constant 0 : index
    %40 = vector.load %arg6[%c0_19, %c0_20] : memref<256x512xbf16, #tpu.memory_space<vmem>>, vector<256x512xbf16>
    %cst_21 = arith.constant dense<0.000000e+00> : vector<8x512xf32>
    %41 = tpu.matmul %39, %40, %cst_21 {dimension_numbers = #tpu.dot_dimension_numbers<[1], [0], [0], [1], [0, 0, 1, 1], [], []>} : vector<8x256xbf16>, vector<256x512xbf16>, vector<8x512xf32> -> vector<8x512xf32>
    %c0_22 = arith.constant 0 : index
    %c0_23 = arith.constant 0 : index
    %42 = vector.load %arg7[%c0_22, %c0_23] : memref<1x512xf32, #tpu.memory_space<vmem>>, vector<1x512xf32>
    %c0_24 = arith.constant 0 : index
    %c0_25 = arith.constant 0 : index
    %43 = vector.load %arg8[%c0_24, %c0_25] : memref<1x512xf32, #tpu.memory_space<vmem>>, vector<1x512xf32>
    %cst_26 = arith.constant dense<0.000000e+00> : vector<512xf32>
    %44 = vector.multi_reduction <add>, %41, %cst_26 [0] : vector<8x512xf32> to vector<512xf32>
    %45 = vector.shape_cast %44 : vector<512xf32> to vector<1x512xf32>
    %46 = arith.mulf %41, %41 : vector<8x512xf32>
    %cst_27 = arith.constant dense<0.000000e+00> : vector<512xf32>
    %47 = vector.multi_reduction <add>, %46, %cst_27 [0] : vector<8x512xf32> to vector<512xf32>
    %48 = vector.shape_cast %47 : vector<512xf32> to vector<1x512xf32>
    %cst_28 = arith.constant 1.250000e-01 : f32
    %49 = vector.broadcast %cst_28 : f32 to vector<1x512xf32>
    %50 = arith.mulf %45, %49 : vector<1x512xf32>
    %cst_29 = arith.constant 1.250000e-01 : f32
    %51 = vector.broadcast %cst_29 : f32 to vector<1x512xf32>
    %52 = arith.mulf %48, %51 : vector<1x512xf32>
    %53 = arith.mulf %50, %50 : vector<1x512xf32>
    %54 = arith.subf %52, %53 : vector<1x512xf32>
    %cst_30 = arith.constant 8.000000e-01 : f32
    %55 = vector.broadcast %cst_30 : f32 to vector<1x512xf32>
    %56 = arith.addf %54, %55 : vector<1x512xf32>
    %57 = math.rsqrt %56 : vector<1x512xf32>
    %58 = arith.mulf %42, %57 : vector<1x512xf32>
    %59 = arith.mulf %50, %58 : vector<1x512xf32>
    %60 = arith.subf %43, %59 : vector<1x512xf32>
    %61 = vector.broadcast %58 : vector<1x512xf32> to vector<8x512xf32>
    %62 = arith.mulf %41, %61 : vector<8x512xf32>
    %63 = vector.broadcast %60 : vector<1x512xf32> to vector<8x512xf32>
    %64 = arith.addf %62, %63 : vector<8x512xf32>
    %cst_31 = arith.constant 2.000000e-01 : f32
    %65 = vector.broadcast %cst_31 : f32 to vector<8x512xf32>
    %66 = arith.mulf %65, %64 : vector<8x512xf32>
    %67 = arith.maximumf %64, %66 : vector<8x512xf32>
    %68 = arith.truncf %67 : vector<8x512xf32> to vector<8x512xbf16>
    %c0_32 = arith.constant 0 : index
    %c0_33 = arith.constant 0 : index
    %69 = vector.load %arg9[%c0_32, %c0_33] : memref<512x1024xbf16, #tpu.memory_space<vmem>>, vector<512x1024xbf16>
    %cst_34 = arith.constant dense<0.000000e+00> : vector<8x1024xf32>
    %70 = tpu.matmul %68, %69, %cst_34 {dimension_numbers = #tpu.dot_dimension_numbers<[1], [0], [0], [1], [0, 0, 1, 1], [], []>} : vector<8x512xbf16>, vector<512x1024xbf16>, vector<8x1024xf32> -> vector<8x1024xf32>
    %c0_35 = arith.constant 0 : index
    %c0_36 = arith.constant 0 : index
    %71 = vector.load %arg10[%c0_35, %c0_36] : memref<1x1024xf32, #tpu.memory_space<vmem>>, vector<1x1024xf32>
    %c0_37 = arith.constant 0 : index
    %c0_38 = arith.constant 0 : index
    %72 = vector.load %arg11[%c0_37, %c0_38] : memref<1x1024xf32, #tpu.memory_space<vmem>>, vector<1x1024xf32>
    %cst_39 = arith.constant dense<0.000000e+00> : vector<1024xf32>
    %73 = vector.multi_reduction <add>, %70, %cst_39 [0] : vector<8x1024xf32> to vector<1024xf32>
    %74 = vector.shape_cast %73 : vector<1024xf32> to vector<1x1024xf32>
    %75 = arith.mulf %70, %70 : vector<8x1024xf32>
    %cst_40 = arith.constant dense<0.000000e+00> : vector<1024xf32>
    %76 = vector.multi_reduction <add>, %75, %cst_40 [0] : vector<8x1024xf32> to vector<1024xf32>
    %77 = vector.shape_cast %76 : vector<1024xf32> to vector<1x1024xf32>
    %cst_41 = arith.constant 1.250000e-01 : f32
    %78 = vector.broadcast %cst_41 : f32 to vector<1x1024xf32>
    %79 = arith.mulf %74, %78 : vector<1x1024xf32>
    %cst_42 = arith.constant 1.250000e-01 : f32
    %80 = vector.broadcast %cst_42 : f32 to vector<1x1024xf32>
    %81 = arith.mulf %77, %80 : vector<1x1024xf32>
    %82 = arith.mulf %79, %79 : vector<1x1024xf32>
    %83 = arith.subf %81, %82 : vector<1x1024xf32>
    %cst_43 = arith.constant 8.000000e-01 : f32
    %84 = vector.broadcast %cst_43 : f32 to vector<1x1024xf32>
    %85 = arith.addf %83, %84 : vector<1x1024xf32>
    %86 = math.rsqrt %85 : vector<1x1024xf32>
    %87 = arith.mulf %71, %86 : vector<1x1024xf32>
    %88 = arith.mulf %79, %87 : vector<1x1024xf32>
    %89 = arith.subf %72, %88 : vector<1x1024xf32>
    %90 = vector.broadcast %87 : vector<1x1024xf32> to vector<8x1024xf32>
    %91 = arith.mulf %70, %90 : vector<8x1024xf32>
    %92 = vector.broadcast %89 : vector<1x1024xf32> to vector<8x1024xf32>
    %93 = arith.addf %91, %92 : vector<8x1024xf32>
    %cst_44 = arith.constant 2.000000e-01 : f32
    %94 = vector.broadcast %cst_44 : f32 to vector<8x1024xf32>
    %95 = arith.mulf %94, %93 : vector<8x1024xf32>
    %96 = arith.maximumf %93, %95 : vector<8x1024xf32>
    %97 = arith.truncf %96 : vector<8x1024xf32> to vector<8x1024xbf16>
    %c0_45 = arith.constant 0 : index
    %c0_46 = arith.constant 0 : index
    %98 = vector.load %arg12[%c0_45, %c0_46] : memref<1024x128xbf16, #tpu.memory_space<vmem>>, vector<1024x128xbf16>
    %cst_47 = arith.constant dense<0.000000e+00> : vector<8x128xf32>
    %99 = tpu.matmul %97, %98, %cst_47 {dimension_numbers = #tpu.dot_dimension_numbers<[1], [0], [0], [1], [0, 0, 1, 1], [], []>} : vector<8x1024xbf16>, vector<1024x128xbf16>, vector<8x128xf32> -> vector<8x128xf32>
    %c0_48 = arith.constant 0 : index
    %c0_49 = arith.constant 0 : index
    %100 = vector.load %arg13[%c0_48, %c0_49] : memref<1x128xf32, #tpu.memory_space<vmem>>, vector<1x128xf32>
    %101 = vector.broadcast %100 : vector<1x128xf32> to vector<8x128xf32>
    %102 = arith.addf %99, %101 : vector<8x128xf32>
    %103 = math.tanh %102 : vector<8x128xf32>
    %c0_50 = arith.constant 0 : index
    %c0_51 = arith.constant 0 : index
    %104 = vector.load %arg14[%c0_50, %c0_51] : memref<8x128xf32, #tpu.memory_space<vmem>>, vector<8x128xf32>
    tpu.vector_store %arg14[%c0_50, %c0_51], %103 {strides = array<i32>} : memref<8x128xf32, #tpu.memory_space<vmem>>, vector<8x128xf32>,
    return
  }
}

</mosaic_0001>

<llo_original>
// kernel: simple_generator.1
$region0: #{simple_generator.1}
  #allocation0 [shape = 'u32[]', space=smem, size = 0x4, offset = 0x4, fixed_abs, tag = 'smem constant byte address 0x4 - core index']
  #allocation1 [shape = 'u32[144,128]{1,0:T(1,128)}', space=vmem, size = 0x12000, scoped, tag = 'internal scratch']
  %s0 = inlined_call_operand.vmem [shape: f32[8,16], index: 0, kind: input, shape index: {}]
  %s1 = inlined_call_operand.vmem [shape: bf16[16,128], index: 1, kind: input, shape index: {}]
  %s2 = inlined_call_operand.vmem [shape: f32[1,128], index: 2, kind: input, shape index: {}]
  %s3 = inlined_call_operand.hbm [shape: bf16[128,256], index: 3, kind: input, shape index: {}]
  %s4 = inlined_call_operand.vmem [shape: f32[1,256], index: 4, kind: input, shape index: {}]
  %s5 = inlined_call_operand.vmem [shape: f32[1,256], index: 5, kind: input, shape index: {}]
  %s6 = inlined_call_operand.hbm [shape: bf16[256,512], index: 6, kind: input, shape index: {}]
  %s7 = inlined_call_operand.vmem [shape: f32[1,512], index: 7, kind: input, shape index: {}]
  %s8 = inlined_call_operand.vmem [shape: f32[1,512], index: 8, kind: input, shape index: {}]
  %s9 = inlined_call_operand.hbm [shape: bf16[512,1024], index: 9, kind: input, shape index: {}]
  %s10 = inlined_call_operand.vmem [shape: f32[1,1024], index: 10, kind: input, shape index: {}]
  %s11 = inlined_call_operand.vmem [shape: f32[1,1024], index: 11, kind: input, shape index: {}]
  %s12 = inlined_call_operand.hbm [shape: bf16[1024,128], index: 12, kind: input, shape index: {}]
  %s13 = inlined_call_operand.vmem [shape: f32[1,128], index: 13, kind: input, shape index: {}]
  %s14 = inlined_call_operand.hbm [shape: f32[8,128], index: 14, kind: output, shape index: {}]
  %s15 = sld [smem:[#allocation0]]
  $region82: #{simple_generator.1} parent=0
    _
  %s17 = ssub.s32 1, %s15
  %s18 = scalar_select 0, %s17, %s15
  $region1: #{simple_generator.1} parent=0
    #allocation2 [shape = 'u8[65536]{0}', space=vmem, size = 0x10000, scoped, tag = 'input window, operand 3, single buffered']
    #allocation3 [shape = 's32[1]{0}', space=sflag, size = 0x4, scoped, tag = 'scoped memory for simple_generator.1']
    #allocation4 [shape = 's32[1]{0}', space=sflag, size = 0x4, scoped, tag = 'scoped memory for simple_generator.1']
    #allocation5 [shape = 'u8[262144]{0}', space=vmem, size = 0x40000, scoped, tag = 'input window, operand 6, single buffered']
    #allocation6 [shape = 's32[1]{0}', space=sflag, size = 0x4, scoped, tag = 'scoped memory for simple_generator.1']
    #allocation7 [shape = 'u8[1048576]{0}', space=vmem, size = 0x100000, scoped, tag = 'input window, operand 9, single buffered']
    #allocation8 [shape = 'u8[262144]{0}', space=vmem, size = 0x40000, scoped, tag = 'input window, operand 12, single buffered']
    #allocation9 [shape = 's32[1]{0}', space=sflag, size = 0x4, scoped, tag = 'scoped memory for simple_generator.1']
    #allocation10 [shape = 'u8[4096]{0}', space=vmem, size = 0x1000, scoped, tag = 'output window, operand 0, single buffered']
    %19 = vsyncpa [#allocation3], 0
    %20 = vsyncpa [#allocation6], 0
    %21 = vsyncpa [#allocation9], 0
    %22 = vsyncpa [#allocation4], 0
    // Predicated region
    $region2: #{simple_generator.1} parent=1 // pred_check
      _
    $region3: #{simple_generator.1} parent=1 // pred_check_branch
      %24 = sbr.rel (0) target = $region5
    $region4: #{simple_generator.1} parent=1 // pred_region
      _
    $region5: #{simple_generator.1} parent=1 // pred_fallthru
      _
    // Predicated region
    $region6: #{simple_generator.1} parent=1 // pred_check
      _
    $region7: #{simple_generator.1} parent=1 // pred_check_branch
      %26 = sbr.rel (0) target = $region9
    $region8: #{simple_generator.1} parent=1 // pred_region
      _
    $region9: #{simple_generator.1} parent=1 // pred_fallthru
      _
    // Predicated region
    $region10: #{simple_generator.1} parent=1 // pred_check
      _
    $region11: #{simple_generator.1} parent=1 // pred_check_branch
      %28 = sbr.rel (0) target = $region13
    $region12: #{simple_generator.1} parent=1 // pred_region
      _
    $region13: #{simple_generator.1} parent=1 // pred_fallthru
      _
    // Predicated region
    $region14: #{simple_generator.1} parent=1 // pred_check
      _
    $region15: #{simple_generator.1} parent=1 // pred_check_branch
      %30 = sbr.rel (0) target = $region17
    $region16: #{simple_generator.1} parent=1 // pred_region
      %s32 = ssub.s32 2048, 2048
      %33 = vsyncadd [#allocation3], %s32
      %s34 = sshll.u32 [#allocation2], 4
      %s35 = int_to_ptr.vmem [resolvable:$true] %s34
      %40 = dma.hbm_to_vmem [thread:$0]  %s3, 2048, %s35, [#allocation3], 128, 128, 8
    $region17: #{simple_generator.1} parent=1 // pred_fallthru
      _
    // Predicated region
    $region18: #{simple_generator.1} parent=1 // pred_check
      _
    $region19: #{simple_generator.1} parent=1 // pred_check_branch
      %42 = sbr.rel (0) target = $region21
    $region20: #{simple_generator.1} parent=1 // pred_region
      _
    $region21: #{simple_generator.1} parent=1 // pred_fallthru
      _
    // Predicated region
    $region22: #{simple_generator.1} parent=1 // pred_check
      _
    $region23: #{simple_generator.1} parent=1 // pred_check_branch
      %44 = sbr.rel (0) target = $region25
    $region24: #{simple_generator.1} parent=1 // pred_region
      _
    $region25: #{simple_generator.1} parent=1 // pred_fallthru
      _
    // Predicated region
    $region26: #{simple_generator.1} parent=1 // pred_check
      _
    $region27: #{simple_generator.1} parent=1 // pred_check_branch
      %46 = sbr.rel (0) target = $region29
    $region28: #{simple_generator.1} parent=1 // pred_region
      %s48 = ssub.s32 8192, 8192
      %49 = vsyncadd [#allocation6], %s48
      %s50 = sshll.u32 [#allocation5], 4
      %s51 = int_to_ptr.vmem [resolvable:$true] %s50
      %56 = dma.hbm_to_vmem [thread:$0]  %s6, 8192, %s51, [#allocation6], 256, 256, 16
    $region29: #{simple_generator.1} parent=1 // pred_fallthru
      _
    // Predicated region
    $region30: #{simple_generator.1} parent=1 // pred_check
      _
    $region31: #{simple_generator.1} parent=1 // pred_check_branch
      %58 = sbr.rel (0) target = $region33
    $region32: #{simple_generator.1} parent=1 // pred_region
      _
    $region33: #{simple_generator.1} parent=1 // pred_fallthru
      _
    // Predicated region
    $region34: #{simple_generator.1} parent=1 // pred_check
      _
    $region35: #{simple_generator.1} parent=1 // pred_check_branch
      %60 = sbr.rel (0) target = $region37
    $region36: #{simple_generator.1} parent=1 // pred_region
      _
    $region37: #{simple_generator.1} parent=1 // pred_fallthru
      _
    // Predicated region
    $region38: #{simple_generator.1} parent=1 // pred_check
      _
    $region39: #{simple_generator.1} parent=1 // pred_check_branch
      %62 = sbr.rel (0) target = $region41
    $region40: #{simple_generator.1} parent=1 // pred_region
      %s64 = ssub.s32 32768, 32768
      %65 = vsyncadd [#allocation6], %s64
      %s66 = sshll.u32 [#allocation7], 4
      %s67 = int_to_ptr.vmem [resolvable:$true] %s66
      %72 = dma.hbm_to_vmem [thread:$0]  %s9, 32768, %s67, [#allocation6], 512, 512, 32
    $region41: #{simple_generator.1} parent=1 // pred_fallthru
      _
    // Predicated region
    $region42: #{simple_generator.1} parent=1 // pred_check
      _
    $region43: #{simple_generator.1} parent=1 // pred_check_branch
      %74 = sbr.rel (0) target = $region45
    $region44: #{simple_generator.1} parent=1 // pred_region
      _
    $region45: #{simple_generator.1} parent=1 // pred_fallthru
      _
    // Predicated region
    $region46: #{simple_generator.1} parent=1 // pred_check
      _
    $region47: #{simple_generator.1} parent=1 // pred_check_branch
      %76 = sbr.rel (0) target = $region49
    $region48: #{simple_generator.1} parent=1 // pred_region
      _
    $region49: #{simple_generator.1} parent=1 // pred_fallthru
      _
    // Predicated region
    $region50: #{simple_generator.1} parent=1 // pred_check
      _
    $region51: #{simple_generator.1} parent=1 // pred_check_branch
      %78 = sbr.rel (0) target = $region53
    $region52: #{simple_generator.1} parent=1 // pred_region
      %s80 = ssub.s32 8192, 8192
      %81 = vsyncadd [#allocation9], %s80
      %s82 = sshll.u32 [#allocation8], 4
      %s83 = int_to_ptr.vmem [resolvable:$true] %s82
      %88 = dma.hbm_to_vmem [thread:$0]  %s12, 8192, %s83, [#allocation9], 64, 64, 4
    $region53: #{simple_generator.1} parent=1 // pred_fallthru
      _
    // Predicated region
    $region54: #{simple_generator.1} parent=1 // pred_check
      _
    $region55: #{simple_generator.1} parent=1 // pred_check_branch
      %90 = sbr.rel (0) target = $region57
    $region56: #{simple_generator.1} parent=1 // pred_region
      _
    $region57: #{simple_generator.1} parent=1 // pred_fallthru
      _
    // Predicated region
    $region58: #{simple_generator.1} parent=1 // pred_check
      _
    $region59: #{simple_generator.1} parent=1 // pred_check_branch
      %92 = sbr.rel (0) target = $region61
    $region60: #{simple_generator.1} parent=1 // pred_region
      %93 = dma.done [#allocation3], 2048
    $region61: #{simple_generator.1} parent=1 // pred_fallthru
      _
    // Predicated region
    $region62: #{simple_generator.1} parent=1 // pred_check
      _
    $region63: #{simple_generator.1} parent=1 // pred_check_branch
      %95 = sbr.rel (0) target = $region65
    $region64: #{simple_generator.1} parent=1 // pred_region
      %96 = dma.done [#allocation6], 8192
    $region65: #{simple_generator.1} parent=1 // pred_fallthru
      _
    // Predicated region
    $region66: #{simple_generator.1} parent=1 // pred_check
      _
    $region67: #{simple_generator.1} parent=1 // pred_check_branch
      %98 = sbr.rel (0) target = $region69
    $region68: #{simple_generator.1} parent=1 // pred_region
      %99 = dma.done [#allocation6], 32768
    $region69: #{simple_generator.1} parent=1 // pred_fallthru
      _
    // Predicated region
    $region70: #{simple_generator.1} parent=1 // pred_check
      _
    $region71: #{simple_generator.1} parent=1 // pred_check_branch
      %101 = sbr.rel (0) target = $region73
    $region72: #{simple_generator.1} parent=1 // pred_region
      %102 = dma.done [#allocation9], 8192
    $region73: #{simple_generator.1} parent=1 // pred_fallthru
      _
    %v104 = vld [vmem:[%s0] sm:$0xff]
    %v105 = vpack.c.bf16 %v104, %v104
    %v106 = vld [vmem:[%s1] sm:$0xf]
    %v107 = vld [vmem:[%s1 + $0x4] sm:$0xf]
    %v108 = vld [vmem:[%s2] sm:$0x1]
    %v110 = vlaneseq
    %v111 = vshrl.u32 %v110, 7
    %v112 = vsub.s32 0, %v111
    %v113 = vrot.slane %v108, %v112
    %v117 = vunpack.c.l.b16 %v106
    %v118 = vunpack.c.l.b16 %v107
    %v119 = vpack.c.b16 %v118, %v117
    %vm121 = vcmask 130048
    %v123 = vsel %vm121, %v105, 0
    %125 = vmatprep.subr.bf16.mxu0 0
    %126 = vmatpush1.bf16.msra.mxu0 0
    %127 = vmatprep.subr.bf16.mxu0 0
    %128 = vmatpush1.bf16.msra.mxu0 0
    %129 = vmatprep.subr.bf16.mxu0 0
    %130 = vmatpush1.bf16.msra.mxu0 0
    %131 = vmatprep.subr.bf16.mxu0 0
    %132 = vmatpush1.bf16.msra.mxu0 0
    %133 = vmatprep.subr.bf16.mxu0 0
    %134 = vmatpush1.bf16.msra.mxu0 0
    %135 = vmatprep.subr.bf16.mxu0 0
    %136 = vmatpush1.bf16.msra.mxu0 0
    %137 = vmatprep.subr.bf16.mxu0 0
    %138 = vmatpush1.bf16.msra.mxu0 0
    %139 = vmatprep.subr.bf16.mxu0 0
    %140 = vmatpush1.bf16.msra.mxu0 %v119
    %141 = vmatprep.subr.bf16.mxu0 0
    %142 = vmatpush2.bf16.msra.mxu0 0
    %143 = vmatprep.subr.bf16.mxu0 0
    %144 = vmatpush2.bf16.msra.mxu0 0
    %145 = vmatprep.subr.bf16.mxu0 0
    %146 = vmatpush2.bf16.msra.mxu0 0
    %147 = vmatprep.subr.bf16.mxu0 0
    %148 = vmatpush2.bf16.msra.mxu0 0
    %149 = vmatprep.subr.bf16.mxu0 0
    %150 = vmatpush2.bf16.msra.mxu0 0
    %151 = vmatprep.subr.bf16.mxu0 0
    %152 = vmatpush2.bf16.msra.mxu0 0
    %153 = vmatprep.subr.bf16.mxu0 0
    %154 = vmatpush2.bf16.msra.mxu0 0
    %155 = vmatprep.subr.bf16.mxu0 0
    %156 = vmatpush2.bf16.msra.mxu0 0
    %157 = vmatprep.mubr.bf16.mxu0 0
    %158 = vmatmul.mubr.bf16.gmra.mxu0 %v123
    %v159 = vpop.f32.mrf.mxu0
    %v160 = vadd.f32 %v113, %v159
    %v161 = vpop.f32.mrf.mxu0
    %v162 = vpop.f32.mrf.mxu0
    %v163 = vpop.f32.mrf.mxu0
    %164 = vdwg.mxu0
    %v165 = vmul.f32 %v160, 0.2
    %v166 = vmax.f32 %v160, %v165
    %v167 = vpack.c.bf16 %v166, %v166
    %v168 = vld [vmem:[#allocation2] sm:$0xff]
    %v169 = vld [vmem:[#allocation2 + $0x8] sm:$0xff]
    %v170 = vld [vmem:[#allocation2 + $0x10] sm:$0xff]
    %v171 = vld [vmem:[#allocation2 + $0x18] sm:$0xff]
    %v172 = vld [vmem:[#allocation2 + $0x20] sm:$0xff]
    %v173 = vld [vmem:[#allocation2 + $0x28] sm:$0xff]
    %v174 = vld [vmem:[#allocation2 + $0x30] sm:$0xff]
    %v175 = vld [vmem:[#allocation2 + $0x38] sm:$0xff]
    %v176 = vld [vmem:[#allocation2 + $0x40] sm:$0xff]
    %v177 = vld [vmem:[#allocation2 + $0x48] sm:$0xff]
    %v178 = vld [vmem:[#allocation2 + $0x50] sm:$0xff]
    %v179 = vld [vmem:[#allocation2 + $0x58] sm:$0xff]
    %v180 = vld [vmem:[#allocation2 + $0x60] sm:$0xff]
    %v181 = vld [vmem:[#allocation2 + $0x68] sm:$0xff]
    %v182 = vld [vmem:[#allocation2 + $0x70] sm:$0xff]
    %v183 = vld [vmem:[#allocation2 + $0x78] sm:$0xff]
    %v200 = vunpack.c.l.b16 %v168
    %v201 = vunpack.c.h.b16 %v168
    %v202 = vunpack.c.l.b16 %v169
    %v203 = vunpack.c.h.b16 %v169
    %v204 = vunpack.c.l.b16 %v170
    %v205 = vunpack.c.h.b16 %v170
    %v206 = vunpack.c.l.b16 %v171
    %v207 = vunpack.c.h.b16 %v171
    %v208 = vunpack.c.l.b16 %v172
    %v209 = vunpack.c.h.b16 %v172
    %v210 = vunpack.c.l.b16 %v173
    %v211 = vunpack.c.h.b16 %v173
    %v212 = vunpack.c.l.b16 %v174
    %v213 = vunpack.c.h.b16 %v174
    %v214 = vunpack.c.l.b16 %v175
    %v215 = vunpack.c.h.b16 %v175
    %v216 = vunpack.c.l.b16 %v176
    %v217 = vunpack.c.h.b16 %v176
    %v218 = vunpack.c.l.b16 %v177
    %v219 = vunpack.c.h.b16 %v177
    %v220 = vunpack.c.l.b16 %v178
    %v221 = vunpack.c.h.b16 %v178
    %v222 = vunpack.c.l.b16 %v179
    %v223 = vunpack.c.h.b16 %v179
    %v224 = vunpack.c.l.b16 %v180
    %v225 = vunpack.c.h.b16 %v180
    %v226 = vunpack.c.l.b16 %v181
    %v227 = vunpack.c.h.b16 %v181
    %v228 = vunpack.c.l.b16 %v182
    %v229 = vunpack.c.h.b16 %v182
    %v230 = vunpack.c.l.b16 %v183
    %v231 = vunpack.c.h.b16 %v183
    %v232 = vpack.c.b16 %v202, %v200
    %v233 = vpack.c.b16 %v203, %v201
    %v234 = vpack.c.b16 %v206, %v204
    %v235 = vpack.c.b16 %v207, %v205
    %v236 = vpack.c.b16 %v210, %v208
    %v237 = vpack.c.b16 %v211, %v209
    %v238 = vpack.c.b16 %v214, %v212
    %v239 = vpack.c.b16 %v215, %v213
    %v240 = vpack.c.b16 %v218, %v216
    %v241 = vpack.c.b16 %v219, %v217
    %v242 = vpack.c.b16 %v222, %v220
    %v243 = vpack.c.b16 %v223, %v221
    %v244 = vpack.c.b16 %v226, %v224
    %v245 = vpack.c.b16 %v227, %v225
    %v246 = vpack.c.b16 %v230, %v228
    %v247 = vpack.c.b16 %v231, %v229
    %264 = vmatprep.subr.bf16.mxu0 %v247
    %265 = vmatpush1.bf16.msra.mxu0 %v246
    %266 = vmatprep.subr.bf16.mxu0 %v245
    %267 = vmatpush1.bf16.msra.mxu0 %v244
    %268 = vmatprep.subr.bf16.mxu0 %v243
    %269 = vmatpush1.bf16.msra.mxu0 %v242
    %270 = vmatprep.subr.bf16.mxu0 %v241
    %271 = vmatpush1.bf16.msra.mxu0 %v240
    %272 = vmatprep.subr.bf16.mxu0 %v239
    %273 = vmatpush1.bf16.msra.mxu0 %v238
    %274 = vmatprep.subr.bf16.mxu0 %v237
    %275 = vmatpush1.bf16.msra.mxu0 %v236
    %276 = vmatprep.subr.bf16.mxu0 %v235
    %277 = vmatpush1.bf16.msra.mxu0 %v234
    %278 = vmatprep.subr.bf16.mxu0 %v233
    %279 = vmatpush1.bf16.msra.mxu0 %v232
    %280 = vmatprep.subr.bf16.mxu0 0
    %281 = vmatpush2.bf16.msra.mxu0 0
    %282 = vmatprep.subr.bf16.mxu0 0
    %283 = vmatpush2.bf16.msra.mxu0 0
    %284 = vmatprep.subr.bf16.mxu0 0
    %285 = vmatpush2.bf16.msra.mxu0 0
    %286 = vmatprep.subr.bf16.mxu0 0
    %287 = vmatpush2.bf16.msra.mxu0 0
    %288 = vmatprep.subr.bf16.mxu0 0
    %289 = vmatpush2.bf16.msra.mxu0 0
    %290 = vmatprep.subr.bf16.mxu0 0
    %291 = vmatpush2.bf16.msra.mxu0 0
    %292 = vmatprep.subr.bf16.mxu0 0
    %293 = vmatpush2.bf16.msra.mxu0 0
    %294 = vmatprep.subr.bf16.mxu0 0
    %295 = vmatpush2.bf16.msra.mxu0 0
    %296 = vmatprep.mubr.bf16.mxu0 0
    %297 = vmatmul.mubr.bf16.gmra.mxu0 %v167
    %v298 = vpop.f32.mrf.mxu0
    %v299 = vadd.f32 0.0, %v298
    %v300 = vpop.f32.mrf.mxu0
    %v301 = vadd.f32 0.0, %v300
    %v302 = vpop.f32.mrf.mxu0
    %v303 = vpop.f32.mrf.mxu0
    %304 = vdwg.mxu0
    %v305 = vld [vmem:[%s4] sm:$0x3]
    %v306 = vld [vmem:[%s5] sm:$0x3]
    %v307 = vrot.slane %v299, 4
    %v308 = vadd.f32 %v299, %v307
    %v309 = vrot.slane %v308, 2
    %v310 = vadd.f32 %v308, %v309
    %v311 = vrot.slane %v310, 1
    %v312 = vadd.f32 %v310, %v311
    %v313 = vrot.slane %v301, 4
    %v314 = vadd.f32 %v301, %v313
    %v315 = vrot.slane %v314, 2
    %v316 = vadd.f32 %v314, %v315
    %v317 = vrot.slane %v316, 1
    %v318 = vadd.f32 %v316, %v317
    %v319 = vmul.f32 %v299, %v299
    %v320 = vmul.f32 %v301, %v301
    %v321 = vrot.slane %v319, 4
    %v322 = vadd.f32 %v319, %v321
    %v323 = vrot.slane %v322, 2
    %v324 = vadd.f32 %v322, %v323
    %v325 = vrot.slane %v324, 1
    %v326 = vadd.f32 %v324, %v325
    %v327 = vrot.slane %v320, 4
    %v328 = vadd.f32 %v320, %v327
    %v329 = vrot.slane %v328, 2
    %v330 = vadd.f32 %v328, %v329
    %v331 = vrot.slane %v330, 1
    %v332 = vadd.f32 %v330, %v331
    %v333 = vmul.f32 %v312, 0.125
    %v334 = vmul.f32 %v318, 0.125
    %v335 = vmul.f32 %v326, 0.125
    %v336 = vmul.f32 %v332, 0.125
    %v337 = vmul.f32 %v333, %v333
    %v338 = vmul.f32 %v334, %v334
    %v339 = vsub.f32 %v335, %v337
    %v340 = vsub.f32 %v336, %v338
    %v341 = vadd.f32 %v339, 0.8
    %v342 = vadd.f32 %v340, 0.8
    %v343 = vrsqrt.pop %v341
    %v344 = vrsqrt.pop %v342
    %v347 = vcombine.low %v343, %v344
    %v349 = vunpack.c.l.s4 1966171168
    %v350 = vunpack.c.0.s8 %v349
    %v351 = vlaneseq
    %v352 = vshrl.u32 %v351, 7
    %v353 = vsub.s32 %v350, %v352
    %v354 = vrot.slane %v347, %v353
    %v356 = vunpack.c.l.s4 1966171168
    %v357 = vunpack.c.0.s8 %v356
    %v358 = vlaneseq
    %v359 = vshrl.u32 %v358, 7
    %v360 = vsub.s32 %v357, %v359
    %v361 = vrot.slane %v354, %v360
    %v363 = vmul.f32 %v305, %v361
    %v365 = vlaneseq
    %v366 = vshrl.u32 %v365, 7
    %v367 = vsub.s32 0, %v366
    %v368 = vrot.slane %v363, %v367
    %v369 = vlaneseq
    %v370 = vshrl.u32 %v369, 7
    %v371 = vsub.s32 1, %v370
    %v372 = vrot.slane %v363, %v371
    %v375 = vmul.f32 %v333, %v368
    %v376 = vmul.f32 %v334, %v372
    %v379 = vcombine.low %v375, %v376
    %v381 = vunpack.c.l.s4 1966171168
    %v382 = vunpack.c.0.s8 %v381
    %v383 = vlaneseq
    %v384 = vshrl.u32 %v383, 7
    %v385 = vsub.s32 %v382, %v384
    %v386 = vrot.slane %v379, %v385
    %v388 = vunpack.c.l.s4 1966171168
    %v389 = vunpack.c.0.s8 %v388
    %v390 = vlaneseq
    %v391 = vshrl.u32 %v390, 7
    %v392 = vsub.s32 %v389, %v391
    %v393 = vrot.slane %v386, %v392
    %v395 = vsub.f32 %v306, %v393
    %v396 = vmul.f32 %v299, %v368
    %v397 = vmul.f32 %v301, %v372
    %v399 = vlaneseq
    %v400 = vshrl.u32 %v399, 7
    %v401 = vsub.s32 0, %v400
    %v402 = vrot.slane %v395, %v401
    %v403 = vlaneseq
    %v404 = vshrl.u32 %v403, 7
    %v405 = vsub.s32 1, %v404
    %v406 = vrot.slane %v395, %v405
    %v409 = vadd.f32 %v396, %v402
    %v410 = vadd.f32 %v397, %v406
    %v411 = vmul.f32 %v409, 0.2
    %v412 = vmul.f32 %v410, 0.2
    %v413 = vmax.f32 %v409, %v411
    %v414 = vmax.f32 %v410, %v412
    %v415 = vpack.c.bf16 %v413, %v413
    %v416 = vpack.c.bf16 %v414, %v414
    %v417 = vld [vmem:[#allocation5] sm:$0xff]
    %v418 = vld [vmem:[#allocation5 + $0x8] sm:$0xff]
    %v419 = vld [vmem:[#allocation5 + $0x10] sm:$0xff]
    %v420 = vld [vmem:[#allocation5 + $0x18] sm:$0xff]
    %v421 = vld [vmem:[#allocation5 + $0x20] sm:$0xff]
    %v422 = vld [vmem:[#allocation5 + $0x28] sm:$0xff]
    %v423 = vld [vmem:[#allocation5 + $0x30] sm:$0xff]
    %v424 = vld [vmem:[#allocation5 + $0x38] sm:$0xff]
    %v425 = vld [vmem:[#allocation5 + $0x40] sm:$0xff]
    %v426 = vld [vmem:[#allocation5 + $0x48] sm:$0xff]
    %v427 = vld [vmem:[#allocation5 + $0x50] sm:$0xff]
    %v428 = vld [vmem:[#allocation5 + $0x58] sm:$0xff]
    %v429 = vld [vmem:[#allocation5 + $0x60] sm:$0xff]
    %v430 = vld [vmem:[#allocation5 + $0x68] sm:$0xff]
    %v431 = vld [vmem:[#allocation5 + $0x70] sm:$0xff]
    %v432 = vld [vmem:[#allocation5 + $0x78] sm:$0xff]
    %v433 = vld [vmem:[#allocation5 + $0x80] sm:$0xff]
    %v434 = vld [vmem:[#allocation5 + $0x88] sm:$0xff]
    %v435 = vld [vmem:[#allocation5 + $0x90] sm:$0xff]
    %v436 = vld [vmem:[#allocation5 + $0x98] sm:$0xff]
    %v437 = vld [vmem:[#allocation5 + $0xa0] sm:$0xff]
    %v438 = vld [vmem:[#allocation5 + $0xa8] sm:$0xff]
    %v439 = vld [vmem:[#allocation5 + $0xb0] sm:$0xff]
    %v440 = vld [vmem:[#allocation5 + $0xb8] sm:$0xff]
    %v441 = vld [vmem:[#allocation5 + $0xc0] sm:$0xff]
    %v442 = vld [vmem:[#allocation5 + $0xc8] sm:$0xff]
    %v443 = vld [vmem:[#allocation5 + $0xd0] sm:$0xff]
    %v444 = vld [vmem:[#allocation5 + $0xd8] sm:$0xff]
    %v445 = vld [vmem:[#allocation5 + $0xe0] sm:$0xff]
    %v446 = vld [vmem:[#allocation5 + $0xe8] sm:$0xff]
    %v447 = vld [vmem:[#allocation5 + $0xf0] sm:$0xff]
    %v448 = vld [vmem:[#allocation5 + $0xf8] sm:$0xff]
    %v449 = vld [vmem:[#allocation5 + $0x100] sm:$0xff]
    %v450 = vld [vmem:[#allocation5 + $0x108] sm:$0xff]
    %v451 = vld [vmem:[#allocation5 + $0x110] sm:$0xff]
    %v452 = vld [vmem:[#allocation5 + $0x118] sm:$0xff]
    %v453 = vld [vmem:[#allocation5 + $0x120] sm:$0xff]
    %v454 = vld [vmem:[#allocation5 + $0x128] sm:$0xff]
    %v455 = vld [vmem:[#allocation5 + $0x130] sm:$0xff]
    %v456 = vld [vmem:[#allocation5 + $0x138] sm:$0xff]
    %v457 = vld [vmem:[#allocation5 + $0x140] sm:$0xff]
    %v458 = vld [vmem:[#allocation5 + $0x148] sm:$0xff]
    %v459 = vld [vmem:[#allocation5 + $0x150] sm:$0xff]
    %v460 = vld [vmem:[#allocation5 + $0x158] sm:$0xff]
    %v461 = vld [vmem:[#allocation5 + $0x160] sm:$0xff]
    %v462 = vld [vmem:[#allocation5 + $0x168] sm:$0xff]
    %v463 = vld [vmem:[#allocation5 + $0x170] sm:$0xff]
    %v464 = vld [vmem:[#allocation5 + $0x178] sm:$0xff]
    %v465 = vld [vmem:[#allocation5 + $0x180] sm:$0xff]
    %v466 = vld [vmem:[#allocation5 + $0x188] sm:$0xff]
    %v467 = vld [vmem:[#allocation5 + $0x190] sm:$0xff]
    %v468 = vld [vmem:[#allocation5 + $0x198] sm:$0xff]
    %v469 = vld [vmem:[#allocation5 + $0x1a0] sm:$0xff]
    %v470 = vld [vmem:[#allocation5 + $0x1a8] sm:$0xff]
    %v471 = vld [vmem:[#allocation5 + $0x1b0] sm:$0xff]
    %v472 = vld [vmem:[#allocation5 + $0x1b8] sm:$0xff]
    %v473 = vld [vmem:[#allocation5 + $0x1c0] sm:$0xff]
    %v474 = vld [vmem:[#allocation5 + $0x1c8] sm:$0xff]
    %v475 = vld [vmem:[#allocation5 + $0x1d0] sm:$0xff]
    %v476 = vld [vmem:[#allocation5 + $0x1d8] sm:$0xff]
    %v477 = vld [vmem:[#allocation5 + $0x1e0] sm:$0xff]
    %v478 = vld [vmem:[#allocation5 + $0x1e8] sm:$0xff]
    %v479 = vld [vmem:[#allocation5 + $0x1f0] sm:$0xff]
    %v480 = vld [vmem:[#allocation5 + $0x1f8] sm:$0xff]
    %v545 = vunpack.c.l.b16 %v417
    %v546 = vunpack.c.h.b16 %v417
    %v547 = vunpack.c.l.b16 %v418
    %v548 = vunpack.c.h.b16 %v418
    %v549 = vunpack.c.l.b16 %v419
    %v550 = vunpack.c.h.b16 %v419
    %v551 = vunpack.c.l.b16 %v420
    %v552 = vunpack.c.h.b16 %v420
    %v553 = vunpack.c.l.b16 %v421
    %v554 = vunpack.c.h.b16 %v421
    %v555 = vunpack.c.l.b16 %v422
    %v556 = vunpack.c.h.b16 %v422
    %v557 = vunpack.c.l.b16 %v423
    %v558 = vunpack.c.h.b16 %v423
    %v559 = vunpack.c.l.b16 %v424
    %v560 = vunpack.c.h.b16 %v424
    %v561 = vunpack.c.l.b16 %v425
    %v562 = vunpack.c.h.b16 %v425
    %v563 = vunpack.c.l.b16 %v426
    %v564 = vunpack.c.h.b16 %v426
    %v565 = vunpack.c.l.b16 %v427
    %v566 = vunpack.c.h.b16 %v427
    %v567 = vunpack.c.l.b16 %v428
    %v568 = vunpack.c.h.b16 %v428
    %v569 = vunpack.c.l.b16 %v429
    %v570 = vunpack.c.h.b16 %v429
    %v571 = vunpack.c.l.b16 %v430
    %v572 = vunpack.c.h.b16 %v430
    %v573 = vunpack.c.l.b16 %v431
    %v574 = vunpack.c.h.b16 %v431
    %v575 = vunpack.c.l.b16 %v432
    %v576 = vunpack.c.h.b16 %v432
    %v577 = vunpack.c.l.b16 %v433
    %v578 = vunpack.c.h.b16 %v433
    %v579 = vunpack.c.l.b16 %v434
    %v580 = vunpack.c.h.b16 %v434
    %v581 = vunpack.c.l.b16 %v435
    %v582 = vunpack.c.h.b16 %v435
    %v583 = vunpack.c.l.b16 %v436
    %v584 = vunpack.c.h.b16 %v436
    %v585 = vunpack.c.l.b16 %v437
    %v586 = vunpack.c.h.b16 %v437
    %v587 = vunpack.c.l.b16 %v438
    %v588 = vunpack.c.h.b16 %v438
    %v589 = vunpack.c.l.b16 %v439
    %v590 = vunpack.c.h.b16 %v439
    %v591 = vunpack.c.l.b16 %v440
    %v592 = vunpack.c.h.b16 %v440
    %v593 = vunpack.c.l.b16 %v441
    %v594 = vunpack.c.h.b16 %v441
    %v595 = vunpack.c.l.b16 %v442
    %v596 = vunpack.c.h.b16 %v442
    %v597 = vunpack.c.l.b16 %v443
    %v598 = vunpack.c.h.b16 %v443
    %v599 = vunpack.c.l.b16 %v444
    %v600 = vunpack.c.h.b16 %v444
    %v601 = vunpack.c.l.b16 %v445
    %v602 = vunpack.c.h.b16 %v445
    %v603 = vunpack.c.l.b16 %v446
    %v604 = vunpack.c.h.b16 %v446
    %v605 = vunpack.c.l.b16 %v447
    %v606 = vunpack.c.h.b16 %v447
    %v607 = vunpack.c.l.b16 %v448
    %v608 = vunpack.c.h.b16 %v448
    %v609 = vunpack.c.l.b16 %v449
    %v610 = vunpack.c.h.b16 %v449
    %v611 = vunpack.c.l.b16 %v450
    %v612 = vunpack.c.h.b16 %v450
    %v613 = vunpack.c.l.b16 %v451
    %v614 = vunpack.c.h.b16 %v451
    %v615 = vunpack.c.l.b16 %v452
    %v616 = vunpack.c.h.b16 %v452
    %v617 = vunpack.c.l.b16 %v453
    %v618 = vunpack.c.h.b16 %v453
    %v619 = vunpack.c.l.b16 %v454
    %v620 = vunpack.c.h.b16 %v454
    %v621 = vunpack.c.l.b16 %v455
    %v622 = vunpack.c.h.b16 %v455
    %v623 = vunpack.c.l.b16 %v456
    %v624 = vunpack.c.h.b16 %v456
    %v625 = vunpack.c.l.b16 %v457
    %v626 = vunpack.c.h.b16 %v457
    %v627 = vunpack.c.l.b16 %v458
    %v628 = vunpack.c.h.b16 %v458
    %v629 = vunpack.c.l.b16 %v459
    %v630 = vunpack.c.h.b16 %v459
    %v631 = vunpack.c.l.b16 %v460
    %v632 = vunpack.c.h.b16 %v460
    %v633 = vunpack.c.l.b16 %v461
    %v634 = vunpack.c.h.b16 %v461
    %v635 = vunpack.c.l.b16 %v462
    %v636 = vunpack.c.h.b16 %v462
    %v637 = vunpack.c.l.b16 %v463
    %v638 = vunpack.c.h.b16 %v463
    %v639 = vunpack.c.l.b16 %v464
    %v640 = vunpack.c.h.b16 %v464
    %v641 = vunpack.c.l.b16 %v465
    %v642 = vunpack.c.h.b16 %v465
    %v643 = vunpack.c.l.b16 %v466
    %v644 = vunpack.c.h.b16 %v466
    %v645 = vunpack.c.l.b16 %v467
    %v646 = vunpack.c.h.b16 %v467
    %v647 = vunpack.c.l.b16 %v468
    %v648 = vunpack.c.h.b16 %v468
    %v649 = vunpack.c.l.b16 %v469
    %v650 = vunpack.c.h.b16 %v469
    %v651 = vunpack.c.l.b16 %v470
    %v652 = vunpack.c.h.b16 %v470
    %v653 = vunpack.c.l.b16 %v471
    %v654 = vunpack.c.h.b16 %v471
    %v655 = vunpack.c.l.b16 %v472
    %v656 = vunpack.c.h.b16 %v472
    %v657 = vunpack.c.l.b16 %v473
    %v658 = vunpack.c.h.b16 %v473
    %v659 = vunpack.c.l.b16 %v474
    %v660 = vunpack.c.h.b16 %v474
    %v661 = vunpack.c.l.b16 %v475
    %v662 = vunpack.c.h.b16 %v475
    %v663 = vunpack.c.l.b16 %v476
    %v664 = vunpack.c.h.b16 %v476
    %v665 = vunpack.c.l.b16 %v477
    %v666 = vunpack.c.h.b16 %v477
    %v667 = vunpack.c.l.b16 %v478
    %v668 = vunpack.c.h.b16 %v478
    %v669 = vunpack.c.l.b16 %v479
    %v670 = vunpack.c.h.b16 %v479
    %v671 = vunpack.c.l.b16 %v480
    %v672 = vunpack.c.h.b16 %v480
    %v673 = vpack.c.b16 %v549, %v545
    %v674 = vpack.c.b16 %v550, %v546
    %v675 = vpack.c.b16 %v551, %v547
    %v676 = vpack.c.b16 %v552, %v548
    %v677 = vpack.c.b16 %v557, %v553
    %v678 = vpack.c.b16 %v558, %v554
    %v679 = vpack.c.b16 %v559, %v555
    %v680 = vpack.c.b16 %v560, %v556
    %v681 = vpack.c.b16 %v565, %v561
    %v682 = vpack.c.b16 %v566, %v562
    %v683 = vpack.c.b16 %v567, %v563
    %v684 = vpack.c.b16 %v568, %v564
    %v685 = vpack.c.b16 %v573, %v569
    %v686 = vpack.c.b16 %v574, %v570
    %v687 = vpack.c.b16 %v575, %v571
    %v688 = vpack.c.b16 %v576, %v572
    %v689 = vpack.c.b16 %v581, %v577
    %v690 = vpack.c.b16 %v582, %v578
    %v691 = vpack.c.b16 %v583, %v579
    %v692 = vpack.c.b16 %v584, %v580
    %v693 = vpack.c.b16 %v589, %v585
    %v694 = vpack.c.b16 %v590, %v586
    %v695 = vpack.c.b16 %v591, %v587
    %v696 = vpack.c.b16 %v592, %v588
    %v697 = vpack.c.b16 %v597, %v593
    %v698 = vpack.c.b16 %v598, %v594
    %v699 = vpack.c.b16 %v599, %v595
    %v700 = vpack.c.b16 %v600, %v596
    %v701 = vpack.c.b16 %v605, %v601
    %v702 = vpack.c.b16 %v606, %v602
    %v703 = vpack.c.b16 %v607, %v603
    %v704 = vpack.c.b16 %v608, %v604
    %v705 = vpack.c.b16 %v613, %v609
    %v706 = vpack.c.b16 %v614, %v610
    %v707 = vpack.c.b16 %v615, %v611
    %v708 = vpack.c.b16 %v616, %v612
    %v709 = vpack.c.b16 %v621, %v617
    %v710 = vpack.c.b16 %v622, %v618
    %v711 = vpack.c.b16 %v623, %v619
    %v712 = vpack.c.b16 %v624, %v620
    %v713 = vpack.c.b16 %v629, %v625
    %v714 = vpack.c.b16 %v630, %v626
    %v715 = vpack.c.b16 %v631, %v627
    %v716 = vpack.c.b16 %v632, %v628
    %v717 = vpack.c.b16 %v637, %v633
    %v718 = vpack.c.b16 %v638, %v634
    %v719 = vpack.c.b16 %v639, %v635
    %v720 = vpack.c.b16 %v640, %v636
    %v721 = vpack.c.b16 %v645, %v641
    %v722 = vpack.c.b16 %v646, %v642
    %v723 = vpack.c.b16 %v647, %v643
    %v724 = vpack.c.b16 %v648, %v644
    %v725 = vpack.c.b16 %v653, %v649
    %v726 = vpack.c.b16 %v654, %v650
    %v727 = vpack.c.b16 %v655, %v651
    %v728 = vpack.c.b16 %v656, %v652
    %v729 = vpack.c.b16 %v661, %v657
    %v730 = vpack.c.b16 %v662, %v658
    %v731 = vpack.c.b16 %v663, %v659
    %v732 = vpack.c.b16 %v664, %v660
    %v733 = vpack.c.b16 %v669, %v665
    %v734 = vpack.c.b16 %v670, %v666
    %v735 = vpack.c.b16 %v671, %v667
    %v736 = vpack.c.b16 %v672, %v668
    %801 = vmatprep.subr.bf16.mxu0 %v702
    %802 = vmatpush1.bf16.msra.mxu0 %v701
    %803 = vmatprep.subr.bf16.mxu0 %v698
    %804 = vmatpush1.bf16.msra.mxu0 %v697
    %805 = vmatprep.subr.bf16.mxu0 %v694
    %806 = vmatpush1.bf16.msra.mxu0 %v693
    %807 = vmatprep.subr.bf16.mxu0 %v690
    %808 = vmatpush1.bf16.msra.mxu0 %v689
    %809 = vmatprep.subr.bf16.mxu0 %v686
    %810 = vmatpush1.bf16.msra.mxu0 %v685
    %811 = vmatprep.subr.bf16.mxu0 %v682
    %812 = vmatpush1.bf16.msra.mxu0 %v681
    %813 = vmatprep.subr.bf16.mxu0 %v678
    %814 = vmatpush1.bf16.msra.mxu0 %v677
    %815 = vmatprep.subr.bf16.mxu0 %v674
    %816 = vmatpush1.bf16.msra.mxu0 %v673
    %817 = vmatprep.subr.bf16.mxu0 %v734
    %818 = vmatpush2.bf16.msra.mxu0 %v733
    %819 = vmatprep.subr.bf16.mxu0 %v730
    %820 = vmatpush2.bf16.msra.mxu0 %v729
    %821 = vmatprep.subr.bf16.mxu0 %v726
    %822 = vmatpush2.bf16.msra.mxu0 %v725
    %823 = vmatprep.subr.bf16.mxu0 %v722
    %824 = vmatpush2.bf16.msra.mxu0 %v721
    %825 = vmatprep.subr.bf16.mxu0 %v718
    %826 = vmatpush2.bf16.msra.mxu0 %v717
    %827 = vmatprep.subr.bf16.mxu0 %v714
    %828 = vmatpush2.bf16.msra.mxu0 %v713
    %829 = vmatprep.subr.bf16.mxu0 %v710
    %830 = vmatpush2.bf16.msra.mxu0 %v709
    %831 = vmatprep.subr.bf16.mxu0 %v706
    %832 = vmatpush2.bf16.msra.mxu0 %v705
    %833 = vmatprep.mubr.bf16.mxu0 %v416
    %834 = vmatmul.mubr.bf16.gmra.mxu0 %v415
    %v835 = vpop.f32.mrf.mxu0
    %v836 = vadd.f32 0.0, %v835
    %v837 = vpop.f32.mrf.mxu0
    %v838 = vadd.f32 0.0, %v837
    %v839 = vpop.f32.mrf.mxu0
    %v840 = vpop.f32.mrf.mxu0
    %841 = vdwg.mxu0
    %842 = vmatprep.subr.bf16.mxu0 %v704
    %843 = vmatpush1.bf16.msra.mxu0 %v703
    %844 = vmatprep.subr.bf16.mxu0 %v700
    %845 = vmatpush1.bf16.msra.mxu0 %v699
    %846 = vmatprep.subr.bf16.mxu0 %v696
    %847 = vmatpush1.bf16.msra.mxu0 %v695
    %848 = vmatprep.subr.bf16.mxu0 %v692
    %849 = vmatpush1.bf16.msra.mxu0 %v691
    %850 = vmatprep.subr.bf16.mxu0 %v688
    %851 = vmatpush1.bf16.msra.mxu0 %v687
    %852 = vmatprep.subr.bf16.mxu0 %v684
    %853 = vmatpush1.bf16.msra.mxu0 %v683
    %854 = vmatprep.subr.bf16.mxu0 %v680
    %855 = vmatpush1.bf16.msra.mxu0 %v679
    %856 = vmatprep.subr.bf16.mxu0 %v676
    %857 = vmatpush1.bf16.msra.mxu0 %v675
    %858 = vmatprep.subr.bf16.mxu0 %v736
    %859 = vmatpush2.bf16.msra.mxu0 %v735
    %860 = vmatprep.subr.bf16.mxu0 %v732
    %861 = vmatpush2.bf16.msra.mxu0 %v731
    %862 = vmatprep.subr.bf16.mxu0 %v728
    %863 = vmatpush2.bf16.msra.mxu0 %v727
    %864 = vmatprep.subr.bf16.mxu0 %v724
    %865 = vmatpush2.bf16.msra.mxu0 %v723
    %866 = vmatprep.subr.bf16.mxu0 %v720
    %867 = vmatpush2.bf16.msra.mxu0 %v719
    %868 = vmatprep.subr.bf16.mxu0 %v716
    %869 = vmatpush2.bf16.msra.mxu0 %v715
    %870 = vmatprep.subr.bf16.mxu0 %v712
    %871 = vmatpush2.bf16.msra.mxu0 %v711
    %872 = vmatprep.subr.bf16.mxu0 %v708
    %873 = vmatpush2.bf16.msra.mxu0 %v707
    %874 = vmatprep.mubr.bf16.mxu0 %v416
    %875 = vmatmul.mubr.bf16.gmra.mxu0 %v415
    %v876 = vpop.f32.mrf.mxu0
    %v877 = vadd.f32 0.0, %v876
    %v878 = vpop.f32.mrf.mxu0
    %v879 = vadd.f32 0.0, %v878
    %v880 = vpop.f32.mrf.mxu0
    %v881 = vpop.f32.mrf.mxu0
    %882 = vdwg.mxu0
    %v883 = vld [vmem:[%s7] sm:$0xf]
    %v884 = vld [vmem:[%s8] sm:$0xf]
    %v885 = vrot.slane %v836, 4
    %v886 = vadd.f32 %v836, %v885
    %v887 = vrot.slane %v886, 2
    %v888 = vadd.f32 %v886, %v887
    %v889 = vrot.slane %v888, 1
    %v890 = vadd.f32 %v888, %v889
    %v891 = vrot.slane %v838, 4
    %v892 = vadd.f32 %v838, %v891
    %v893 = vrot.slane %v892, 2
    %v894 = vadd.f32 %v892, %v893
    %v895 = vrot.slane %v894, 1
    %v896 = vadd.f32 %v894, %v895
    %v897 = vrot.slane %v877, 4
    %v898 = vadd.f32 %v877, %v897
    %v899 = vrot.slane %v898, 2
    %v900 = vadd.f32 %v898, %v899
    %v901 = vrot.slane %v900, 1
    %v902 = vadd.f32 %v900, %v901
    %v903 = vrot.slane %v879, 4
    %v904 = vadd.f32 %v879, %v903
    %v905 = vrot.slane %v904, 2
    %v906 = vadd.f32 %v904, %v905
    %v907 = vrot.slane %v906, 1
    %v908 = vadd.f32 %v906, %v907
    %v909 = vmul.f32 %v836, %v836
    %v910 = vmul.f32 %v838, %v838
    %v911 = vmul.f32 %v877, %v877
    %v912 = vmul.f32 %v879, %v879
    %v913 = vrot.slane %v909, 4
    %v914 = vadd.f32 %v909, %v913
    %v915 = vrot.slane %v914, 2
    %v916 = vadd.f32 %v914, %v915
    %v917 = vrot.slane %v916, 1
    %v918 = vadd.f32 %v916, %v917
    %v919 = vrot.slane %v910, 4
    %v920 = vadd.f32 %v910, %v919
    %v921 = vrot.slane %v920, 2
    %v922 = vadd.f32 %v920, %v921
    %v923 = vrot.slane %v922, 1
    %v924 = vadd.f32 %v922, %v923
    %v925 = vrot.slane %v911, 4
    %v926 = vadd.f32 %v911, %v925
    %v927 = vrot.slane %v926, 2
    %v928 = vadd.f32 %v926, %v927
    %v929 = vrot.slane %v928, 1
    %v930 = vadd.f32 %v928, %v929
    %v931 = vrot.slane %v912, 4
    %v932 = vadd.f32 %v912, %v931
    %v933 = vrot.slane %v932, 2
    %v934 = vadd.f32 %v932, %v933
    %v935 = vrot.slane %v934, 1
    %v936 = vadd.f32 %v934, %v935
    %v937 = vmul.f32 %v890, 0.125
    %v938 = vmul.f32 %v896, 0.125
    %v939 = vmul.f32 %v902, 0.125
    %v940 = vmul.f32 %v908, 0.125
    %v941 = vmul.f32 %v918, 0.125
    %v942 = vmul.f32 %v924, 0.125
    %v943 = vmul.f32 %v930, 0.125
    %v944 = vmul.f32 %v936, 0.125
    %v945 = vmul.f32 %v937, %v937
    %v946 = vmul.f32 %v938, %v938
    %v947 = vmul.f32 %v939, %v939
    %v948 = vmul.f32 %v940, %v940
    %v949 = vsub.f32 %v941, %v945
    %v950 = vsub.f32 %v942, %v946
    %v951 = vsub.f32 %v943, %v947
    %v952 = vsub.f32 %v944, %v948
    %v953 = vadd.f32 %v949, 0.8
    %v954 = vadd.f32 %v950, 0.8
    %v955 = vadd.f32 %v951, 0.8
    %v956 = vadd.f32 %v952, 0.8
    %v957 = vrsqrt.pop %v953
    %v958 = vrsqrt.pop %v954
    %v959 = vrsqrt.pop %v955
    %v960 = vrsqrt.pop %v956
    %v965 = vcombine.low %v957, %v958
    %v966 = vcombine.low %v959, %v960
    %v968 = vunpack.c.l.s4 1966171168
    %v969 = vunpack.c.0.s8 %v968
    %v970 = vlaneseq
    %v971 = vshrl.u32 %v970, 7
    %v972 = vsub.s32 %v969, %v971
    %v973 = vrot.slane %v965, %v972
    %v975 = vunpack.c.l.s4 1966171168
    %v976 = vunpack.c.0.s8 %v975
    %v977 = vlaneseq
    %v978 = vshrl.u32 %v977, 7
    %v979 = vsub.s32 %v976, %v978
    %v980 = vrot.slane %v966, %v979
    %v981 = vcombine.low %v973, %v980
    %v983 = vunpack.c.l.s4 1966171168
    %v984 = vunpack.c.0.s8 %v983
    %v985 = vlaneseq
    %v986 = vshrl.u32 %v985, 7
    %v987 = vsub.s32 %v984, %v986
    %v988 = vrot.slane %v981, %v987
    %v990 = vmul.f32 %v883, %v988
    %v992 = vlaneseq
    %v993 = vshrl.u32 %v992, 7
    %v994 = vsub.s32 0, %v993
    %v995 = vrot.slane %v990, %v994
    %v996 = vlaneseq
    %v997 = vshrl.u32 %v996, 7
    %v998 = vsub.s32 1, %v997
    %v999 = vrot.slane %v990, %v998
    %v1000 = vlaneseq
    %v1001 = vshrl.u32 %v1000, 7
    %v1002 = vsub.s32 2, %v1001
    %v1003 = vrot.slane %v990, %v1002
    %v1004 = vlaneseq
    %v1005 = vshrl.u32 %v1004, 7
    %v1006 = vsub.s32 3, %v1005
    %v1007 = vrot.slane %v990, %v1006
    %v1012 = vmul.f32 %v937, %v995
    %v1013 = vmul.f32 %v938, %v999
    %v1014 = vmul.f32 %v939, %v1003
    %v1015 = vmul.f32 %v940, %v1007
    %v1020 = vcombine.low %v1012, %v1013
    %v1021 = vcombine.low %v1014, %v1015
    %v1023 = vunpack.c.l.s4 1966171168
    %v1024 = vunpack.c.0.s8 %v1023
    %v1025 = vlaneseq
    %v1026 = vshrl.u32 %v1025, 7
    %v1027 = vsub.s32 %v1024, %v1026
    %v1028 = vrot.slane %v1020, %v1027
    %v1030 = vunpack.c.l.s4 1966171168
    %v1031 = vunpack.c.0.s8 %v1030
    %v1032 = vlaneseq
    %v1033 = vshrl.u32 %v1032, 7
    %v1034 = vsub.s32 %v1031, %v1033
    %v1035 = vrot.slane %v1021, %v1034
    %v1036 = vcombine.low %v1028, %v1035
    %v1038 = vunpack.c.l.s4 1966171168
    %v1039 = vunpack.c.0.s8 %v1038
    %v1040 = vlaneseq
    %v1041 = vshrl.u32 %v1040, 7
    %v1042 = vsub.s32 %v1039, %v1041
    %v1043 = vrot.slane %v1036, %v1042
    %v1045 = vsub.f32 %v884, %v1043
    %v1046 = vmul.f32 %v836, %v995
    %v1047 = vmul.f32 %v838, %v999
    %v1048 = vmul.f32 %v877, %v1003
    %v1049 = vmul.f32 %v879, %v1007
    %v1051 = vlaneseq
    %v1052 = vshrl.u32 %v1051, 7
    %v1053 = vsub.s32 0, %v1052
    %v1054 = vrot.slane %v1045, %v1053
    %v1055 = vlaneseq
    %v1056 = vshrl.u32 %v1055, 7
    %v1057 = vsub.s32 1, %v1056
    %v1058 = vrot.slane %v1045, %v1057
    %v1059 = vlaneseq
    %v1060 = vshrl.u32 %v1059, 7
    %v1061 = vsub.s32 2, %v1060
    %v1062 = vrot.slane %v1045, %v1061
    %v1063 = vlaneseq
    %v1064 = vshrl.u32 %v1063, 7
    %v1065 = vsub.s32 3, %v1064
    %v1066 = vrot.slane %v1045, %v1065
    %v1071 = vadd.f32 %v1046, %v1054
    %v1072 = vadd.f32 %v1047, %v1058
    %v1073 = vadd.f32 %v1048, %v1062
    %v1074 = vadd.f32 %v1049, %v1066
    %v1075 = vmul.f32 %v1071, 0.2
    %v1076 = vmul.f32 %v1072, 0.2
    %v1077 = vmul.f32 %v1073, 0.2
    %v1078 = vmul.f32 %v1074, 0.2
    %v1079 = vmax.f32 %v1071, %v1075
    %v1080 = vmax.f32 %v1072, %v1076
    %v1081 = vmax.f32 %v1073, %v1077
    %v1082 = vmax.f32 %v1074, %v1078
    %v1083 = vpack.c.bf16 %v1079, %v1079
    %v1084 = vpack.c.bf16 %v1080, %v1080
    %v1085 = vpack.c.bf16 %v1081, %v1081
    %v1086 = vpack.c.bf16 %v1082, %v1082
    %v1087 = vld [vmem:[#allocation7] sm:$0xff]
    %v1088 = vld [vmem:[#allocation7 + $0x8] sm:$0xff]
    %v1089 = vld [vmem:[#allocation7 + $0x10] sm:$0xff]
    %v1090 = vld [vmem:[#allocation7 + $0x18] sm:$0xff]
    %v1091 = vld [vmem:[#allocation7 + $0x20] sm:$0xff]
    %v1092 = vld [vmem:[#allocation7 + $0x28] sm:$0xff]
    %v1093 = vld [vmem:[#allocation7 + $0x30] sm:$0xff]
    %v1094 = vld [vmem:[#allocation7 + $0x38] sm:$0xff]
    %v1095 = vld [vmem:[#allocation7 + $0x40] sm:$0xff]
    %v1096 = vld [vmem:[#allocation7 + $0x48] sm:$0xff]
    %v1097 = vld [vmem:[#allocation7 + $0x50] sm:$0xff]
    %v1098 = vld [vmem:[#allocation7 + $0x58] sm:$0xff]
    %v1099 = vld [vmem:[#allocation7 + $0x60] sm:$0xff]
    %v1100 = vld [vmem:[#allocation7 + $0x68] sm:$0xff]
    %v1101 = vld [vmem:[#allocation7 + $0x70] sm:$0xff]
    %v1102 = vld [vmem:[#allocation7 + $0x78] sm:$0xff]
    %v1103 = vld [vmem:[#allocation7 + $0x80] sm:$0xff]
    %v1104 = vld [vmem:[#allocation7 + $0x88] sm:$0xff]
    %v1105 = vld [vmem:[#allocation7 + $0x90] sm:$0xff]
    %v1106 = vld [vmem:[#allocation7 + $0x98] sm:$0xff]
    %v1107 = vld [vmem:[#allocation7 + $0xa0] sm:$0xff]
    %v1108 = vld [vmem:[#allocation7 + $0xa8] sm:$0xff]
    %v1109 = vld [vmem:[#allocation7 + $0xb0] sm:$0xff]
    %v1110 = vld [vmem:[#allocation7 + $0xb8] sm:$0xff]
    %v1111 = vld [vmem:[#allocation7 + $0xc0] sm:$0xff]
    %v1112 = vld [vmem:[#allocation7 + $0xc8] sm:$0xff]
    %v1113 = vld [vmem:[#allocation7 + $0xd0] sm:$0xff]
    %v1114 = vld [vmem:[#allocation7 + $0xd8] sm:$0xff]
    %v1115 = vld [vmem:[#allocation7 + $0xe0] sm:$0xff]
    %v1116 = vld [vmem:[#allocation7 + $0xe8] sm:$0xff]
    %v1117 = vld [vmem:[#allocation7 + $0xf0] sm:$0xff]
    %v1118 = vld [vmem:[#allocation7 + $0xf8] sm:$0xff]
    %v1119 = vld [vmem:[#allocation7 + $0x100] sm:$0xff]
    %v1120 = vld [vmem:[#allocation7 + $0x108] sm:$0xff]
    %v1121 = vld [vmem:[#allocation7 + $0x110] sm:$0xff]
    %v1122 = vld [vmem:[#allocation7 + $0x118] sm:$0xff]
    %v1123 = vld [vmem:[#allocation7 + $0x120] sm:$0xff]
    %v1124 = vld [vmem:[#allocation7 + $0x128] sm:$0xff]
    %v1125 = vld [vmem:[#allocation7 + $0x130] sm:$0xff]
    %v1126 = vld [vmem:[#allocation7 + $0x138] sm:$0xff]
    %v1127 = vld [vmem:[#allocation7 + $0x140] sm:$0xff]
    %v1128 = vld [vmem:[#allocation7 + $0x148] sm:$0xff]
    %v1129 = vld [vmem:[#allocation7 + $0x150] sm:$0xff]
    %v1130 = vld [vmem:[#allocation7 + $0x158] sm:$0xff]
    %v1131 = vld [vmem:[#allocation7 + $0x160] sm:$0xff]
    %v1132 = vld [vmem:[#allocation7 + $0x168] sm:$0xff]
    %v1133 = vld [vmem:[#allocation7 + $0x170] sm:$0xff]
    %v1134 = vld [vmem:[#allocation7 + $0x178] sm:$0xff]
    %v1135 = vld [vmem:[#allocation7 + $0x180] sm:$0xff]
    %v1136 = vld [vmem:[#allocation7 + $0x188] sm:$0xff]
    %v1137 = vld [vmem:[#allocation7 + $0x190] sm:$0xff]
    %v1138 = vld [vmem:[#allocation7 + $0x198] sm:$0xff]
    %v1139 = vld [vmem:[#allocation7 + $0x1a0] sm:$0xff]
    %v1140 = vld [vmem:[#allocation7 + $0x1a8] sm:$0xff]
    %v1141 = vld [vmem:[#allocation7 + $0x1b0] sm:$0xff]
    %v1142 = vld [vmem:[#allocation7 + $0x1b8] sm:$0xff]
    %v1143 = vld [vmem:[#allocation7 + $0x1c0] sm:$0xff]
    %v1144 = vld [vmem:[#allocation7 + $0x1c8] sm:$0xff]
    %v1145 = vld [vmem:[#allocation7 + $0x1d0] sm:$0xff]
    %v1146 = vld [vmem:[#allocation7 + $0x1d8] sm:$0xff]
    %v1147 = vld [vmem:[#allocation7 + $0x1e0] sm:$0xff]
    %v1148 = vld [vmem:[#allocation7 + $0x1e8] sm:$0xff]
    %v1149 = vld [vmem:[#allocation7 + $0x1f0] sm:$0xff]
    %v1150 = vld [vmem:[#allocation7 + $0x1f8] sm:$0xff]
    %v1151 = vld [vmem:[#allocation7 + $0x200] sm:$0xff]
    %v1152 = vld [vmem:[#allocation7 + $0x208] sm:$0xff]
    %v1153 = vld [vmem:[#allocation7 + $0x210] sm:$0xff]
    %v1154 = vld [vmem:[#allocation7 + $0x218] sm:$0xff]
    %v1155 = vld [vmem:[#allocation7 + $0x220] sm:$0xff]
    %v1156 = vld [vmem:[#allocation7 + $0x228] sm:$0xff]
    %v1157 = vld [vmem:[#allocation7 + $0x230] sm:$0xff]
    %v1158 = vld [vmem:[#allocation7 + $0x238] sm:$0xff]
    %v1159 = vld [vmem:[#allocation7 + $0x240] sm:$0xff]
    %v1160 = vld [vmem:[#allocation7 + $0x248] sm:$0xff]
    %v1161 = vld [vmem:[#allocation7 + $0x250] sm:$0xff]
    %v1162 = vld [vmem:[#allocation7 + $0x258] sm:$0xff]
    %v1163 = vld [vmem:[#allocation7 + $0x260] sm:$0xff]
    %v1164 = vld [vmem:[#allocation7 + $0x268] sm:$0xff]
    %v1165 = vld [vmem:[#allocation7 + $0x270] sm:$0xff]
    %v1166 = vld [vmem:[#allocation7 + $0x278] sm:$0xff]
    %v1167 = vld [vmem:[#allocation7 + $0x280] sm:$0xff]
    %v1168 = vld [vmem:[#allocation7 + $0x288] sm:$0xff]
    %v1169 = vld [vmem:[#allocation7 + $0x290] sm:$0xff]
    %v1170 = vld [vmem:[#allocation7 + $0x298] sm:$0xff]
    %v1171 = vld [vmem:[#allocation7 + $0x2a0] sm:$0xff]
    %v1172 = vld [vmem:[#allocation7 + $0x2a8] sm:$0xff]
    %v1173 = vld [vmem:[#allocation7 + $0x2b0] sm:$0xff]
    %v1174 = vld [vmem:[#allocation7 + $0x2b8] sm:$0xff]
    %v1175 = vld [vmem:[#allocation7 + $0x2c0] sm:$0xff]
    %v1176 = vld [vmem:[#allocation7 + $0x2c8] sm:$0xff]
    %v1177 = vld [vmem:[#allocation7 + $0x2d0] sm:$0xff]
    %v1178 = vld [vmem:[#allocation7 + $0x2d8] sm:$0xff]
    %v1179 = vld [vmem:[#allocation7 + $0x2e0] sm:$0xff]
    %v1180 = vld [vmem:[#allocation7 + $0x2e8] sm:$0xff]
    %v1181 = vld [vmem:[#allocation7 + $0x2f0] sm:$0xff]
    %v1182 = vld [vmem:[#allocation7 + $0x2f8] sm:$0xff]
    %v1183 = vld [vmem:[#allocation7 + $0x300] sm:$0xff]
    %v1184 = vld [vmem:[#allocation7 + $0x308] sm:$0xff]
    %v1185 = vld [vmem:[#allocation7 + $0x310] sm:$0xff]
    %v1186 = vld [vmem:[#allocation7 + $0x318] sm:$0xff]
    %v1187 = vld [vmem:[#allocation7 + $0x320] sm:$0xff]
    %v1188 = vld [vmem:[#allocation7 + $0x328] sm:$0xff]
    %v1189 = vld [vmem:[#allocation7 + $0x330] sm:$0xff]
    %v1190 = vld [vmem:[#allocation7 + $0x338] sm:$0xff]
    %v1191 = vld [vmem:[#allocation7 + $0x340] sm:$0xff]
    %v1192 = vld [vmem:[#allocation7 + $0x348] sm:$0xff]
    %v1193 = vld [vmem:[#allocation7 + $0x350] sm:$0xff]
    %v1194 = vld [vmem:[#allocation7 + $0x358] sm:$0xff]
    %v1195 = vld [vmem:[#allocation7 + $0x360] sm:$0xff]
    %v1196 = vld [vmem:[#allocation7 + $0x368] sm:$0xff]
    %v1197 = vld [vmem:[#allocation7 + $0x370] sm:$0xff]
    %v1198 = vld [vmem:[#allocation7 + $0x378] sm:$0xff]
    %v1199 = vld [vmem:[#allocation7 + $0x380] sm:$0xff]
    %v1200 = vld [vmem:[#allocation7 + $0x388] sm:$0xff]
    %v1201 = vld [vmem:[#allocation7 + $0x390] sm:$0xff]
    %v1202 = vld [vmem:[#allocation7 + $0x398] sm:$0xff]
    %v1203 = vld [vmem:[#allocation7 + $0x3a0] sm:$0xff]
    %v1204 = vld [vmem:[#allocation7 + $0x3a8] sm:$0xff]
    %v1205 = vld [vmem:[#allocation7 + $0x3b0] sm:$0xff]
    %v1206 = vld [vmem:[#allocation7 + $0x3b8] sm:$0xff]
    %v1207 = vld [vmem:[#allocation7 + $0x3c0] sm:$0xff]
    %v1208 = vld [vmem:[#allocation7 + $0x3c8] sm:$0xff]
    %v1209 = vld [vmem:[#allocation7 + $0x3d0] sm:$0xff]
    %v1210 = vld [vmem:[#allocation7 + $0x3d8] sm:$0xff]
    %v1211 = vld [vmem:[#allocation7 + $0x3e0] sm:$0xff]
    %v1212 = vld [vmem:[#allocation7 + $0x3e8] sm:$0xff]
    %v1213 = vld [vmem:[#allocation7 + $0x3f0] sm:$0xff]
    %v1214 = vld [vmem:[#allocation7 + $0x3f8] sm:$0xff]
    %v1215 = vld [vmem:[#allocation7 + $0x400] sm:$0xff]
    %v1216 = vld [vmem:[#allocation7 + $0x408] sm:$0xff]
    %v1217 = vld [vmem:[#allocation7 + $0x410] sm:$0xff]
    %v1218 = vld [vmem:[#allocation7 + $0x418] sm:$0xff]
    %v1219 = vld [vmem:[#allocation7 + $0x420] sm:$0xff]
    %v1220 = vld [vmem:[#allocation7 + $0x428] sm:$0xff]
    %v1221 = vld [vmem:[#allocation7 + $0x430] sm:$0xff]
    %v1222 = vld [vmem:[#allocation7 + $0x438] sm:$0xff]
    %v1223 = vld [vmem:[#allocation7 + $0x440] sm:$0xff]
    %v1224 = vld [vmem:[#allocation7 + $0x448] sm:$0xff]
    %v1225 = vld [vmem:[#allocation7 + $0x450] sm:$0xff]
    %v1226 = vld [vmem:[#allocation7 + $0x458] sm:$0xff]
    %v1227 = vld [vmem:[#allocation7 + $0x460] sm:$0xff]
    %v1228 = vld [vmem:[#allocation7 + $0x468] sm:$0xff]
    %v1229 = vld [vmem:[#allocation7 + $0x470] sm:$0xff]
    %v1230 = vld [vmem:[#allocation7 + $0x478] sm:$0xff]
    %v1231 = vld [vmem:[#allocation7 + $0x480] sm:$0xff]
    %v1232 = vld [vmem:[#allocation7 + $0x488] sm:$0xff]
    %v1233 = vld [vmem:[#allocation7 + $0x490] sm:$0xff]
    %v1234 = vld [vmem:[#allocation7 + $0x498] sm:$0xff]
    %v1235 = vld [vmem:[#allocation7 + $0x4a0] sm:$0xff]
    %v1236 = vld [vmem:[#allocation7 + $0x4a8] sm:$0xff]
    %v1237 = vld [vmem:[#allocation7 + $0x4b0] sm:$0xff]
    %v1238 = vld [vmem:[#allocation7 + $0x4b8] sm:$0xff]
    %v1239 = vld [vmem:[#allocation7 + $0x4c0] sm:$0xff]
    %v1240 = vld [vmem:[#allocation7 + $0x4c8] sm:$0xff]
    %v1241 = vld [vmem:[#allocation7 + $0x4d0] sm:$0xff]
    %v1242 = vld [vmem:[#allocation7 + $0x4d8] sm:$0xff]
    %v1243 = vld [vmem:[#allocation7 + $0x4e0] sm:$0xff]
    %v1244 = vld [vmem:[#allocation7 + $0x4e8] sm:$0xff]
    %v1245 = vld [vmem:[#allocation7 + $0x4f0] sm:$0xff]
    %v1246 = vld [vmem:[#allocation7 + $0x4f8] sm:$0xff]
    %v1247 = vld [vmem:[#allocation7 + $0x500] sm:$0xff]
    %v1248 = vld [vmem:[#allocation7 + $0x508] sm:$0xff]
    %v1249 = vld [vmem:[#allocation7 + $0x510] sm:$0xff]
    %v1250 = vld [vmem:[#allocation7 + $0x518] sm:$0xff]
    %v1251 = vld [vmem:[#allocation7 + $0x520] sm:$0xff]
    %v1252 = vld [vmem:[#allocation7 + $0x528] sm:$0xff]
    %v1253 = vld [vmem:[#allocation7 + $0x530] sm:$0xff]
    %v1254 = vld [vmem:[#allocation7 + $0x538] sm:$0xff]
    %v1255 = vld [vmem:[#allocation7 + $0x540] sm:$0xff]
    %v1256 = vld [vmem:[#allocation7 + $0x548] sm:$0xff]
    %v1257 = vld [vmem:[#allocation7 + $0x550] sm:$0xff]
    %v1258 = vld [vmem:[#allocation7 + $0x558] sm:$0xff]
    %v1259 = vld [vmem:[#allocation7 + $0x560] sm:$0xff]
    %v1260 = vld [vmem:[#allocation7 + $0x568] sm:$0xff]
    %v1261 = vld [vmem:[#allocation7 + $0x570] sm:$0xff]
    %v1262 = vld [vmem:[#allocation7 + $0x578] sm:$0xff]
    %v1263 = vld [vmem:[#allocation7 + $0x580] sm:$0xff]
    %v1264 = vld [vmem:[#allocation7 + $0x588] sm:$0xff]
    %v1265 = vld [vmem:[#allocation7 + $0x590] sm:$0xff]
    %v1266 = vld [vmem:[#allocation7 + $0x598] sm:$0xff]
    %v1267 = vld [vmem:[#allocation7 + $0x5a0] sm:$0xff]
    %v1268 = vld [vmem:[#allocation7 + $0x5a8] sm:$0xff]
    %v1269 = vld [vmem:[#allocation7 + $0x5b0] sm:$0xff]
    %v1270 = vld [vmem:[#allocation7 + $0x5b8] sm:$0xff]
    %v1271 = vld [vmem:[#allocation7 + $0x5c0] sm:$0xff]
    %v1272 = vld [vmem:[#allocation7 + $0x5c8] sm:$0xff]
    %v1273 = vld [vmem:[#allocation7 + $0x5d0] sm:$0xff]
    %v1274 = vld [vmem:[#allocation7 + $0x5d8] sm:$0xff]
    %v1275 = vld [vmem:[#allocation7 + $0x5e0] sm:$0xff]
    %v1276 = vld [vmem:[#allocation7 + $0x5e8] sm:$0xff]
    %v1277 = vld [vmem:[#allocation7 + $0x5f0] sm:$0xff]
    %v1278 = vld [vmem:[#allocation7 + $0x5f8] sm:$0xff]
    %v1279 = vld [vmem:[#allocation7 + $0x600] sm:$0xff]
    %v1280 = vld [vmem:[#allocation7 + $0x608] sm:$0xff]
    %v1281 = vld [vmem:[#allocation7 + $0x610] sm:$0xff]
    %v1282 = vld [vmem:[#allocation7 + $0x618] sm:$0xff]
    %v1283 = vld [vmem:[#allocation7 + $0x620] sm:$0xff]
    %v1284 = vld [vmem:[#allocation7 + $0x628] sm:$0xff]
    %v1285 = vld [vmem:[#allocation7 + $0x630] sm:$0xff]
    %v1286 = vld [vmem:[#allocation7 + $0x638] sm:$0xff]
    %v1287 = vld [vmem:[#allocation7 + $0x640] sm:$0xff]
    %v1288 = vld [vmem:[#allocation7 + $0x648] sm:$0xff]
    %v1289 = vld [vmem:[#allocation7 + $0x650] sm:$0xff]
    %v1290 = vld [vmem:[#allocation7 + $0x658] sm:$0xff]
    %v1291 = vld [vmem:[#allocation7 + $0x660] sm:$0xff]
    %v1292 = vld [vmem:[#allocation7 + $0x668] sm:$0xff]
    %v1293 = vld [vmem:[#allocation7 + $0x670] sm:$0xff]
    %v1294 = vld [vmem:[#allocation7 + $0x678] sm:$0xff]
    %v1295 = vld [vmem:[#allocation7 + $0x680] sm:$0xff]
    %v1296 = vld [vmem:[#allocation7 + $0x688] sm:$0xff]
    %v1297 = vld [vmem:[#allocation7 + $0x690] sm:$0xff]
    %v1298 = vld [vmem:[#allocation7 + $0x698] sm:$0xff]
    %v1299 = vld [vmem:[#allocation7 + $0x6a0] sm:$0xff]
    %v1300 = vld [vmem:[#allocation7 + $0x6a8] sm:$0xff]
    %v1301 = vld [vmem:[#allocation7 + $0x6b0] sm:$0xff]
    %v1302 = vld [vmem:[#allocation7 + $0x6b8] sm:$0xff]
    %v1303 = vld [vmem:[#allocation7 + $0x6c0] sm:$0xff]
    %v1304 = vld [vmem:[#allocation7 + $0x6c8] sm:$0xff]
    %v1305 = vld [vmem:[#allocation7 + $0x6d0] sm:$0xff]
    %v1306 = vld [vmem:[#allocation7 + $0x6d8] sm:$0xff]
    %v1307 = vld [vmem:[#allocation7 + $0x6e0] sm:$0xff]
    %v1308 = vld [vmem:[#allocation7 + $0x6e8] sm:$0xff]
    %v1309 = vld [vmem:[#allocation7 + $0x6f0] sm:$0xff]
    %v1310 = vld [vmem:[#allocation7 + $0x6f8] sm:$0xff]
    %v1311 = vld [vmem:[#allocation7 + $0x700] sm:$0xff]
    %v1312 = vld [vmem:[#allocation7 + $0x708] sm:$0xff]
    %v1313 = vld [vmem:[#allocation7 + $0x710] sm:$0xff]
    %v1314 = vld [vmem:[#allocation7 + $0x718] sm:$0xff]
    %v1315 = vld [vmem:[#allocation7 + $0x720] sm:$0xff]
    %v1316 = vld [vmem:[#allocation7 + $0x728] sm:$0xff]
    %v1317 = vld [vmem:[#allocation7 + $0x730] sm:$0xff]
    %v1318 = vld [vmem:[#allocation7 + $0x738] sm:$0xff]
    %v1319 = vld [vmem:[#allocation7 + $0x740] sm:$0xff]
    %v1320 = vld [vmem:[#allocation7 + $0x748] sm:$0xff]
    %v1321 = vld [vmem:[#allocation7 + $0x750] sm:$0xff]
    %v1322 = vld [vmem:[#allocation7 + $0x758] sm:$0xff]
    %v1323 = vld [vmem:[#allocation7 + $0x760] sm:$0xff]
    %v1324 = vld [vmem:[#allocation7 + $0x768] sm:$0xff]
    %v1325 = vld [vmem:[#allocation7 + $0x770] sm:$0xff]
    %v1326 = vld [vmem:[#allocation7 + $0x778] sm:$0xff]
    %v1327 = vld [vmem:[#allocation7 + $0x780] sm:$0xff]
    %v1328 = vld [vmem:[#allocation7 + $0x788] sm:$0xff]
    %v1329 = vld [vmem:[#allocation7 + $0x790] sm:$0xff]
    %v1330 = vld [vmem:[#allocation7 + $0x798] sm:$0xff]
    %v1331 = vld [vmem:[#allocation7 + $0x7a0] sm:$0xff]
    %v1332 = vld [vmem:[#allocation7 + $0x7a8] sm:$0xff]
    %v1333 = vld [vmem:[#allocation7 + $0x7b0] sm:$0xff]
    %v1334 = vld [vmem:[#allocation7 + $0x7b8] sm:$0xff]
    %v1335 = vld [vmem:[#allocation7 + $0x7c0] sm:$0xff]
    %v1336 = vld [vmem:[#allocation7 + $0x7c8] sm:$0xff]
    %v1337 = vld [vmem:[#allocation7 + $0x7d0] sm:$0xff]
    %v1338 = vld [vmem:[#allocation7 + $0x7d8] sm:$0xff]
    %v1339 = vld [vmem:[#allocation7 + $0x7e0] sm:$0xff]
    %v1340 = vld [vmem:[#allocation7 + $0x7e8] sm:$0xff]
    %v1341 = vld [vmem:[#allocation7 + $0x7f0] sm:$0xff]
    %v1342 = vld [vmem:[#allocation7 + $0x7f8] sm:$0xff]
    %v1599 = vunpack.c.l.b16 %v1087
    %v1600 = vunpack.c.h.b16 %v1087
    %v1601 = vunpack.c.l.b16 %v1088
    %v1602 = vunpack.c.h.b16 %v1088
    %v1603 = vunpack.c.l.b16 %v1089
    %v1604 = vunpack.c.h.b16 %v1089
    %v1605 = vunpack.c.l.b16 %v1090
    %v1606 = vunpack.c.h.b16 %v1090
    %v1607 = vunpack.c.l.b16 %v1091
    %v1608 = vunpack.c.h.b16 %v1091
    %v1609 = vunpack.c.l.b16 %v1092
    %v1610 = vunpack.c.h.b16 %v1092
    %v1611 = vunpack.c.l.b16 %v1093
    %v1612 = vunpack.c.h.b16 %v1093
    %v1613 = vunpack.c.l.b16 %v1094
    %v1614 = vunpack.c.h.b16 %v1094
    %v1615 = vunpack.c.l.b16 %v1095
    %v1616 = vunpack.c.h.b16 %v1095
    %v1617 = vunpack.c.l.b16 %v1096
    %v1618 = vunpack.c.h.b16 %v1096
    %v1619 = vunpack.c.l.b16 %v1097
    %v1620 = vunpack.c.h.b16 %v1097
    %v1621 = vunpack.c.l.b16 %v1098
    %v1622 = vunpack.c.h.b16 %v1098
    %v1623 = vunpack.c.l.b16 %v1099
    %v1624 = vunpack.c.h.b16 %v1099
    %v1625 = vunpack.c.l.b16 %v1100
    %v1626 = vunpack.c.h.b16 %v1100
    %v1627 = vunpack.c.l.b16 %v1101
    %v1628 = vunpack.c.h.b16 %v1101
    %v1629 = vunpack.c.l.b16 %v1102
    %v1630 = vunpack.c.h.b16 %v1102
    %v1631 = vunpack.c.l.b16 %v1103
    %v1632 = vunpack.c.h.b16 %v1103
    %v1633 = vunpack.c.l.b16 %v1104
    %v1634 = vunpack.c.h.b16 %v1104
    %v1635 = vunpack.c.l.b16 %v1105
    %v1636 = vunpack.c.h.b16 %v1105
    %v1637 = vunpack.c.l.b16 %v1106
    %v1638 = vunpack.c.h.b16 %v1106
    %v1639 = vunpack.c.l.b16 %v1107
    %v1640 = vunpack.c.h.b16 %v1107
    %v1641 = vunpack.c.l.b16 %v1108
    %v1642 = vunpack.c.h.b16 %v1108
    %v1643 = vunpack.c.l.b16 %v1109
    %v1644 = vunpack.c.h.b16 %v1109
    %v1645 = vunpack.c.l.b16 %v1110
    %v1646 = vunpack.c.h.b16 %v1110
    %v1647 = vunpack.c.l.b16 %v1111
    %v1648 = vunpack.c.h.b16 %v1111
    %v1649 = vunpack.c.l.b16 %v1112
    %v1650 = vunpack.c.h.b16 %v1112
    %v1651 = vunpack.c.l.b16 %v1113
    %v1652 = vunpack.c.h.b16 %v1113
    %v1653 = vunpack.c.l.b16 %v1114
    %v1654 = vunpack.c.h.b16 %v1114
    %v1655 = vunpack.c.l.b16 %v1115
    %v1656 = vunpack.c.h.b16 %v1115
    %v1657 = vunpack.c.l.b16 %v1116
    %v1658 = vunpack.c.h.b16 %v1116
    %v1659 = vunpack.c.l.b16 %v1117
    %v1660 = vunpack.c.h.b16 %v1117
    %v1661 = vunpack.c.l.b16 %v1118
    %v1662 = vunpack.c.h.b16 %v1118
    %v1663 = vunpack.c.l.b16 %v1119
    %v1664 = vunpack.c.h.b16 %v1119
    %v1665 = vunpack.c.l.b16 %v1120
    %v1666 = vunpack.c.h.b16 %v1120
    %v1667 = vunpack.c.l.b16 %v1121
    %v1668 = vunpack.c.h.b16 %v1121
    %v1669 = vunpack.c.l.b16 %v1122
    %v1670 = vunpack.c.h.b16 %v1122
    %v1671 = vunpack.c.l.b16 %v1123
    %v1672 = vunpack.c.h.b16 %v1123
    %v1673 = vunpack.c.l.b16 %v1124
    %v1674 = vunpack.c.h.b16 %v1124
    %v1675 = vunpack.c.l.b16 %v1125
    %v1676 = vunpack.c.h.b16 %v1125
    %v1677 = vunpack.c.l.b16 %v1126
    %v1678 = vunpack.c.h.b16 %v1126
    %v1679 = vunpack.c.l.b16 %v1127
    %v1680 = vunpack.c.h.b16 %v1127
    %v1681 = vunpack.c.l.b16 %v1128
    %v1682 = vunpack.c.h.b16 %v1128
    %v1683 = vunpack.c.l.b16 %v1129
    %v1684 = vunpack.c.h.b16 %v1129
    %v1685 = vunpack.c.l.b16 %v1130
    %v1686 = vunpack.c.h.b16 %v1130
    %v1687 = vunpack.c.l.b16 %v1131
    %v1688 = vunpack.c.h.b16 %v1131
    %v1689 = vunpack.c.l.b16 %v1132
    %v1690 = vunpack.c.h.b16 %v1132
    %v1691 = vunpack.c.l.b16 %v1133
    %v1692 = vunpack.c.h.b16 %v1133
    %v1693 = vunpack.c.l.b16 %v1134
    %v1694 = vunpack.c.h.b16 %v1134
    %v1695 = vunpack.c.l.b16 %v1135
    %v1696 = vunpack.c.h.b16 %v1135
    %v1697 = vunpack.c.l.b16 %v1136
    %v1698 = vunpack.c.h.b16 %v1136
    %v1699 = vunpack.c.l.b16 %v1137
    %v1700 = vunpack.c.h.b16 %v1137
    %v1701 = vunpack.c.l.b16 %v1138
    %v1702 = vunpack.c.h.b16 %v1138
    %v1703 = vunpack.c.l.b16 %v1139
    %v1704 = vunpack.c.h.b16 %v1139
    %v1705 = vunpack.c.l.b16 %v1140
    %v1706 = vunpack.c.h.b16 %v1140
    %v1707 = vunpack.c.l.b16 %v1141
    %v1708 = vunpack.c.h.b16 %v1141
    %v1709 = vunpack.c.l.b16 %v1142
    %v1710 = vunpack.c.h.b16 %v1142
    %v1711 = vunpack.c.l.b16 %v1143
    %v1712 = vunpack.c.h.b16 %v1143
    %v1713 = vunpack.c.l.b16 %v1144
    %v1714 = vunpack.c.h.b16 %v1144
    %v1715 = vunpack.c.l.b16 %v1145
    %v1716 = vunpack.c.h.b16 %v1145
    %v1717 = vunpack.c.l.b16 %v1146
    %v1718 = vunpack.c.h.b16 %v1146
    %v1719 = vunpack.c.l.b16 %v1147
    %v1720 = vunpack.c.h.b16 %v1147
    %v1721 = vunpack.c.l.b16 %v1148
    %v1722 = vunpack.c.h.b16 %v1148
    %v1723 = vunpack.c.l.b16 %v1149
    %v1724 = vunpack.c.h.b16 %v1149
    %v1725 = vunpack.c.l.b16 %v1150
    %v1726 = vunpack.c.h.b16 %v1150
    %v1727 = vunpack.c.l.b16 %v1151
    %v1728 = vunpack.c.h.b16 %v1151
    %v1729 = vunpack.c.l.b16 %v1152
    %v1730 = vunpack.c.h.b16 %v1152
    %v1731 = vunpack.c.l.b16 %v1153
    %v1732 = vunpack.c.h.b16 %v1153
    %v1733 = vunpack.c.l.b16 %v1154
    %v1734 = vunpack.c.h.b16 %v1154
    %v1735 = vunpack.c.l.b16 %v1155
    %v1736 = vunpack.c.h.b16 %v1155
    %v1737 = vunpack.c.l.b16 %v1156
    %v1738 = vunpack.c.h.b16 %v1156
    %v1739 = vunpack.c.l.b16 %v1157
    %v1740 = vunpack.c.h.b16 %v1157
    %v1741 = vunpack.c.l.b16 %v1158
    %v1742 = vunpack.c.h.b16 %v1158
    %v1743 = vunpack.c.l.b16 %v1159
    %v1744 = vunpack.c.h.b16 %v1159
    %v1745 = vunpack.c.l.b16 %v1160
    %v1746 = vunpack.c.h.b16 %v1160
    %v1747 = vunpack.c.l.b16 %v1161
    %v1748 = vunpack.c.h.b16 %v1161
    %v1749 = vunpack.c.l.b16 %v1162
    %v1750 = vunpack.c.h.b16 %v1162
    %v1751 = vunpack.c.l.b16 %v1163
    %v1752 = vunpack.c.h.b16 %v1163
    %v1753 = vunpack.c.l.b16 %v1164
    %v1754 = vunpack.c.h.b16 %v1164
    %v1755 = vunpack.c.l.b16 %v1165
    %v1756 = vunpack.c.h.b16 %v1165
    %v1757 = vunpack.c.l.b16 %v1166
    %v1758 = vunpack.c.h.b16 %v1166
    %v1759 = vunpack.c.l.b16 %v1167
    %v1760 = vunpack.c.h.b16 %v1167
    %v1761 = vunpack.c.l.b16 %v1168
    %v1762 = vunpack.c.h.b16 %v1168
    %v1763 = vunpack.c.l.b16 %v1169
    %v1764 = vunpack.c.h.b16 %v1169
    %v1765 = vunpack.c.l.b16 %v1170
    %v1766 = vunpack.c.h.b16 %v1170
    %v1767 = vunpack.c.l.b16 %v1171
    %v1768 = vunpack.c.h.b16 %v1171
    %v1769 = vunpack.c.l.b16 %v1172
    %v1770 = vunpack.c.h.b16 %v1172
    %v1771 = vunpack.c.l.b16 %v1173
    %v1772 = vunpack.c.h.b16 %v1173
    %v1773 = vunpack.c.l.b16 %v1174
    %v1774 = vunpack.c.h.b16 %v1174
    %v1775 = vunpack.c.l.b16 %v1175
    %v1776 = vunpack.c.h.b16 %v1175
    %v1777 = vunpack.c.l.b16 %v1176
    %v1778 = vunpack.c.h.b16 %v1176
    %v1779 = vunpack.c.l.b16 %v1177
    %v1780 = vunpack.c.h.b16 %v1177
    %v1781 = vunpack.c.l.b16 %v1178
    %v1782 = vunpack.c.h.b16 %v1178
    %v1783 = vunpack.c.l.b16 %v1179
    %v1784 = vunpack.c.h.b16 %v1179
    %v1785 = vunpack.c.l.b16 %v1180
    %v1786 = vunpack.c.h.b16 %v1180
    %v1787 = vunpack.c.l.b16 %v1181
    %v1788 = vunpack.c.h.b16 %v1181
    %v1789 = vunpack.c.l.b16 %v1182
    %v1790 = vunpack.c.h.b16 %v1182
    %v1791 = vunpack.c.l.b16 %v1183
    %v1792 = vunpack.c.h.b16 %v1183
    %v1793 = vunpack.c.l.b16 %v1184
    %v1794 = vunpack.c.h.b16 %v1184
    %v1795 = vunpack.c.l.b16 %v1185
    %v1796 = vunpack.c.h.b16 %v1185
    %v1797 = vunpack.c.l.b16 %v1186
    %v1798 = vunpack.c.h.b16 %v1186
    %v1799 = vunpack.c.l.b16 %v1187
    %v1800 = vunpack.c.h.b16 %v1187
    %v1801 = vunpack.c.l.b16 %v1188
    %v1802 = vunpack.c.h.b16 %v1188
    %v1803 = vunpack.c.l.b16 %v1189
    %v1804 = vunpack.c.h.b16 %v1189
    %v1805 = vunpack.c.l.b16 %v1190
    %v1806 = vunpack.c.h.b16 %v1190
    %v1807 = vunpack.c.l.b16 %v1191
    %v1808 = vunpack.c.h.b16 %v1191
    %v1809 = vunpack.c.l.b16 %v1192
    %v1810 = vunpack.c.h.b16 %v1192
    %v1811 = vunpack.c.l.b16 %v1193
    %v1812 = vunpack.c.h.b16 %v1193
    %v1813 = vunpack.c.l.b16 %v1194
    %v1814 = vunpack.c.h.b16 %v1194
    %v1815 = vunpack.c.l.b16 %v1195
    %v1816 = vunpack.c.h.b16 %v1195
    %v1817 = vunpack.c.l.b16 %v1196
    %v1818 = vunpack.c.h.b16 %v1196
    %v1819 = vunpack.c.l.b16 %v1197
    %v1820 = vunpack.c.h.b16 %v1197
    %v1821 = vunpack.c.l.b16 %v1198
    %v1822 = vunpack.c.h.b16 %v1198
    %v1823 = vunpack.c.l.b16 %v1199
    %v1824 = vunpack.c.h.b16 %v1199
    %v1825 = vunpack.c.l.b16 %v1200
    %v1826 = vunpack.c.h.b16 %v1200
    %v1827 = vunpack.c.l.b16 %v1201
    %v1828 = vunpack.c.h.b16 %v1201
    %v1829 = vunpack.c.l.b16 %v1202
    %v1830 = vunpack.c.h.b16 %v1202
    %v1831 = vunpack.c.l.b16 %v1203
    %v1832 = vunpack.c.h.b16 %v1203
    %v1833 = vunpack.c.l.b16 %v1204
    %v1834 = vunpack.c.h.b16 %v1204
    %v1835 = vunpack.c.l.b16 %v1205
    %v1836 = vunpack.c.h.b16 %v1205
    %v1837 = vunpack.c.l.b16 %v1206
    %v1838 = vunpack.c.h.b16 %v1206
    %v1839 = vunpack.c.l.b16 %v1207
    %v1840 = vunpack.c.h.b16 %v1207
    %v1841 = vunpack.c.l.b16 %v1208
    %v1842 = vunpack.c.h.b16 %v1208
    %v1843 = vunpack.c.l.b16 %v1209
    %v1844 = vunpack.c.h.b16 %v1209
    %v1845 = vunpack.c.l.b16 %v1210
    %v1846 = vunpack.c.h.b16 %v1210
    %v1847 = vunpack.c.l.b16 %v1211
    %v1848 = vunpack.c.h.b16 %v1211
    %v1849 = vunpack.c.l.b16 %v1212
    %v1850 = vunpack.c.h.b16 %v1212
    %v1851 = vunpack.c.l.b16 %v1213
    %v1852 = vunpack.c.h.b16 %v1213
    %v1853 = vunpack.c.l.b16 %v1214
    %v1854 = vunpack.c.h.b16 %v1214
    %v1855 = vunpack.c.l.b16 %v1215
    %v1856 = vunpack.c.h.b16 %v1215
    %v1857 = vunpack.c.l.b16 %v1216
    %v1858 = vunpack.c.h.b16 %v1216
    %v1859 = vunpack.c.l.b16 %v1217
    %v1860 = vunpack.c.h.b16 %v1217
    %v1861 = vunpack.c.l.b16 %v1218
    %v1862 = vunpack.c.h.b16 %v1218
    %v1863 = vunpack.c.l.b16 %v1219
    %v1864 = vunpack.c.h.b16 %v1219
    %v1865 = vunpack.c.l.b16 %v1220
    %v1866 = vunpack.c.h.b16 %v1220
    %v1867 = vunpack.c.l.b16 %v1221
    %v1868 = vunpack.c.h.b16 %v1221
    %v1869 = vunpack.c.l.b16 %v1222
    %v1870 = vunpack.c.h.b16 %v1222
    %v1871 = vunpack.c.l.b16 %v1223
    %v1872 = vunpack.c.h.b16 %v1223
    %v1873 = vunpack.c.l.b16 %v1224
    %v1874 = vunpack.c.h.b16 %v1224
    %v1875 = vunpack.c.l.b16 %v1225
    %v1876 = vunpack.c.h.b16 %v1225
    %v1877 = vunpack.c.l.b16 %v1226
    %v1878 = vunpack.c.h.b16 %v1226
    %v1879 = vunpack.c.l.b16 %v1227
    %v1880 = vunpack.c.h.b16 %v1227
    %v1881 = vunpack.c.l.b16 %v1228
    %v1882 = vunpack.c.h.b16 %v1228
    %v1883 = vunpack.c.l.b16 %v1229
    %v1884 = vunpack.c.h.b16 %v1229
    %v1885 = vunpack.c.l.b16 %v1230
    %v1886 = vunpack.c.h.b16 %v1230
    %v1887 = vunpack.c.l.b16 %v1231
    %v1888 = vunpack.c.h.b16 %v1231
    %v1889 = vunpack.c.l.b16 %v1232
    %v1890 = vunpack.c.h.b16 %v1232
    %v1891 = vunpack.c.l.b16 %v1233
    %v1892 = vunpack.c.h.b16 %v1233
    %v1893 = vunpack.c.l.b16 %v1234
    %v1894 = vunpack.c.h.b16 %v1234
    %v1895 = vunpack.c.l.b16 %v1235
    %v1896 = vunpack.c.h.b16 %v1235
    %v1897 = vunpack.c.l.b16 %v1236
    %v1898 = vunpack.c.h.b16 %v1236
    %v1899 = vunpack.c.l.b16 %v1237
    %v1900 = vunpack.c.h.b16 %v1237
    %v1901 = vunpack.c.l.b16 %v1238
    %v1902 = vunpack.c.h.b16 %v1238
    %v1903 = vunpack.c.l.b16 %v1239
    %v1904 = vunpack.c.h.b16 %v1239
    %v1905 = vunpack.c.l.b16 %v1240
    %v1906 = vunpack.c.h.b16 %v1240
    %v1907 = vunpack.c.l.b16 %v1241
    %v1908 = vunpack.c.h.b16 %v1241
    %v1909 = vunpack.c.l.b16 %v1242
    %v1910 = vunpack.c.h.b16 %v1242
    %v1911 = vunpack.c.l.b16 %v1243
    %v1912 = vunpack.c.h.b16 %v1243
    %v1913 = vunpack.c.l.b16 %v1244
    %v1914 = vunpack.c.h.b16 %v1244
    %v1915 = vunpack.c.l.b16 %v1245
    %v1916 = vunpack.c.h.b16 %v1245
    %v1917 = vunpack.c.l.b16 %v1246
    %v1918 = vunpack.c.h.b16 %v1246
    %v1919 = vunpack.c.l.b16 %v1247
    %v1920 = vunpack.c.h.b16 %v1247
    %v1921 = vunpack.c.l.b16 %v1248
    %v1922 = vunpack.c.h.b16 %v1248
    %v1923 = vunpack.c.l.b16 %v1249
    %v1924 = vunpack.c.h.b16 %v1249
    %v1925 = vunpack.c.l.b16 %v1250
    %v1926 = vunpack.c.h.b16 %v1250
    %v1927 = vunpack.c.l.b16 %v1251
    %v1928 = vunpack.c.h.b16 %v1251
    %v1929 = vunpack.c.l.b16 %v1252
    %v1930 = vunpack.c.h.b16 %v1252
    %v1931 = vunpack.c.l.b16 %v1253
    %v1932 = vunpack.c.h.b16 %v1253
    %v1933 = vunpack.c.l.b16 %v1254
    %v1934 = vunpack.c.h.b16 %v1254
    %v1935 = vunpack.c.l.b16 %v1255
    %v1936 = vunpack.c.h.b16 %v1255
    %v1937 = vunpack.c.l.b16 %v1256
    %v1938 = vunpack.c.h.b16 %v1256
    %v1939 = vunpack.c.l.b16 %v1257
    %v1940 = vunpack.c.h.b16 %v1257
    %v1941 = vunpack.c.l.b16 %v1258
    %v1942 = vunpack.c.h.b16 %v1258
    %v1943 = vunpack.c.l.b16 %v1259
    %v1944 = vunpack.c.h.b16 %v1259
    %v1945 = vunpack.c.l.b16 %v1260
    %v1946 = vunpack.c.h.b16 %v1260
    %v1947 = vunpack.c.l.b16 %v1261
    %v1948 = vunpack.c.h.b16 %v1261
    %v1949 = vunpack.c.l.b16 %v1262
    %v1950 = vunpack.c.h.b16 %v1262
    %v1951 = vunpack.c.l.b16 %v1263
    %v1952 = vunpack.c.h.b16 %v1263
    %v1953 = vunpack.c.l.b16 %v1264
    %v1954 = vunpack.c.h.b16 %v1264
    %v1955 = vunpack.c.l.b16 %v1265
    %v1956 = vunpack.c.h.b16 %v1265
    %v1957 = vunpack.c.l.b16 %v1266
    %v1958 = vunpack.c.h.b16 %v1266
    %v1959 = vunpack.c.l.b16 %v1267
    %v1960 = vunpack.c.h.b16 %v1267
    %v1961 = vunpack.c.l.b16 %v1268
    %v1962 = vunpack.c.h.b16 %v1268
    %v1963 = vunpack.c.l.b16 %v1269
    %v1964 = vunpack.c.h.b16 %v1269
    %v1965 = vunpack.c.l.b16 %v1270
    %v1966 = vunpack.c.h.b16 %v1270
    %v1967 = vunpack.c.l.b16 %v1271
    %v1968 = vunpack.c.h.b16 %v1271
    %v1969 = vunpack.c.l.b16 %v1272
    %v1970 = vunpack.c.h.b16 %v1272
    %v1971 = vunpack.c.l.b16 %v1273
    %v1972 = vunpack.c.h.b16 %v1273
    %v1973 = vunpack.c.l.b16 %v1274
    %v1974 = vunpack.c.h.b16 %v1274
    %v1975 = vunpack.c.l.b16 %v1275
    %v1976 = vunpack.c.h.b16 %v1275
    %v1977 = vunpack.c.l.b16 %v1276
    %v1978 = vunpack.c.h.b16 %v1276
    %v1979 = vunpack.c.l.b16 %v1277
    %v1980 = vunpack.c.h.b16 %v1277
    %v1981 = vunpack.c.l.b16 %v1278
    %v1982 = vunpack.c.h.b16 %v1278
    %v1983 = vunpack.c.l.b16 %v1279
    %v1984 = vunpack.c.h.b16 %v1279
    %v1985 = vunpack.c.l.b16 %v1280
    %v1986 = vunpack.c.h.b16 %v1280
    %v1987 = vunpack.c.l.b16 %v1281
    %v1988 = vunpack.c.h.b16 %v1281
    %v1989 = vunpack.c.l.b16 %v1282
    %v1990 = vunpack.c.h.b16 %v1282
    %v1991 = vunpack.c.l.b16 %v1283
    %v1992 = vunpack.c.h.b16 %v1283
    %v1993 = vunpack.c.l.b16 %v1284
    %v1994 = vunpack.c.h.b16 %v1284
    %v1995 = vunpack.c.l.b16 %v1285
    %v1996 = vunpack.c.h.b16 %v1285
    %v1997 = vunpack.c.l.b16 %v1286
    %v1998 = vunpack.c.h.b16 %v1286
    %v1999 = vunpack.c.l.b16 %v1287
    %v2000 = vunpack.c.h.b16 %v1287
    %v2001 = vunpack.c.l.b16 %v1288
    %v2002 = vunpack.c.h.b16 %v1288
    %v2003 = vunpack.c.l.b16 %v1289
    %v2004 = vunpack.c.h.b16 %v1289
    %v2005 = vunpack.c.l.b16 %v1290
    %v2006 = vunpack.c.h.b16 %v1290
    %v2007 = vunpack.c.l.b16 %v1291
    %v2008 = vunpack.c.h.b16 %v1291
    %v2009 = vunpack.c.l.b16 %v1292
    %v2010 = vunpack.c.h.b16 %v1292
    %v2011 = vunpack.c.l.b16 %v1293
    %v2012 = vunpack.c.h.b16 %v1293
    %v2013 = vunpack.c.l.b16 %v1294
    %v2014 = vunpack.c.h.b16 %v1294
    %v2015 = vunpack.c.l.b16 %v1295
    %v2016 = vunpack.c.h.b16 %v1295
    %v2017 = vunpack.c.l.b16 %v1296
    %v2018 = vunpack.c.h.b16 %v1296
    %v2019 = vunpack.c.l.b16 %v1297
    %v2020 = vunpack.c.h.b16 %v1297
    %v2021 = vunpack.c.l.b16 %v1298
    %v2022 = vunpack.c.h.b16 %v1298
    %v2023 = vunpack.c.l.b16 %v1299
    %v2024 = vunpack.c.h.b16 %v1299
    %v2025 = vunpack.c.l.b16 %v1300
    %v2026 = vunpack.c.h.b16 %v1300
    %v2027 = vunpack.c.l.b16 %v1301
    %v2028 = vunpack.c.h.b16 %v1301
    %v2029 = vunpack.c.l.b16 %v1302
    %v2030 = vunpack.c.h.b16 %v1302
    %v2031 = vunpack.c.l.b16 %v1303
    %v2032 = vunpack.c.h.b16 %v1303
    %v2033 = vunpack.c.l.b16 %v1304
    %v2034 = vunpack.c.h.b16 %v1304
    %v2035 = vunpack.c.l.b16 %v1305
    %v2036 = vunpack.c.h.b16 %v1305
    %v2037 = vunpack.c.l.b16 %v1306
    %v2038 = vunpack.c.h.b16 %v1306
    %v2039 = vunpack.c.l.b16 %v1307
    %v2040 = vunpack.c.h.b16 %v1307
    %v2041 = vunpack.c.l.b16 %v1308
    %v2042 = vunpack.c.h.b16 %v1308
    %v2043 = vunpack.c.l.b16 %v1309
    %v2044 = vunpack.c.h.b16 %v1309
    %v2045 = vunpack.c.l.b16 %v1310
    %v2046 = vunpack.c.h.b16 %v1310
    %v2047 = vunpack.c.l.b16 %v1311
    %v2048 = vunpack.c.h.b16 %v1311
    %v2049 = vunpack.c.l.b16 %v1312
    %v2050 = vunpack.c.h.b16 %v1312
    %v2051 = vunpack.c.l.b16 %v1313
    %v2052 = vunpack.c.h.b16 %v1313
    %v2053 = vunpack.c.l.b16 %v1314
    %v2054 = vunpack.c.h.b16 %v1314
    %v2055 = vunpack.c.l.b16 %v1315
    %v2056 = vunpack.c.h.b16 %v1315
    %v2057 = vunpack.c.l.b16 %v1316
    %v2058 = vunpack.c.h.b16 %v1316
    %v2059 = vunpack.c.l.b16 %v1317
    %v2060 = vunpack.c.h.b16 %v1317
    %v2061 = vunpack.c.l.b16 %v1318
    %v2062 = vunpack.c.h.b16 %v1318
    %v2063 = vunpack.c.l.b16 %v1319
    %v2064 = vunpack.c.h.b16 %v1319
    %v2065 = vunpack.c.l.b16 %v1320
    %v2066 = vunpack.c.h.b16 %v1320
    %v2067 = vunpack.c.l.b16 %v1321
    %v2068 = vunpack.c.h.b16 %v1321
    %v2069 = vunpack.c.l.b16 %v1322
    %v2070 = vunpack.c.h.b16 %v1322
    %v2071 = vunpack.c.l.b16 %v1323
    %v2072 = vunpack.c.h.b16 %v1323
    %v2073 = vunpack.c.l.b16 %v1324
    %v2074 = vunpack.c.h.b16 %v1324
    %v2075 = vunpack.c.l.b16 %v1325
    %v2076 = vunpack.c.h.b16 %v1325
    %v2077 = vunpack.c.l.b16 %v1326
    %v2078 = vunpack.c.h.b16 %v1326
    %v2079 = vunpack.c.l.b16 %v1327
    %v2080 = vunpack.c.h.b16 %v1327
    %v2081 = vunpack.c.l.b16 %v1328
    %v2082 = vunpack.c.h.b16 %v1328
    %v2083 = vunpack.c.l.b16 %v1329
    %v2084 = vunpack.c.h.b16 %v1329
    %v2085 = vunpack.c.l.b16 %v1330
    %v2086 = vunpack.c.h.b16 %v1330
    %v2087 = vunpack.c.l.b16 %v1331
    %v2088 = vunpack.c.h.b16 %v1331
    %v2089 = vunpack.c.l.b16 %v1332
    %v2090 = vunpack.c.h.b16 %v1332
    %v2091 = vunpack.c.l.b16 %v1333
    %v2092 = vunpack.c.h.b16 %v1333
    %v2093 = vunpack.c.l.b16 %v1334
    %v2094 = vunpack.c.h.b16 %v1334
    %v2095 = vunpack.c.l.b16 %v1335
    %v2096 = vunpack.c.h.b16 %v1335
    %v2097 = vunpack.c.l.b16 %v1336
    %v2098 = vunpack.c.h.b16 %v1336
    %v2099 = vunpack.c.l.b16 %v1337
    %v2100 = vunpack.c.h.b16 %v1337
    %v2101 = vunpack.c.l.b16 %v1338
    %v2102 = vunpack.c.h.b16 %v1338
    %v2103 = vunpack.c.l.b16 %v1339
    %v2104 = vunpack.c.h.b16 %v1339
    %v2105 = vunpack.c.l.b16 %v1340
    %v2106 = vunpack.c.h.b16 %v1340
    %v2107 = vunpack.c.l.b16 %v1341
    %v2108 = vunpack.c.h.b16 %v1341
    %v2109 = vunpack.c.l.b16 %v1342
    %v2110 = vunpack.c.h.b16 %v1342
    %v2111 = vpack.c.b16 %v1607, %v1599
    %v2112 = vpack.c.b16 %v1608, %v1600
    %v2113 = vpack.c.b16 %v1609, %v1601
    %v2114 = vpack.c.b16 %v1610, %v1602
    %v2115 = vpack.c.b16 %v1611, %v1603
    %v2116 = vpack.c.b16 %v1612, %v1604
    %v2117 = vpack.c.b16 %v1613, %v1605
    %v2118 = vpack.c.b16 %v1614, %v1606
    %v2119 = vpack.c.b16 %v1623, %v1615
    %v2120 = vpack.c.b16 %v1624, %v1616
    %v2121 = vpack.c.b16 %v1625, %v1617
    %v2122 = vpack.c.b16 %v1626, %v1618
    %v2123 = vpack.c.b16 %v1627, %v1619
    %v2124 = vpack.c.b16 %v1628, %v1620
    %v2125 = vpack.c.b16 %v1629, %v1621
    %v2126 = vpack.c.b16 %v1630, %v1622
    %v2127 = vpack.c.b16 %v1639, %v1631
    %v2128 = vpack.c.b16 %v1640, %v1632
    %v2129 = vpack.c.b16 %v1641, %v1633
    %v2130 = vpack.c.b16 %v1642, %v1634
    %v2131 = vpack.c.b16 %v1643, %v1635
    %v2132 = vpack.c.b16 %v1644, %v1636
    %v2133 = vpack.c.b16 %v1645, %v1637
    %v2134 = vpack.c.b16 %v1646, %v1638
    %v2135 = vpack.c.b16 %v1655, %v1647
    %v2136 = vpack.c.b16 %v1656, %v1648
    %v2137 = vpack.c.b16 %v1657, %v1649
    %v2138 = vpack.c.b16 %v1658, %v1650
    %v2139 = vpack.c.b16 %v1659, %v1651
    %v2140 = vpack.c.b16 %v1660, %v1652
    %v2141 = vpack.c.b16 %v1661, %v1653
    %v2142 = vpack.c.b16 %v1662, %v1654
    %v2143 = vpack.c.b16 %v1671, %v1663
    %v2144 = vpack.c.b16 %v1672, %v1664
    %v2145 = vpack.c.b16 %v1673, %v1665
    %v2146 = vpack.c.b16 %v1674, %v1666
    %v2147 = vpack.c.b16 %v1675, %v1667
    %v2148 = vpack.c.b16 %v1676, %v1668
    %v2149 = vpack.c.b16 %v1677, %v1669
    %v2150 = vpack.c.b16 %v1678, %v1670
    %v2151 = vpack.c.b16 %v1687, %v1679
    %v2152 = vpack.c.b16 %v1688, %v1680
    %v2153 = vpack.c.b16 %v1689, %v1681
    %v2154 = vpack.c.b16 %v1690, %v1682
    %v2155 = vpack.c.b16 %v1691, %v1683
    %v2156 = vpack.c.b16 %v1692, %v1684
    %v2157 = vpack.c.b16 %v1693, %v1685
    %v2158 = vpack.c.b16 %v1694, %v1686
    %v2159 = vpack.c.b16 %v1703, %v1695
    %v2160 = vpack.c.b16 %v1704, %v1696
    %v2161 = vpack.c.b16 %v1705, %v1697
    %v2162 = vpack.c.b16 %v1706, %v1698
    %v2163 = vpack.c.b16 %v1707, %v1699
    %v2164 = vpack.c.b16 %v1708, %v1700
    %v2165 = vpack.c.b16 %v1709, %v1701
    %v2166 = vpack.c.b16 %v1710, %v1702
    %v2167 = vpack.c.b16 %v1719, %v1711
    %v2168 = vpack.c.b16 %v1720, %v1712
    %v2169 = vpack.c.b16 %v1721, %v1713
    %v2170 = vpack.c.b16 %v1722, %v1714
    %v2171 = vpack.c.b16 %v1723, %v1715
    %v2172 = vpack.c.b16 %v1724, %v1716
    %v2173 = vpack.c.b16 %v1725, %v1717
    %v2174 = vpack.c.b16 %v1726, %v1718
    %v2175 = vpack.c.b16 %v1735, %v1727
    %v2176 = vpack.c.b16 %v1736, %v1728
    %v2177 = vpack.c.b16 %v1737, %v1729
    %v2178 = vpack.c.b16 %v1738, %v1730
    %v2179 = vpack.c.b16 %v1739, %v1731
    %v2180 = vpack.c.b16 %v1740, %v1732
    %v2181 = vpack.c.b16 %v1741, %v1733
    %v2182 = vpack.c.b16 %v1742, %v1734
    %v2183 = vpack.c.b16 %v1751, %v1743
    %v2184 = vpack.c.b16 %v1752, %v1744
    %v2185 = vpack.c.b16 %v1753, %v1745
    %v2186 = vpack.c.b16 %v1754, %v1746
    %v2187 = vpack.c.b16 %v1755, %v1747
    %v2188 = vpack.c.b16 %v1756, %v1748
    %v2189 = vpack.c.b16 %v1757, %v1749
    %v2190 = vpack.c.b16 %v1758, %v1750
    %v2191 = vpack.c.b16 %v1767, %v1759
    %v2192 = vpack.c.b16 %v1768, %v1760
    %v2193 = vpack.c.b16 %v1769, %v1761
    %v2194 = vpack.c.b16 %v1770, %v1762
    %v2195 = vpack.c.b16 %v1771, %v1763
    %v2196 = vpack.c.b16 %v1772, %v1764
    %v2197 = vpack.c.b16 %v1773, %v1765
    %v2198 = vpack.c.b16 %v1774, %v1766
    %v2199 = vpack.c.b16 %v1783, %v1775
    %v2200 = vpack.c.b16 %v1784, %v1776
    %v2201 = vpack.c.b16 %v1785, %v1777
    %v2202 = vpack.c.b16 %v1786, %v1778
    %v2203 = vpack.c.b16 %v1787, %v1779
    %v2204 = vpack.c.b16 %v1788, %v1780
    %v2205 = vpack.c.b16 %v1789, %v1781
    %v2206 = vpack.c.b16 %v1790, %v1782
    %v2207 = vpack.c.b16 %v1799, %v1791
    %v2208 = vpack.c.b16 %v1800, %v1792
    %v2209 = vpack.c.b16 %v1801, %v1793
    %v2210 = vpack.c.b16 %v1802, %v1794
    %v2211 = vpack.c.b16 %v1803, %v1795
    %v2212 = vpack.c.b16 %v1804, %v1796
    %v2213 = vpack.c.b16 %v1805, %v1797
    %v2214 = vpack.c.b16 %v1806, %v1798
    %v2215 = vpack.c.b16 %v1815, %v1807
    %v2216 = vpack.c.b16 %v1816, %v1808
    %v2217 = vpack.c.b16 %v1817, %v1809
    %v2218 = vpack.c.b16 %v1818, %v1810
    %v2219 = vpack.c.b16 %v1819, %v1811
    %v2220 = vpack.c.b16 %v1820, %v1812
    %v2221 = vpack.c.b16 %v1821, %v1813
    %v2222 = vpack.c.b16 %v1822, %v1814
    %v2223 = vpack.c.b16 %v1831, %v1823
    %v2224 = vpack.c.b16 %v1832, %v1824
    %v2225 = vpack.c.b16 %v1833, %v1825
    %v2226 = vpack.c.b16 %v1834, %v1826
    %v2227 = vpack.c.b16 %v1835, %v1827
    %v2228 = vpack.c.b16 %v1836, %v1828
    %v2229 = vpack.c.b16 %v1837, %v1829
    %v2230 = vpack.c.b16 %v1838, %v1830
    %v2231 = vpack.c.b16 %v1847, %v1839
    %v2232 = vpack.c.b16 %v1848, %v1840
    %v2233 = vpack.c.b16 %v1849, %v1841
    %v2234 = vpack.c.b16 %v1850, %v1842
    %v2235 = vpack.c.b16 %v1851, %v1843
    %v2236 = vpack.c.b16 %v1852, %v1844
    %v2237 = vpack.c.b16 %v1853, %v1845
    %v2238 = vpack.c.b16 %v1854, %v1846
    %v2239 = vpack.c.b16 %v1863, %v1855
    %v2240 = vpack.c.b16 %v1864, %v1856
    %v2241 = vpack.c.b16 %v1865, %v1857
    %v2242 = vpack.c.b16 %v1866, %v1858
    %v2243 = vpack.c.b16 %v1867, %v1859
    %v2244 = vpack.c.b16 %v1868, %v1860
    %v2245 = vpack.c.b16 %v1869, %v1861
    %v2246 = vpack.c.b16 %v1870, %v1862
    %v2247 = vpack.c.b16 %v1879, %v1871
    %v2248 = vpack.c.b16 %v1880, %v1872
    %v2249 = vpack.c.b16 %v1881, %v1873
    %v2250 = vpack.c.b16 %v1882, %v1874
    %v2251 = vpack.c.b16 %v1883, %v1875
    %v2252 = vpack.c.b16 %v1884, %v1876
    %v2253 = vpack.c.b16 %v1885, %v1877
    %v2254 = vpack.c.b16 %v1886, %v1878
    %v2255 = vpack.c.b16 %v1895, %v1887
    %v2256 = vpack.c.b16 %v1896, %v1888
    %v2257 = vpack.c.b16 %v1897, %v1889
    %v2258 = vpack.c.b16 %v1898, %v1890
    %v2259 = vpack.c.b16 %v1899, %v1891
    %v2260 = vpack.c.b16 %v1900, %v1892
    %v2261 = vpack.c.b16 %v1901, %v1893
    %v2262 = vpack.c.b16 %v1902, %v1894
    %v2263 = vpack.c.b16 %v1911, %v1903
    %v2264 = vpack.c.b16 %v1912, %v1904
    %v2265 = vpack.c.b16 %v1913, %v1905
    %v2266 = vpack.c.b16 %v1914, %v1906
    %v2267 = vpack.c.b16 %v1915, %v1907
    %v2268 = vpack.c.b16 %v1916, %v1908
    %v2269 = vpack.c.b16 %v1917, %v1909
    %v2270 = vpack.c.b16 %v1918, %v1910
    %v2271 = vpack.c.b16 %v1927, %v1919
    %v2272 = vpack.c.b16 %v1928, %v1920
    %v2273 = vpack.c.b16 %v1929, %v1921
    %v2274 = vpack.c.b16 %v1930, %v1922
    %v2275 = vpack.c.b16 %v1931, %v1923
    %v2276 = vpack.c.b16 %v1932, %v1924
    %v2277 = vpack.c.b16 %v1933, %v1925
    %v2278 = vpack.c.b16 %v1934, %v1926
    %v2279 = vpack.c.b16 %v1943, %v1935
    %v2280 = vpack.c.b16 %v1944, %v1936
    %v2281 = vpack.c.b16 %v1945, %v1937
    %v2282 = vpack.c.b16 %v1946, %v1938
    %v2283 = vpack.c.b16 %v1947, %v1939
    %v2284 = vpack.c.b16 %v1948, %v1940
    %v2285 = vpack.c.b16 %v1949, %v1941
    %v2286 = vpack.c.b16 %v1950, %v1942
    %v2287 = vpack.c.b16 %v1959, %v1951
    %v2288 = vpack.c.b16 %v1960, %v1952
    %v2289 = vpack.c.b16 %v1961, %v1953
    %v2290 = vpack.c.b16 %v1962, %v1954
    %v2291 = vpack.c.b16 %v1963, %v1955
    %v2292 = vpack.c.b16 %v1964, %v1956
    %v2293 = vpack.c.b16 %v1965, %v1957
    %v2294 = vpack.c.b16 %v1966, %v1958
    %v2295 = vpack.c.b16 %v1975, %v1967
    %v2296 = vpack.c.b16 %v1976, %v1968
    %v2297 = vpack.c.b16 %v1977, %v1969
    %v2298 = vpack.c.b16 %v1978, %v1970
    %v2299 = vpack.c.b16 %v1979, %v1971
    %v2300 = vpack.c.b16 %v1980, %v1972
    %v2301 = vpack.c.b16 %v1981, %v1973
    %v2302 = vpack.c.b16 %v1982, %v1974
    %v2303 = vpack.c.b16 %v1991, %v1983
    %v2304 = vpack.c.b16 %v1992, %v1984
    %v2305 = vpack.c.b16 %v1993, %v1985
    %v2306 = vpack.c.b16 %v1994, %v1986
    %v2307 = vpack.c.b16 %v1995, %v1987
    %v2308 = vpack.c.b16 %v1996, %v1988
    %v2309 = vpack.c.b16 %v1997, %v1989
    %v2310 = vpack.c.b16 %v1998, %v1990
    %v2311 = vpack.c.b16 %v2007, %v1999
    %v2312 = vpack.c.b16 %v2008, %v2000
    %v2313 = vpack.c.b16 %v2009, %v2001
    %v2314 = vpack.c.b16 %v2010, %v2002
    %v2315 = vpack.c.b16 %v2011, %v2003
    %v2316 = vpack.c.b16 %v2012, %v2004
    %v2317 = vpack.c.b16 %v2013, %v2005
    %v2318 = vpack.c.b16 %v2014, %v2006
    %v2319 = vpack.c.b16 %v2023, %v2015
    %v2320 = vpack.c.b16 %v2024, %v2016
    %v2321 = vpack.c.b16 %v2025, %v2017
    %v2322 = vpack.c.b16 %v2026, %v2018
    %v2323 = vpack.c.b16 %v2027, %v2019
    %v2324 = vpack.c.b16 %v2028, %v2020
    %v2325 = vpack.c.b16 %v2029, %v2021
    %v2326 = vpack.c.b16 %v2030, %v2022
    %v2327 = vpack.c.b16 %v2039, %v2031
    %v2328 = vpack.c.b16 %v2040, %v2032
    %v2329 = vpack.c.b16 %v2041, %v2033
    %v2330 = vpack.c.b16 %v2042, %v2034
    %v2331 = vpack.c.b16 %v2043, %v2035
    %v2332 = vpack.c.b16 %v2044, %v2036
    %v2333 = vpack.c.b16 %v2045, %v2037
    %v2334 = vpack.c.b16 %v2046, %v2038
    %v2335 = vpack.c.b16 %v2055, %v2047
    %v2336 = vpack.c.b16 %v2056, %v2048
    %v2337 = vpack.c.b16 %v2057, %v2049
    %v2338 = vpack.c.b16 %v2058, %v2050
    %v2339 = vpack.c.b16 %v2059, %v2051
    %v2340 = vpack.c.b16 %v2060, %v2052
    %v2341 = vpack.c.b16 %v2061, %v2053
    %v2342 = vpack.c.b16 %v2062, %v2054
    %v2343 = vpack.c.b16 %v2071, %v2063
    %v2344 = vpack.c.b16 %v2072, %v2064
    %v2345 = vpack.c.b16 %v2073, %v2065
    %v2346 = vpack.c.b16 %v2074, %v2066
    %v2347 = vpack.c.b16 %v2075, %v2067
    %v2348 = vpack.c.b16 %v2076, %v2068
    %v2349 = vpack.c.b16 %v2077, %v2069
    %v2350 = vpack.c.b16 %v2078, %v2070
    %v2351 = vpack.c.b16 %v2087, %v2079
    %v2352 = vpack.c.b16 %v2088, %v2080
    %v2353 = vpack.c.b16 %v2089, %v2081
    %v2354 = vpack.c.b16 %v2090, %v2082
    %v2355 = vpack.c.b16 %v2091, %v2083
    %v2356 = vpack.c.b16 %v2092, %v2084
    %v2357 = vpack.c.b16 %v2093, %v2085
    %v2358 = vpack.c.b16 %v2094, %v2086
    %v2359 = vpack.c.b16 %v2103, %v2095
    %v2360 = vpack.c.b16 %v2104, %v2096
    %v2361 = vpack.c.b16 %v2105, %v2097
    %v2362 = vpack.c.b16 %v2106, %v2098
    %v2363 = vpack.c.b16 %v2107, %v2099
    %v2364 = vpack.c.b16 %v2108, %v2100
    %v2365 = vpack.c.b16 %v2109, %v2101
    %v2366 = vpack.c.b16 %v2110, %v2102
    %2623 = vmatprep.subr.bf16.mxu0 %v2168
    %2624 = vmatpush1.bf16.msra.mxu0 %v2167
    %2625 = vmatprep.subr.bf16.mxu0 %v2160
    %2626 = vmatpush1.bf16.msra.mxu0 %v2159
    %2627 = vmatprep.subr.bf16.mxu0 %v2152
    %2628 = vmatpush1.bf16.msra.mxu0 %v2151
    %2629 = vmatprep.subr.bf16.mxu0 %v2144
    %2630 = vmatpush1.bf16.msra.mxu0 %v2143
    %2631 = vmatprep.subr.bf16.mxu0 %v2136
    %2632 = vmatpush1.bf16.msra.mxu0 %v2135
    %2633 = vmatprep.subr.bf16.mxu0 %v2128
    %2634 = vmatpush1.bf16.msra.mxu0 %v2127
    %2635 = vmatprep.subr.bf16.mxu0 %v2120
    %2636 = vmatpush1.bf16.msra.mxu0 %v2119
    %2637 = vmatprep.subr.bf16.mxu0 %v2112
    %2638 = vmatpush1.bf16.msra.mxu0 %v2111
    %2639 = vmatprep.subr.bf16.mxu0 %v2232
    %2640 = vmatpush2.bf16.msra.mxu0 %v2231
    %2641 = vmatprep.subr.bf16.mxu0 %v2224
    %2642 = vmatpush2.bf16.msra.mxu0 %v2223
    %2643 = vmatprep.subr.bf16.mxu0 %v2216
    %2644 = vmatpush2.bf16.msra.mxu0 %v2215
    %2645 = vmatprep.subr.bf16.mxu0 %v2208
    %2646 = vmatpush2.bf16.msra.mxu0 %v2207
    %2647 = vmatprep.subr.bf16.mxu0 %v2200
    %2648 = vmatpush2.bf16.msra.mxu0 %v2199
    %2649 = vmatprep.subr.bf16.mxu0 %v2192
    %2650 = vmatpush2.bf16.msra.mxu0 %v2191
    %2651 = vmatprep.subr.bf16.mxu0 %v2184
    %2652 = vmatpush2.bf16.msra.mxu0 %v2183
    %2653 = vmatprep.subr.bf16.mxu0 %v2176
    %2654 = vmatpush2.bf16.msra.mxu0 %v2175
    %2655 = vmatprep.mubr.bf16.mxu0 %v1084
    %2656 = vmatmul.mubr.bf16.gmra.mxu0 %v1083
    %v2657 = vpop.f32.mrf.mxu0
    %v2658 = vadd.f32 0.0, %v2657
    %v2659 = vpop.f32.mrf.mxu0
    %v2660 = vadd.f32 0.0, %v2659
    %v2661 = vpop.f32.mrf.mxu0
    %v2662 = vpop.f32.mrf.mxu0
    %2663 = vdwg.mxu0
    %2664 = vmatprep.subr.bf16.mxu0 %v2296
    %2665 = vmatpush1.bf16.msra.mxu0 %v2295
    %2666 = vmatprep.subr.bf16.mxu0 %v2288
    %2667 = vmatpush1.bf16.msra.mxu0 %v2287
    %2668 = vmatprep.subr.bf16.mxu0 %v2280
    %2669 = vmatpush1.bf16.msra.mxu0 %v2279
    %2670 = vmatprep.subr.bf16.mxu0 %v2272
    %2671 = vmatpush1.bf16.msra.mxu0 %v2271
    %2672 = vmatprep.subr.bf16.mxu0 %v2264
    %2673 = vmatpush1.bf16.msra.mxu0 %v2263
    %2674 = vmatprep.subr.bf16.mxu0 %v2256
    %2675 = vmatpush1.bf16.msra.mxu0 %v2255
    %2676 = vmatprep.subr.bf16.mxu0 %v2248
    %2677 = vmatpush1.bf16.msra.mxu0 %v2247
    %2678 = vmatprep.subr.bf16.mxu0 %v2240
    %2679 = vmatpush1.bf16.msra.mxu0 %v2239
    %2680 = vmatprep.subr.bf16.mxu0 %v2360
    %2681 = vmatpush2.bf16.msra.mxu0 %v2359
    %2682 = vmatprep.subr.bf16.mxu0 %v2352
    %2683 = vmatpush2.bf16.msra.mxu0 %v2351
    %2684 = vmatprep.subr.bf16.mxu0 %v2344
    %2685 = vmatpush2.bf16.msra.mxu0 %v2343
    %2686 = vmatprep.subr.bf16.mxu0 %v2336
    %2687 = vmatpush2.bf16.msra.mxu0 %v2335
    %2688 = vmatprep.subr.bf16.mxu0 %v2328
    %2689 = vmatpush2.bf16.msra.mxu0 %v2327
    %2690 = vmatprep.subr.bf16.mxu0 %v2320
    %2691 = vmatpush2.bf16.msra.mxu0 %v2319
    %2692 = vmatprep.subr.bf16.mxu0 %v2312
    %2693 = vmatpush2.bf16.msra.mxu0 %v2311
    %2694 = vmatprep.subr.bf16.mxu0 %v2304
    %2695 = vmatpush2.bf16.msra.mxu0 %v2303
    %2696 = vmatprep.mubr.bf16.mxu0 %v1086
    %2697 = vmatmul.mubr.bf16.gmra.mxu0 %v1085
    %v2698 = vpop.f32.mrf.mxu0
    %v2699 = vadd.f32 %v2658, %v2698
    %v2700 = vpop.f32.mrf.mxu0
    %v2701 = vadd.f32 %v2660, %v2700
    %v2702 = vpop.f32.mrf.mxu0
    %v2703 = vpop.f32.mrf.mxu0
    %2704 = vdwg.mxu0
    %2705 = vmatprep.subr.bf16.mxu0 %v2170
    %2706 = vmatpush1.bf16.msra.mxu0 %v2169
    %2707 = vmatprep.subr.bf16.mxu0 %v2162
    %2708 = vmatpush1.bf16.msra.mxu0 %v2161
    %2709 = vmatprep.subr.bf16.mxu0 %v2154
    %2710 = vmatpush1.bf16.msra.mxu0 %v2153
    %2711 = vmatprep.subr.bf16.mxu0 %v2146
    %2712 = vmatpush1.bf16.msra.mxu0 %v2145
    %2713 = vmatprep.subr.bf16.mxu0 %v2138
    %2714 = vmatpush1.bf16.msra.mxu0 %v2137
    %2715 = vmatprep.subr.bf16.mxu0 %v2130
    %2716 = vmatpush1.bf16.msra.mxu0 %v2129
    %2717 = vmatprep.subr.bf16.mxu0 %v2122
    %2718 = vmatpush1.bf16.msra.mxu0 %v2121
    %2719 = vmatprep.subr.bf16.mxu0 %v2114
    %2720 = vmatpush1.bf16.msra.mxu0 %v2113
    %2721 = vmatprep.subr.bf16.mxu0 %v2234
    %2722 = vmatpush2.bf16.msra.mxu0 %v2233
    %2723 = vmatprep.subr.bf16.mxu0 %v2226
    %2724 = vmatpush2.bf16.msra.mxu0 %v2225
    %2725 = vmatprep.subr.bf16.mxu0 %v2218
    %2726 = vmatpush2.bf16.msra.mxu0 %v2217
    %2727 = vmatprep.subr.bf16.mxu0 %v2210
    %2728 = vmatpush2.bf16.msra.mxu0 %v2209
    %2729 = vmatprep.subr.bf16.mxu0 %v2202
    %2730 = vmatpush2.bf16.msra.mxu0 %v2201
    %2731 = vmatprep.subr.bf16.mxu0 %v2194
    %2732 = vmatpush2.bf16.msra.mxu0 %v2193
    %2733 = vmatprep.subr.bf16.mxu0 %v2186
    %2734 = vmatpush2.bf16.msra.mxu0 %v2185
    %2735 = vmatprep.subr.bf16.mxu0 %v2178
    %2736 = vmatpush2.bf16.msra.mxu0 %v2177
    %2737 = vmatprep.mubr.bf16.mxu0 %v1084
    %2738 = vmatmul.mubr.bf16.gmra.mxu0 %v1083
    %v2739 = vpop.f32.mrf.mxu0
    %v2740 = vadd.f32 0.0, %v2739
    %v2741 = vpop.f32.mrf.mxu0
    %v2742 = vadd.f32 0.0, %v2741
    %v2743 = vpop.f32.mrf.mxu0
    %v2744 = vpop.f32.mrf.mxu0
    %2745 = vdwg.mxu0
    %2746 = vmatprep.subr.bf16.mxu0 %v2298
    %2747 = vmatpush1.bf16.msra.mxu0 %v2297
    %2748 = vmatprep.subr.bf16.mxu0 %v2290
    %2749 = vmatpush1.bf16.msra.mxu0 %v2289
    %2750 = vmatprep.subr.bf16.mxu0 %v2282
    %2751 = vmatpush1.bf16.msra.mxu0 %v2281
    %2752 = vmatprep.subr.bf16.mxu0 %v2274
    %2753 = vmatpush1.bf16.msra.mxu0 %v2273
    %2754 = vmatprep.subr.bf16.mxu0 %v2266
    %2755 = vmatpush1.bf16.msra.mxu0 %v2265
    %2756 = vmatprep.subr.bf16.mxu0 %v2258
    %2757 = vmatpush1.bf16.msra.mxu0 %v2257
    %2758 = vmatprep.subr.bf16.mxu0 %v2250
    %2759 = vmatpush1.bf16.msra.mxu0 %v2249
    %2760 = vmatprep.subr.bf16.mxu0 %v2242
    %2761 = vmatpush1.bf16.msra.mxu0 %v2241
    %2762 = vmatprep.subr.bf16.mxu0 %v2362
    %2763 = vmatpush2.bf16.msra.mxu0 %v2361
    %2764 = vmatprep.subr.bf16.mxu0 %v2354
    %2765 = vmatpush2.bf16.msra.mxu0 %v2353
    %2766 = vmatprep.subr.bf16.mxu0 %v2346
    %2767 = vmatpush2.bf16.msra.mxu0 %v2345
    %2768 = vmatprep.subr.bf16.mxu0 %v2338
    %2769 = vmatpush2.bf16.msra.mxu0 %v2337
    %2770 = vmatprep.subr.bf16.mxu0 %v2330
    %2771 = vmatpush2.bf16.msra.mxu0 %v2329
    %2772 = vmatprep.subr.bf16.mxu0 %v2322
    %2773 = vmatpush2.bf16.msra.mxu0 %v2321
    %2774 = vmatprep.subr.bf16.mxu0 %v2314
    %2775 = vmatpush2.bf16.msra.mxu0 %v2313
    %2776 = vmatprep.subr.bf16.mxu0 %v2306
    %2777 = vmatpush2.bf16.msra.mxu0 %v2305
    %2778 = vmatprep.mubr.bf16.mxu0 %v1086
    %2779 = vmatmul.mubr.bf16.gmra.mxu0 %v1085
    %v2780 = vpop.f32.mrf.mxu0
    %v2781 = vadd.f32 %v2740, %v2780
    %v2782 = vpop.f32.mrf.mxu0
    %v2783 = vadd.f32 %v2742, %v2782
    %v2784 = vpop.f32.mrf.mxu0
    %v2785 = vpop.f32.mrf.mxu0
    %2786 = vdwg.mxu0
    %2787 = vmatprep.subr.bf16.mxu0 %v2172
    %2788 = vmatpush1.bf16.msra.mxu0 %v2171
    %2789 = vmatprep.subr.bf16.mxu0 %v2164
    %2790 = vmatpush1.bf16.msra.mxu0 %v2163
    %2791 = vmatprep.subr.bf16.mxu0 %v2156
    %2792 = vmatpush1.bf16.msra.mxu0 %v2155
    %2793 = vmatprep.subr.bf16.mxu0 %v2148
    %2794 = vmatpush1.bf16.msra.mxu0 %v2147
    %2795 = vmatprep.subr.bf16.mxu0 %v2140
    %2796 = vmatpush1.bf16.msra.mxu0 %v2139
    %2797 = vmatprep.subr.bf16.mxu0 %v2132
    %2798 = vmatpush1.bf16.msra.mxu0 %v2131
    %2799 = vmatprep.subr.bf16.mxu0 %v2124
    %2800 = vmatpush1.bf16.msra.mxu0 %v2123
    %2801 = vmatprep.subr.bf16.mxu0 %v2116
    %2802 = vmatpush1.bf16.msra.mxu0 %v2115
    %2803 = vmatprep.subr.bf16.mxu0 %v2236
    %2804 = vmatpush2.bf16.msra.mxu0 %v2235
    %2805 = vmatprep.subr.bf16.mxu0 %v2228
    %2806 = vmatpush2.bf16.msra.mxu0 %v2227
    %2807 = vmatprep.subr.bf16.mxu0 %v2220
    %2808 = vmatpush2.bf16.msra.mxu0 %v2219
    %2809 = vmatprep.subr.bf16.mxu0 %v2212
    %2810 = vmatpush2.bf16.msra.mxu0 %v2211
    %2811 = vmatprep.subr.bf16.mxu0 %v2204
    %2812 = vmatpush2.bf16.msra.mxu0 %v2203
    %2813 = vmatprep.subr.bf16.mxu0 %v2196
    %2814 = vmatpush2.bf16.msra.mxu0 %v2195
    %2815 = vmatprep.subr.bf16.mxu0 %v2188
    %2816 = vmatpush2.bf16.msra.mxu0 %v2187
    %2817 = vmatprep.subr.bf16.mxu0 %v2180
    %2818 = vmatpush2.bf16.msra.mxu0 %v2179
    %2819 = vmatprep.mubr.bf16.mxu0 %v1084
    %2820 = vmatmul.mubr.bf16.gmra.mxu0 %v1083
    %v2821 = vpop.f32.mrf.mxu0
    %v2822 = vadd.f32 0.0, %v2821
    %v2823 = vpop.f32.mrf.mxu0
    %v2824 = vadd.f32 0.0, %v2823
    %v2825 = vpop.f32.mrf.mxu0
    %v2826 = vpop.f32.mrf.mxu0
    %2827 = vdwg.mxu0
    %2828 = vmatprep.subr.bf16.mxu0 %v2300
    %2829 = vmatpush1.bf16.msra.mxu0 %v2299
    %2830 = vmatprep.subr.bf16.mxu0 %v2292
    %2831 = vmatpush1.bf16.msra.mxu0 %v2291
    %2832 = vmatprep.subr.bf16.mxu0 %v2284
    %2833 = vmatpush1.bf16.msra.mxu0 %v2283
    %2834 = vmatprep.subr.bf16.mxu0 %v2276
    %2835 = vmatpush1.bf16.msra.mxu0 %v2275
    %2836 = vmatprep.subr.bf16.mxu0 %v2268
    %2837 = vmatpush1.bf16.msra.mxu0 %v2267
    %2838 = vmatprep.subr.bf16.mxu0 %v2260
    %2839 = vmatpush1.bf16.msra.mxu0 %v2259
    %2840 = vmatprep.subr.bf16.mxu0 %v2252
    %2841 = vmatpush1.bf16.msra.mxu0 %v2251
    %2842 = vmatprep.subr.bf16.mxu0 %v2244
    %2843 = vmatpush1.bf16.msra.mxu0 %v2243
    %2844 = vmatprep.subr.bf16.mxu0 %v2364
    %2845 = vmatpush2.bf16.msra.mxu0 %v2363
    %2846 = vmatprep.subr.bf16.mxu0 %v2356
    %2847 = vmatpush2.bf16.msra.mxu0 %v2355
    %2848 = vmatprep.subr.bf16.mxu0 %v2348
    %2849 = vmatpush2.bf16.msra.mxu0 %v2347
    %2850 = vmatprep.subr.bf16.mxu0 %v2340
    %2851 = vmatpush2.bf16.msra.mxu0 %v2339
    %2852 = vmatprep.subr.bf16.mxu0 %v2332
    %2853 = vmatpush2.bf16.msra.mxu0 %v2331
    %2854 = vmatprep.subr.bf16.mxu0 %v2324
    %2855 = vmatpush2.bf16.msra.mxu0 %v2323
    %2856 = vmatprep.subr.bf16.mxu0 %v2316
    %2857 = vmatpush2.bf16.msra.mxu0 %v2315
    %2858 = vmatprep.subr.bf16.mxu0 %v2308
    %2859 = vmatpush2.bf16.msra.mxu0 %v2307
    %2860 = vmatprep.mubr.bf16.mxu0 %v1086
    %2861 = vmatmul.mubr.bf16.gmra.mxu0 %v1085
    %v2862 = vpop.f32.mrf.mxu0
    %v2863 = vadd.f32 %v2822, %v2862
    %v2864 = vpop.f32.mrf.mxu0
    %v2865 = vadd.f32 %v2824, %v2864
    %v2866 = vpop.f32.mrf.mxu0
    %v2867 = vpop.f32.mrf.mxu0
    %2868 = vdwg.mxu0
    %2869 = vmatprep.subr.bf16.mxu0 %v2174
    %2870 = vmatpush1.bf16.msra.mxu0 %v2173
    %2871 = vmatprep.subr.bf16.mxu0 %v2166
    %2872 = vmatpush1.bf16.msra.mxu0 %v2165
    %2873 = vmatprep.subr.bf16.mxu0 %v2158
    %2874 = vmatpush1.bf16.msra.mxu0 %v2157
    %2875 = vmatprep.subr.bf16.mxu0 %v2150
    %2876 = vmatpush1.bf16.msra.mxu0 %v2149
    %2877 = vmatprep.subr.bf16.mxu0 %v2142
    %2878 = vmatpush1.bf16.msra.mxu0 %v2141
    %2879 = vmatprep.subr.bf16.mxu0 %v2134
    %2880 = vmatpush1.bf16.msra.mxu0 %v2133
    %2881 = vmatprep.subr.bf16.mxu0 %v2126
    %2882 = vmatpush1.bf16.msra.mxu0 %v2125
    %2883 = vmatprep.subr.bf16.mxu0 %v2118
    %2884 = vmatpush1.bf16.msra.mxu0 %v2117
    %2885 = vmatprep.subr.bf16.mxu0 %v2238
    %2886 = vmatpush2.bf16.msra.mxu0 %v2237
    %2887 = vmatprep.subr.bf16.mxu0 %v2230
    %2888 = vmatpush2.bf16.msra.mxu0 %v2229
    %2889 = vmatprep.subr.bf16.mxu0 %v2222
    %2890 = vmatpush2.bf16.msra.mxu0 %v2221
    %2891 = vmatprep.subr.bf16.mxu0 %v2214
    %2892 = vmatpush2.bf16.msra.mxu0 %v2213
    %2893 = vmatprep.subr.bf16.mxu0 %v2206
    %2894 = vmatpush2.bf16.msra.mxu0 %v2205
    %2895 = vmatprep.subr.bf16.mxu0 %v2198
    %2896 = vmatpush2.bf16.msra.mxu0 %v2197
    %2897 = vmatprep.subr.bf16.mxu0 %v2190
    %2898 = vmatpush2.bf16.msra.mxu0 %v2189
    %2899 = vmatprep.subr.bf16.mxu0 %v2182
    %2900 = vmatpush2.bf16.msra.mxu0 %v2181
    %2901 = vmatprep.mubr.bf16.mxu0 %v1084
    %2902 = vmatmul.mubr.bf16.gmra.mxu0 %v1083
    %v2903 = vpop.f32.mrf.mxu0
    %v2904 = vadd.f32 0.0, %v2903
    %v2905 = vpop.f32.mrf.mxu0
    %v2906 = vadd.f32 0.0, %v2905
    %v2907 = vpop.f32.mrf.mxu0
    %v2908 = vpop.f32.mrf.mxu0
    %2909 = vdwg.mxu0
    %2910 = vmatprep.subr.bf16.mxu0 %v2302
    %2911 = vmatpush1.bf16.msra.mxu0 %v2301
    %2912 = vmatprep.subr.bf16.mxu0 %v2294
    %2913 = vmatpush1.bf16.msra.mxu0 %v2293
    %2914 = vmatprep.subr.bf16.mxu0 %v2286
    %2915 = vmatpush1.bf16.msra.mxu0 %v2285
    %2916 = vmatprep.subr.bf16.mxu0 %v2278
    %2917 = vmatpush1.bf16.msra.mxu0 %v2277
    %2918 = vmatprep.subr.bf16.mxu0 %v2270
    %2919 = vmatpush1.bf16.msra.mxu0 %v2269
    %2920 = vmatprep.subr.bf16.mxu0 %v2262
    %2921 = vmatpush1.bf16.msra.mxu0 %v2261
    %2922 = vmatprep.subr.bf16.mxu0 %v2254
    %2923 = vmatpush1.bf16.msra.mxu0 %v2253
    %2924 = vmatprep.subr.bf16.mxu0 %v2246
    %2925 = vmatpush1.bf16.msra.mxu0 %v2245
    %2926 = vmatprep.subr.bf16.mxu0 %v2366
    %2927 = vmatpush2.bf16.msra.mxu0 %v2365
    %2928 = vmatprep.subr.bf16.mxu0 %v2358
    %2929 = vmatpush2.bf16.msra.mxu0 %v2357
    %2930 = vmatprep.subr.bf16.mxu0 %v2350
    %2931 = vmatpush2.bf16.msra.mxu0 %v2349
    %2932 = vmatprep.subr.bf16.mxu0 %v2342
    %2933 = vmatpush2.bf16.msra.mxu0 %v2341
    %2934 = vmatprep.subr.bf16.mxu0 %v2334
    %2935 = vmatpush2.bf16.msra.mxu0 %v2333
    %2936 = vmatprep.subr.bf16.mxu0 %v2326
    %2937 = vmatpush2.bf16.msra.mxu0 %v2325
    %2938 = vmatprep.subr.bf16.mxu0 %v2318
    %2939 = vmatpush2.bf16.msra.mxu0 %v2317
    %2940 = vmatprep.subr.bf16.mxu0 %v2310
    %2941 = vmatpush2.bf16.msra.mxu0 %v2309
    %2942 = vmatprep.mubr.bf16.mxu0 %v1086
    %2943 = vmatmul.mubr.bf16.gmra.mxu0 %v1085
    %v2944 = vpop.f32.mrf.mxu0
    %v2945 = vadd.f32 %v2904, %v2944
    %v2946 = vpop.f32.mrf.mxu0
    %v2947 = vadd.f32 %v2906, %v2946
    %v2948 = vpop.f32.mrf.mxu0
    %v2949 = vpop.f32.mrf.mxu0
    %2950 = vdwg.mxu0
    %v2951 = vld [vmem:[%s10] sm:$0xff]
    %v2952 = vld [vmem:[%s11] sm:$0xff]
    %v2953 = vrot.slane %v2699, 4
    %v2954 = vadd.f32 %v2699, %v2953
    %v2955 = vrot.slane %v2954, 2
    %v2956 = vadd.f32 %v2954, %v2955
    %v2957 = vrot.slane %v2956, 1
    %v2958 = vadd.f32 %v2956, %v2957
    %v2959 = vrot.slane %v2701, 4
    %v2960 = vadd.f32 %v2701, %v2959
    %v2961 = vrot.slane %v2960, 2
    %v2962 = vadd.f32 %v2960, %v2961
    %v2963 = vrot.slane %v2962, 1
    %v2964 = vadd.f32 %v2962, %v2963
    %v2965 = vrot.slane %v2781, 4
    %v2966 = vadd.f32 %v2781, %v2965
    %v2967 = vrot.slane %v2966, 2
    %v2968 = vadd.f32 %v2966, %v2967
    %v2969 = vrot.slane %v2968, 1
    %v2970 = vadd.f32 %v2968, %v2969
    %v2971 = vrot.slane %v2783, 4
    %v2972 = vadd.f32 %v2783, %v2971
    %v2973 = vrot.slane %v2972, 2
    %v2974 = vadd.f32 %v2972, %v2973
    %v2975 = vrot.slane %v2974, 1
    %v2976 = vadd.f32 %v2974, %v2975
    %v2977 = vrot.slane %v2863, 4
    %v2978 = vadd.f32 %v2863, %v2977
    %v2979 = vrot.slane %v2978, 2
    %v2980 = vadd.f32 %v2978, %v2979
    %v2981 = vrot.slane %v2980, 1
    %v2982 = vadd.f32 %v2980, %v2981
    %v2983 = vrot.slane %v2865, 4
    %v2984 = vadd.f32 %v2865, %v2983
    %v2985 = vrot.slane %v2984, 2
    %v2986 = vadd.f32 %v2984, %v2985
    %v2987 = vrot.slane %v2986, 1
    %v2988 = vadd.f32 %v2986, %v2987
    %v2989 = vrot.slane %v2945, 4
    %v2990 = vadd.f32 %v2945, %v2989
    %v2991 = vrot.slane %v2990, 2
    %v2992 = vadd.f32 %v2990, %v2991
    %v2993 = vrot.slane %v2992, 1
    %v2994 = vadd.f32 %v2992, %v2993
    %v2995 = vrot.slane %v2947, 4
    %v2996 = vadd.f32 %v2947, %v2995
    %v2997 = vrot.slane %v2996, 2
    %v2998 = vadd.f32 %v2996, %v2997
    %v2999 = vrot.slane %v2998, 1
    %v3000 = vadd.f32 %v2998, %v2999
    %v3001 = vmul.f32 %v2699, %v2699
    %v3002 = vmul.f32 %v2701, %v2701
    %v3003 = vmul.f32 %v2781, %v2781
    %v3004 = vmul.f32 %v2783, %v2783
    %v3005 = vmul.f32 %v2863, %v2863
    %v3006 = vmul.f32 %v2865, %v2865
    %v3007 = vmul.f32 %v2945, %v2945
    %v3008 = vmul.f32 %v2947, %v2947
    %v3009 = vrot.slane %v3001, 4
    %v3010 = vadd.f32 %v3001, %v3009
    %v3011 = vrot.slane %v3010, 2
    %v3012 = vadd.f32 %v3010, %v3011
    %v3013 = vrot.slane %v3012, 1
    %v3014 = vadd.f32 %v3012, %v3013
    %v3015 = vrot.slane %v3002, 4
    %v3016 = vadd.f32 %v3002, %v3015
    %v3017 = vrot.slane %v3016, 2
    %v3018 = vadd.f32 %v3016, %v3017
    %v3019 = vrot.slane %v3018, 1
    %v3020 = vadd.f32 %v3018, %v3019
    %v3021 = vrot.slane %v3003, 4
    %v3022 = vadd.f32 %v3003, %v3021
    %v3023 = vrot.slane %v3022, 2
    %v3024 = vadd.f32 %v3022, %v3023
    %v3025 = vrot.slane %v3024, 1
    %v3026 = vadd.f32 %v3024, %v3025
    %v3027 = vrot.slane %v3004, 4
    %v3028 = vadd.f32 %v3004, %v3027
    %v3029 = vrot.slane %v3028, 2
    %v3030 = vadd.f32 %v3028, %v3029
    %v3031 = vrot.slane %v3030, 1
    %v3032 = vadd.f32 %v3030, %v3031
    %v3033 = vrot.slane %v3005, 4
    %v3034 = vadd.f32 %v3005, %v3033
    %v3035 = vrot.slane %v3034, 2
    %v3036 = vadd.f32 %v3034, %v3035
    %v3037 = vrot.slane %v3036, 1
    %v3038 = vadd.f32 %v3036, %v3037
    %v3039 = vrot.slane %v3006, 4
    %v3040 = vadd.f32 %v3006, %v3039
    %v3041 = vrot.slane %v3040, 2
    %v3042 = vadd.f32 %v3040, %v3041
    %v3043 = vrot.slane %v3042, 1
    %v3044 = vadd.f32 %v3042, %v3043
    %v3045 = vrot.slane %v3007, 4
    %v3046 = vadd.f32 %v3007, %v3045
    %v3047 = vrot.slane %v3046, 2
    %v3048 = vadd.f32 %v3046, %v3047
    %v3049 = vrot.slane %v3048, 1
    %v3050 = vadd.f32 %v3048, %v3049
    %v3051 = vrot.slane %v3008, 4
    %v3052 = vadd.f32 %v3008, %v3051
    %v3053 = vrot.slane %v3052, 2
    %v3054 = vadd.f32 %v3052, %v3053
    %v3055 = vrot.slane %v3054, 1
    %v3056 = vadd.f32 %v3054, %v3055
    %v3057 = vmul.f32 %v2958, 0.125
    %v3058 = vmul.f32 %v2964, 0.125
    %v3059 = vmul.f32 %v2970, 0.125
    %v3060 = vmul.f32 %v2976, 0.125
    %v3061 = vmul.f32 %v2982, 0.125
    %v3062 = vmul.f32 %v2988, 0.125
    %v3063 = vmul.f32 %v2994, 0.125
    %v3064 = vmul.f32 %v3000, 0.125
    %v3065 = vmul.f32 %v3014, 0.125
    %v3066 = vmul.f32 %v3020, 0.125
    %v3067 = vmul.f32 %v3026, 0.125
    %v3068 = vmul.f32 %v3032, 0.125
    %v3069 = vmul.f32 %v3038, 0.125
    %v3070 = vmul.f32 %v3044, 0.125
    %v3071 = vmul.f32 %v3050, 0.125
    %v3072 = vmul.f32 %v3056, 0.125
    %v3073 = vmul.f32 %v3057, %v3057
    %v3074 = vmul.f32 %v3058, %v3058
    %v3075 = vmul.f32 %v3059, %v3059
    %v3076 = vmul.f32 %v3060, %v3060
    %v3077 = vmul.f32 %v3061, %v3061
    %v3078 = vmul.f32 %v3062, %v3062
    %v3079 = vmul.f32 %v3063, %v3063
    %v3080 = vmul.f32 %v3064, %v3064
    %v3081 = vsub.f32 %v3065, %v3073
    %v3082 = vsub.f32 %v3066, %v3074
    %v3083 = vsub.f32 %v3067, %v3075
    %v3084 = vsub.f32 %v3068, %v3076
    %v3085 = vsub.f32 %v3069, %v3077
    %v3086 = vsub.f32 %v3070, %v3078
    %v3087 = vsub.f32 %v3071, %v3079
    %v3088 = vsub.f32 %v3072, %v3080
    %v3089 = vadd.f32 %v3081, 0.8
    %v3090 = vadd.f32 %v3082, 0.8
    %v3091 = vadd.f32 %v3083, 0.8
    %v3092 = vadd.f32 %v3084, 0.8
    %v3093 = vadd.f32 %v3085, 0.8
    %v3094 = vadd.f32 %v3086, 0.8
    %v3095 = vadd.f32 %v3087, 0.8
    %v3096 = vadd.f32 %v3088, 0.8
    %v3097 = vrsqrt.pop %v3089
    %v3098 = vrsqrt.pop %v3090
    %v3099 = vrsqrt.pop %v3091
    %v3100 = vrsqrt.pop %v3092
    %v3101 = vrsqrt.pop %v3093
    %v3102 = vrsqrt.pop %v3094
    %v3103 = vrsqrt.pop %v3095
    %v3104 = vrsqrt.pop %v3096
    %v3113 = vcombine.low %v3097, %v3098
    %v3114 = vcombine.low %v3099, %v3100
    %v3115 = vcombine.low %v3101, %v3102
    %v3116 = vcombine.low %v3103, %v3104
    %v3118 = vunpack.c.l.s4 1966171168
    %v3119 = vunpack.c.0.s8 %v3118
    %v3120 = vlaneseq
    %v3121 = vshrl.u32 %v3120, 7
    %v3122 = vsub.s32 %v3119, %v3121
    %v3123 = vrot.slane %v3113, %v3122
    %v3125 = vunpack.c.l.s4 1966171168
    %v3126 = vunpack.c.0.s8 %v3125
    %v3127 = vlaneseq
    %v3128 = vshrl.u32 %v3127, 7
    %v3129 = vsub.s32 %v3126, %v3128
    %v3130 = vrot.slane %v3114, %v3129
    %v3132 = vunpack.c.l.s4 1966171168
    %v3133 = vunpack.c.0.s8 %v3132
    %v3134 = vlaneseq
    %v3135 = vshrl.u32 %v3134, 7
    %v3136 = vsub.s32 %v3133, %v3135
    %v3137 = vrot.slane %v3115, %v3136
    %v3139 = vunpack.c.l.s4 1966171168
    %v3140 = vunpack.c.0.s8 %v3139
    %v3141 = vlaneseq
    %v3142 = vshrl.u32 %v3141, 7
    %v3143 = vsub.s32 %v3140, %v3142
    %v3144 = vrot.slane %v3116, %v3143
    %v3145 = vcombine.low %v3123, %v3130
    %v3146 = vcombine.low %v3137, %v3144
    %v3148 = vunpack.c.l.s4 1966171168
    %v3149 = vunpack.c.0.s8 %v3148
    %v3150 = vlaneseq
    %v3151 = vshrl.u32 %v3150, 7
    %v3152 = vsub.s32 %v3149, %v3151
    %v3153 = vrot.slane %v3145, %v3152
    %v3155 = vunpack.c.l.s4 1966171168
    %v3156 = vunpack.c.0.s8 %v3155
    %v3157 = vlaneseq
    %v3158 = vshrl.u32 %v3157, 7
    %v3159 = vsub.s32 %v3156, %v3158
    %v3160 = vrot.slane %v3146, %v3159
    %v3161 = vcombine.low %v3153, %v3160
    %v3163 = vmul.f32 %v2951, %v3161
    %v3165 = vlaneseq
    %v3166 = vshrl.u32 %v3165, 7
    %v3167 = vsub.s32 0, %v3166
    %v3168 = vrot.slane %v3163, %v3167
    %v3169 = vlaneseq
    %v3170 = vshrl.u32 %v3169, 7
    %v3171 = vsub.s32 1, %v3170
    %v3172 = vrot.slane %v3163, %v3171
    %v3173 = vlaneseq
    %v3174 = vshrl.u32 %v3173, 7
    %v3175 = vsub.s32 2, %v3174
    %v3176 = vrot.slane %v3163, %v3175
    %v3177 = vlaneseq
    %v3178 = vshrl.u32 %v3177, 7
    %v3179 = vsub.s32 3, %v3178
    %v3180 = vrot.slane %v3163, %v3179
    %v3181 = vlaneseq
    %v3182 = vshrl.u32 %v3181, 7
    %v3183 = vsub.s32 4, %v3182
    %v3184 = vrot.slane %v3163, %v3183
    %v3185 = vlaneseq
    %v3186 = vshrl.u32 %v3185, 7
    %v3187 = vsub.s32 5, %v3186
    %v3188 = vrot.slane %v3163, %v3187
    %v3189 = vlaneseq
    %v3190 = vshrl.u32 %v3189, 7
    %v3191 = vsub.s32 6, %v3190
    %v3192 = vrot.slane %v3163, %v3191
    %v3193 = vlaneseq
    %v3194 = vshrl.u32 %v3193, 7
    %v3195 = vsub.s32 7, %v3194
    %v3196 = vrot.slane %v3163, %v3195
    %v3205 = vmul.f32 %v3057, %v3168
    %v3206 = vmul.f32 %v3058, %v3172
    %v3207 = vmul.f32 %v3059, %v3176
    %v3208 = vmul.f32 %v3060, %v3180
    %v3209 = vmul.f32 %v3061, %v3184
    %v3210 = vmul.f32 %v3062, %v3188
    %v3211 = vmul.f32 %v3063, %v3192
    %v3212 = vmul.f32 %v3064, %v3196
    %v3221 = vcombine.low %v3205, %v3206
    %v3222 = vcombine.low %v3207, %v3208
    %v3223 = vcombine.low %v3209, %v3210
    %v3224 = vcombine.low %v3211, %v3212
    %v3226 = vunpack.c.l.s4 1966171168
    %v3227 = vunpack.c.0.s8 %v3226
    %v3228 = vlaneseq
    %v3229 = vshrl.u32 %v3228, 7
    %v3230 = vsub.s32 %v3227, %v3229
    %v3231 = vrot.slane %v3221, %v3230
    %v3233 = vunpack.c.l.s4 1966171168
    %v3234 = vunpack.c.0.s8 %v3233
    %v3235 = vlaneseq
    %v3236 = vshrl.u32 %v3235, 7
    %v3237 = vsub.s32 %v3234, %v3236
    %v3238 = vrot.slane %v3222, %v3237
    %v3240 = vunpack.c.l.s4 1966171168
    %v3241 = vunpack.c.0.s8 %v3240
    %v3242 = vlaneseq
    %v3243 = vshrl.u32 %v3242, 7
    %v3244 = vsub.s32 %v3241, %v3243
    %v3245 = vrot.slane %v3223, %v3244
    %v3247 = vunpack.c.l.s4 1966171168
    %v3248 = vunpack.c.0.s8 %v3247
    %v3249 = vlaneseq
    %v3250 = vshrl.u32 %v3249, 7
    %v3251 = vsub.s32 %v3248, %v3250
    %v3252 = vrot.slane %v3224, %v3251
    %v3253 = vcombine.low %v3231, %v3238
    %v3254 = vcombine.low %v3245, %v3252
    %v3256 = vunpack.c.l.s4 1966171168
    %v3257 = vunpack.c.0.s8 %v3256
    %v3258 = vlaneseq
    %v3259 = vshrl.u32 %v3258, 7
    %v3260 = vsub.s32 %v3257, %v3259
    %v3261 = vrot.slane %v3253, %v3260
    %v3263 = vunpack.c.l.s4 1966171168
    %v3264 = vunpack.c.0.s8 %v3263
    %v3265 = vlaneseq
    %v3266 = vshrl.u32 %v3265, 7
    %v3267 = vsub.s32 %v3264, %v3266
    %v3268 = vrot.slane %v3254, %v3267
    %v3269 = vcombine.low %v3261, %v3268
    %v3271 = vsub.f32 %v2952, %v3269
    %v3272 = vmul.f32 %v2699, %v3168
    %v3273 = vmul.f32 %v2701, %v3172
    %v3274 = vmul.f32 %v2781, %v3176
    %v3275 = vmul.f32 %v2783, %v3180
    %v3276 = vmul.f32 %v2863, %v3184
    %v3277 = vmul.f32 %v2865, %v3188
    %v3278 = vmul.f32 %v2945, %v3192
    %v3279 = vmul.f32 %v2947, %v3196
    %v3281 = vlaneseq
    %v3282 = vshrl.u32 %v3281, 7
    %v3283 = vsub.s32 0, %v3282
    %v3284 = vrot.slane %v3271, %v3283
    %v3285 = vlaneseq
    %v3286 = vshrl.u32 %v3285, 7
    %v3287 = vsub.s32 1, %v3286
    %v3288 = vrot.slane %v3271, %v3287
    %v3289 = vlaneseq
    %v3290 = vshrl.u32 %v3289, 7
    %v3291 = vsub.s32 2, %v3290
    %v3292 = vrot.slane %v3271, %v3291
    %v3293 = vlaneseq
    %v3294 = vshrl.u32 %v3293, 7
    %v3295 = vsub.s32 3, %v3294
    %v3296 = vrot.slane %v3271, %v3295
    %v3297 = vlaneseq
    %v3298 = vshrl.u32 %v3297, 7
    %v3299 = vsub.s32 4, %v3298
    %v3300 = vrot.slane %v3271, %v3299
    %v3301 = vlaneseq
    %v3302 = vshrl.u32 %v3301, 7
    %v3303 = vsub.s32 5, %v3302
    %v3304 = vrot.slane %v3271, %v3303
    %v3305 = vlaneseq
    %v3306 = vshrl.u32 %v3305, 7
    %v3307 = vsub.s32 6, %v3306
    %v3308 = vrot.slane %v3271, %v3307
    %v3309 = vlaneseq
    %v3310 = vshrl.u32 %v3309, 7
    %v3311 = vsub.s32 7, %v3310
    %v3312 = vrot.slane %v3271, %v3311
    %v3321 = vadd.f32 %v3272, %v3284
    %v3322 = vadd.f32 %v3273, %v3288
    %v3323 = vadd.f32 %v3274, %v3292
    %v3324 = vadd.f32 %v3275, %v3296
    %v3325 = vadd.f32 %v3276, %v3300
    %v3326 = vadd.f32 %v3277, %v3304
    %v3327 = vadd.f32 %v3278, %v3308
    %v3328 = vadd.f32 %v3279, %v3312
    %v3329 = vmul.f32 %v3321, 0.2
    %v3330 = vmul.f32 %v3322, 0.2
    %v3331 = vmul.f32 %v3323, 0.2
    %v3332 = vmul.f32 %v3324, 0.2
    %v3333 = vmul.f32 %v3325, 0.2
    %v3334 = vmul.f32 %v3326, 0.2
    %v3335 = vmul.f32 %v3327, 0.2
    %v3336 = vmul.f32 %v3328, 0.2
    %v3337 = vmax.f32 %v3321, %v3329
    %v3338 = vmax.f32 %v3322, %v3330
    %v3339 = vmax.f32 %v3323, %v3331
    %v3340 = vmax.f32 %v3324, %v3332
    %v3341 = vmax.f32 %v3325, %v3333
    %v3342 = vmax.f32 %v3326, %v3334
    %v3343 = vmax.f32 %v3327, %v3335
    %v3344 = vmax.f32 %v3328, %v3336
    %v3345 = vpack.c.bf16 %v3337, %v3337
    %v3346 = vpack.c.bf16 %v3338, %v3338
    %v3347 = vpack.c.bf16 %v3339, %v3339
    %v3348 = vpack.c.bf16 %v3340, %v3340
    %v3349 = vpack.c.bf16 %v3341, %v3341
    %v3350 = vpack.c.bf16 %v3342, %v3342
    %v3351 = vpack.c.bf16 %v3343, %v3343
    %v3352 = vpack.c.bf16 %v3344, %v3344
    %v3353 = vld [vmem:[#allocation8] sm:$0xf]
    %v3354 = vld [vmem:[#allocation8 + $0x4] sm:$0xf]
    %v3355 = vld [vmem:[#allocation8 + $0x8] sm:$0xf]
    %v3356 = vld [vmem:[#allocation8 + $0xc] sm:$0xf]
    %v3357 = vld [vmem:[#allocation8 + $0x10] sm:$0xf]
    %v3358 = vld [vmem:[#allocation8 + $0x14] sm:$0xf]
    %v3359 = vld [vmem:[#allocation8 + $0x18] sm:$0xf]
    %v3360 = vld [vmem:[#allocation8 + $0x1c] sm:$0xf]
    %v3361 = vld [vmem:[#allocation8 + $0x20] sm:$0xf]
    %v3362 = vld [vmem:[#allocation8 + $0x24] sm:$0xf]
    %v3363 = vld [vmem:[#allocation8 + $0x28] sm:$0xf]
    %v3364 = vld [vmem:[#allocation8 + $0x2c] sm:$0xf]
    %v3365 = vld [vmem:[#allocation8 + $0x30] sm:$0xf]
    %v3366 = vld [vmem:[#allocation8 + $0x34] sm:$0xf]
    %v3367 = vld [vmem:[#allocation8 + $0x38] sm:$0xf]
    %v3368 = vld [vmem:[#allocation8 + $0x3c] sm:$0xf]
    %v3369 = vld [vmem:[#allocation8 + $0x40] sm:$0xf]
    %v3370 = vld [vmem:[#allocation8 + $0x44] sm:$0xf]
    %v3371 = vld [vmem:[#allocation8 + $0x48] sm:$0xf]
    %v3372 = vld [vmem:[#allocation8 + $0x4c] sm:$0xf]
    %v3373 = vld [vmem:[#allocation8 + $0x50] sm:$0xf]
    %v3374 = vld [vmem:[#allocation8 + $0x54] sm:$0xf]
    %v3375 = vld [vmem:[#allocation8 + $0x58] sm:$0xf]
    %v3376 = vld [vmem:[#allocation8 + $0x5c] sm:$0xf]
    %v3377 = vld [vmem:[#allocation8 + $0x60] sm:$0xf]
    %v3378 = vld [vmem:[#allocation8 + $0x64] sm:$0xf]
    %v3379 = vld [vmem:[#allocation8 + $0x68] sm:$0xf]
    %v3380 = vld [vmem:[#allocation8 + $0x6c] sm:$0xf]
    %v3381 = vld [vmem:[#allocation8 + $0x70] sm:$0xf]
    %v3382 = vld [vmem:[#allocation8 + $0x74] sm:$0xf]
    %v3383 = vld [vmem:[#allocation8 + $0x78] sm:$0xf]
    %v3384 = vld [vmem:[#allocation8 + $0x7c] sm:$0xf]
    %v3385 = vld [vmem:[#allocation8 + $0x80] sm:$0xf]
    %v3386 = vld [vmem:[#allocation8 + $0x84] sm:$0xf]
    %v3387 = vld [vmem:[#allocation8 + $0x88] sm:$0xf]
    %v3388 = vld [vmem:[#allocation8 + $0x8c] sm:$0xf]
    %v3389 = vld [vmem:[#allocation8 + $0x90] sm:$0xf]
    %v3390 = vld [vmem:[#allocation8 + $0x94] sm:$0xf]
    %v3391 = vld [vmem:[#allocation8 + $0x98] sm:$0xf]
    %v3392 = vld [vmem:[#allocation8 + $0x9c] sm:$0xf]
    %v3393 = vld [vmem:[#allocation8 + $0xa0] sm:$0xf]
    %v3394 = vld [vmem:[#allocation8 + $0xa4] sm:$0xf]
    %v3395 = vld [vmem:[#allocation8 + $0xa8] sm:$0xf]
    %v3396 = vld [vmem:[#allocation8 + $0xac] sm:$0xf]
    %v3397 = vld [vmem:[#allocation8 + $0xb0] sm:$0xf]
    %v3398 = vld [vmem:[#allocation8 + $0xb4] sm:$0xf]
    %v3399 = vld [vmem:[#allocation8 + $0xb8] sm:$0xf]
    %v3400 = vld [vmem:[#allocation8 + $0xbc] sm:$0xf]
    %v3401 = vld [vmem:[#allocation8 + $0xc0] sm:$0xf]
    %v3402 = vld [vmem:[#allocation8 + $0xc4] sm:$0xf]
    %v3403 = vld [vmem:[#allocation8 + $0xc8] sm:$0xf]
    %v3404 = vld [vmem:[#allocation8 + $0xcc] sm:$0xf]
    %v3405 = vld [vmem:[#allocation8 + $0xd0] sm:$0xf]
    %v3406 = vld [vmem:[#allocation8 + $0xd4] sm:$0xf]
    %v3407 = vld [vmem:[#allocation8 + $0xd8] sm:$0xf]
    %v3408 = vld [vmem:[#allocation8 + $0xdc] sm:$0xf]
    %v3409 = vld [vmem:[#allocation8 + $0xe0] sm:$0xf]
    %v3410 = vld [vmem:[#allocation8 + $0xe4] sm:$0xf]
    %v3411 = vld [vmem:[#allocation8 + $0xe8] sm:$0xf]
    %v3412 = vld [vmem:[#allocation8 + $0xec] sm:$0xf]
    %v3413 = vld [vmem:[#allocation8 + $0xf0] sm:$0xf]
    %v3414 = vld [vmem:[#allocation8 + $0xf4] sm:$0xf]
    %v3415 = vld [vmem:[#allocation8 + $0xf8] sm:$0xf]
    %v3416 = vld [vmem:[#allocation8 + $0xfc] sm:$0xf]
    %v3417 = vld [vmem:[#allocation8 + $0x100] sm:$0xf]
    %v3418 = vld [vmem:[#allocation8 + $0x104] sm:$0xf]
    %v3419 = vld [vmem:[#allocation8 + $0x108] sm:$0xf]
    %v3420 = vld [vmem:[#allocation8 + $0x10c] sm:$0xf]
    %v3421 = vld [vmem:[#allocation8 + $0x110] sm:$0xf]
    %v3422 = vld [vmem:[#allocation8 + $0x114] sm:$0xf]
    %v3423 = vld [vmem:[#allocation8 + $0x118] sm:$0xf]
    %v3424 = vld [vmem:[#allocation8 + $0x11c] sm:$0xf]
    %v3425 = vld [vmem:[#allocation8 + $0x120] sm:$0xf]
    %v3426 = vld [vmem:[#allocation8 + $0x124] sm:$0xf]
    %v3427 = vld [vmem:[#allocation8 + $0x128] sm:$0xf]
    %v3428 = vld [vmem:[#allocation8 + $0x12c] sm:$0xf]
    %v3429 = vld [vmem:[#allocation8 + $0x130] sm:$0xf]
    %v3430 = vld [vmem:[#allocation8 + $0x134] sm:$0xf]
    %v3431 = vld [vmem:[#allocation8 + $0x138] sm:$0xf]
    %v3432 = vld [vmem:[#allocation8 + $0x13c] sm:$0xf]
    %v3433 = vld [vmem:[#allocation8 + $0x140] sm:$0xf]
    %v3434 = vld [vmem:[#allocation8 + $0x144] sm:$0xf]
    %v3435 = vld [vmem:[#allocation8 + $0x148] sm:$0xf]
    %v3436 = vld [vmem:[#allocation8 + $0x14c] sm:$0xf]
    %v3437 = vld [vmem:[#allocation8 + $0x150] sm:$0xf]
    %v3438 = vld [vmem:[#allocation8 + $0x154] sm:$0xf]
    %v3439 = vld [vmem:[#allocation8 + $0x158] sm:$0xf]
    %v3440 = vld [vmem:[#allocation8 + $0x15c] sm:$0xf]
    %v3441 = vld [vmem:[#allocation8 + $0x160] sm:$0xf]
    %v3442 = vld [vmem:[#allocation8 + $0x164] sm:$0xf]
    %v3443 = vld [vmem:[#allocation8 + $0x168] sm:$0xf]
    %v3444 = vld [vmem:[#allocation8 + $0x16c] sm:$0xf]
    %v3445 = vld [vmem:[#allocation8 + $0x170] sm:$0xf]
    %v3446 = vld [vmem:[#allocation8 + $0x174] sm:$0xf]
    %v3447 = vld [vmem:[#allocation8 + $0x178] sm:$0xf]
    %v3448 = vld [vmem:[#allocation8 + $0x17c] sm:$0xf]
    %v3449 = vld [vmem:[#allocation8 + $0x180] sm:$0xf]
    %v3450 = vld [vmem:[#allocation8 + $0x184] sm:$0xf]
    %v3451 = vld [vmem:[#allocation8 + $0x188] sm:$0xf]
    %v3452 = vld [vmem:[#allocation8 + $0x18c] sm:$0xf]
    %v3453 = vld [vmem:[#allocation8 + $0x190] sm:$0xf]
    %v3454 = vld [vmem:[#allocation8 + $0x194] sm:$0xf]
    %v3455 = vld [vmem:[#allocation8 + $0x198] sm:$0xf]
    %v3456 = vld [vmem:[#allocation8 + $0x19c] sm:$0xf]
    %v3457 = vld [vmem:[#allocation8 + $0x1a0] sm:$0xf]
    %v3458 = vld [vmem:[#allocation8 + $0x1a4] sm:$0xf]
    %v3459 = vld [vmem:[#allocation8 + $0x1a8] sm:$0xf]
    %v3460 = vld [vmem:[#allocation8 + $0x1ac] sm:$0xf]
    %v3461 = vld [vmem:[#allocation8 + $0x1b0] sm:$0xf]
    %v3462 = vld [vmem:[#allocation8 + $0x1b4] sm:$0xf]
    %v3463 = vld [vmem:[#allocation8 + $0x1b8] sm:$0xf]
    %v3464 = vld [vmem:[#allocation8 + $0x1bc] sm:$0xf]
    %v3465 = vld [vmem:[#allocation8 + $0x1c0] sm:$0xf]
    %v3466 = vld [vmem:[#allocation8 + $0x1c4] sm:$0xf]
    %v3467 = vld [vmem:[#allocation8 + $0x1c8] sm:$0xf]
    %v3468 = vld [vmem:[#allocation8 + $0x1cc] sm:$0xf]
    %v3469 = vld [vmem:[#allocation8 + $0x1d0] sm:$0xf]
    %v3470 = vld [vmem:[#allocation8 + $0x1d4] sm:$0xf]
    %v3471 = vld [vmem:[#allocation8 + $0x1d8] sm:$0xf]
    %v3472 = vld [vmem:[#allocation8 + $0x1dc] sm:$0xf]
    %v3473 = vld [vmem:[#allocation8 + $0x1e0] sm:$0xf]
    %v3474 = vld [vmem:[#allocation8 + $0x1e4] sm:$0xf]
    %v3475 = vld [vmem:[#allocation8 + $0x1e8] sm:$0xf]
    %v3476 = vld [vmem:[#allocation8 + $0x1ec] sm:$0xf]
    %v3477 = vld [vmem:[#allocation8 + $0x1f0] sm:$0xf]
    %v3478 = vld [vmem:[#allocation8 + $0x1f4] sm:$0xf]
    %v3479 = vld [vmem:[#allocation8 + $0x1f8] sm:$0xf]
    %v3480 = vld [vmem:[#allocation8 + $0x1fc] sm:$0xf]
    %v3481 = vld [vmem:[%s13] sm:$0x1]
    %v3483 = vlaneseq
    %v3484 = vshrl.u32 %v3483, 7
    %v3485 = vsub.s32 0, %v3484
    %v3486 = vrot.slane %v3481, %v3485
    %v3616 = vunpack.c.l.b16 %v3353
    %v3617 = vunpack.c.l.b16 %v3354
    %v3618 = vunpack.c.l.b16 %v3355
    %v3619 = vunpack.c.l.b16 %v3356
    %v3620 = vunpack.c.l.b16 %v3357
    %v3621 = vunpack.c.l.b16 %v3358
    %v3622 = vunpack.c.l.b16 %v3359
    %v3623 = vunpack.c.l.b16 %v3360
    %v3624 = vunpack.c.l.b16 %v3361
    %v3625 = vunpack.c.l.b16 %v3362
    %v3626 = vunpack.c.l.b16 %v3363
    %v3627 = vunpack.c.l.b16 %v3364
    %v3628 = vunpack.c.l.b16 %v3365
    %v3629 = vunpack.c.l.b16 %v3366
    %v3630 = vunpack.c.l.b16 %v3367
    %v3631 = vunpack.c.l.b16 %v3368
    %v3632 = vunpack.c.l.b16 %v3369
    %v3633 = vunpack.c.l.b16 %v3370
    %v3634 = vunpack.c.l.b16 %v3371
    %v3635 = vunpack.c.l.b16 %v3372
    %v3636 = vunpack.c.l.b16 %v3373
    %v3637 = vunpack.c.l.b16 %v3374
    %v3638 = vunpack.c.l.b16 %v3375
    %v3639 = vunpack.c.l.b16 %v3376
    %v3640 = vunpack.c.l.b16 %v3377
    %v3641 = vunpack.c.l.b16 %v3378
    %v3642 = vunpack.c.l.b16 %v3379
    %v3643 = vunpack.c.l.b16 %v3380
    %v3644 = vunpack.c.l.b16 %v3381
    %v3645 = vunpack.c.l.b16 %v3382
    %v3646 = vunpack.c.l.b16 %v3383
    %v3647 = vunpack.c.l.b16 %v3384
    %v3648 = vunpack.c.l.b16 %v3385
    %v3649 = vunpack.c.l.b16 %v3386
    %v3650 = vunpack.c.l.b16 %v3387
    %v3651 = vunpack.c.l.b16 %v3388
    %v3652 = vunpack.c.l.b16 %v3389
    %v3653 = vunpack.c.l.b16 %v3390
    %v3654 = vunpack.c.l.b16 %v3391
    %v3655 = vunpack.c.l.b16 %v3392
    %v3656 = vunpack.c.l.b16 %v3393
    %v3657 = vunpack.c.l.b16 %v3394
    %v3658 = vunpack.c.l.b16 %v3395
    %v3659 = vunpack.c.l.b16 %v3396
    %v3660 = vunpack.c.l.b16 %v3397
    %v3661 = vunpack.c.l.b16 %v3398
    %v3662 = vunpack.c.l.b16 %v3399
    %v3663 = vunpack.c.l.b16 %v3400
    %v3664 = vunpack.c.l.b16 %v3401
    %v3665 = vunpack.c.l.b16 %v3402
    %v3666 = vunpack.c.l.b16 %v3403
    %v3667 = vunpack.c.l.b16 %v3404
    %v3668 = vunpack.c.l.b16 %v3405
    %v3669 = vunpack.c.l.b16 %v3406
    %v3670 = vunpack.c.l.b16 %v3407
    %v3671 = vunpack.c.l.b16 %v3408
    %v3672 = vunpack.c.l.b16 %v3409
    %v3673 = vunpack.c.l.b16 %v3410
    %v3674 = vunpack.c.l.b16 %v3411
    %v3675 = vunpack.c.l.b16 %v3412
    %v3676 = vunpack.c.l.b16 %v3413
    %v3677 = vunpack.c.l.b16 %v3414
    %v3678 = vunpack.c.l.b16 %v3415
    %v3679 = vunpack.c.l.b16 %v3416
    %v3680 = vunpack.c.l.b16 %v3417
    %v3681 = vunpack.c.l.b16 %v3418
    %v3682 = vunpack.c.l.b16 %v3419
    %v3683 = vunpack.c.l.b16 %v3420
    %v3684 = vunpack.c.l.b16 %v3421
    %v3685 = vunpack.c.l.b16 %v3422
    %v3686 = vunpack.c.l.b16 %v3423
    %v3687 = vunpack.c.l.b16 %v3424
    %v3688 = vunpack.c.l.b16 %v3425
    %v3689 = vunpack.c.l.b16 %v3426
    %v3690 = vunpack.c.l.b16 %v3427
    %v3691 = vunpack.c.l.b16 %v3428
    %v3692 = vunpack.c.l.b16 %v3429
    %v3693 = vunpack.c.l.b16 %v3430
    %v3694 = vunpack.c.l.b16 %v3431
    %v3695 = vunpack.c.l.b16 %v3432
    %v3696 = vunpack.c.l.b16 %v3433
    %v3697 = vunpack.c.l.b16 %v3434
    %v3698 = vunpack.c.l.b16 %v3435
    %v3699 = vunpack.c.l.b16 %v3436
    %v3700 = vunpack.c.l.b16 %v3437
    %v3701 = vunpack.c.l.b16 %v3438
    %v3702 = vunpack.c.l.b16 %v3439
    %v3703 = vunpack.c.l.b16 %v3440
    %v3704 = vunpack.c.l.b16 %v3441
    %v3705 = vunpack.c.l.b16 %v3442
    %v3706 = vunpack.c.l.b16 %v3443
    %v3707 = vunpack.c.l.b16 %v3444
    %v3708 = vunpack.c.l.b16 %v3445
    %v3709 = vunpack.c.l.b16 %v3446
    %v3710 = vunpack.c.l.b16 %v3447
    %v3711 = vunpack.c.l.b16 %v3448
    %v3712 = vunpack.c.l.b16 %v3449
    %v3713 = vunpack.c.l.b16 %v3450
    %v3714 = vunpack.c.l.b16 %v3451
    %v3715 = vunpack.c.l.b16 %v3452
    %v3716 = vunpack.c.l.b16 %v3453
    %v3717 = vunpack.c.l.b16 %v3454
    %v3718 = vunpack.c.l.b16 %v3455
    %v3719 = vunpack.c.l.b16 %v3456
    %v3720 = vunpack.c.l.b16 %v3457
    %v3721 = vunpack.c.l.b16 %v3458
    %v3722 = vunpack.c.l.b16 %v3459
    %v3723 = vunpack.c.l.b16 %v3460
    %v3724 = vunpack.c.l.b16 %v3461
    %v3725 = vunpack.c.l.b16 %v3462
    %v3726 = vunpack.c.l.b16 %v3463
    %v3727 = vunpack.c.l.b16 %v3464
    %v3728 = vunpack.c.l.b16 %v3465
    %v3729 = vunpack.c.l.b16 %v3466
    %v3730 = vunpack.c.l.b16 %v3467
    %v3731 = vunpack.c.l.b16 %v3468
    %v3732 = vunpack.c.l.b16 %v3469
    %v3733 = vunpack.c.l.b16 %v3470
    %v3734 = vunpack.c.l.b16 %v3471
    %v3735 = vunpack.c.l.b16 %v3472
    %v3736 = vunpack.c.l.b16 %v3473
    %v3737 = vunpack.c.l.b16 %v3474
    %v3738 = vunpack.c.l.b16 %v3475
    %v3739 = vunpack.c.l.b16 %v3476
    %v3740 = vunpack.c.l.b16 %v3477
    %v3741 = vunpack.c.l.b16 %v3478
    %v3742 = vunpack.c.l.b16 %v3479
    %v3743 = vunpack.c.l.b16 %v3480
    %v3744 = vpack.c.b16 %v3617, %v3616
    %v3745 = vpack.c.b16 %v3619, %v3618
    %v3746 = vpack.c.b16 %v3621, %v3620
    %v3747 = vpack.c.b16 %v3623, %v3622
    %v3748 = vpack.c.b16 %v3625, %v3624
    %v3749 = vpack.c.b16 %v3627, %v3626
    %v3750 = vpack.c.b16 %v3629, %v3628
    %v3751 = vpack.c.b16 %v3631, %v3630
    %v3752 = vpack.c.b16 %v3633, %v3632
    %v3753 = vpack.c.b16 %v3635, %v3634
    %v3754 = vpack.c.b16 %v3637, %v3636
    %v3755 = vpack.c.b16 %v3639, %v3638
    %v3756 = vpack.c.b16 %v3641, %v3640
    %v3757 = vpack.c.b16 %v3643, %v3642
    %v3758 = vpack.c.b16 %v3645, %v3644
    %v3759 = vpack.c.b16 %v3647, %v3646
    %v3760 = vpack.c.b16 %v3649, %v3648
    %v3761 = vpack.c.b16 %v3651, %v3650
    %v3762 = vpack.c.b16 %v3653, %v3652
    %v3763 = vpack.c.b16 %v3655, %v3654
    %v3764 = vpack.c.b16 %v3657, %v3656
    %v3765 = vpack.c.b16 %v3659, %v3658
    %v3766 = vpack.c.b16 %v3661, %v3660
    %v3767 = vpack.c.b16 %v3663, %v3662
    %v3768 = vpack.c.b16 %v3665, %v3664
    %v3769 = vpack.c.b16 %v3667, %v3666
    %v3770 = vpack.c.b16 %v3669, %v3668
    %v3771 = vpack.c.b16 %v3671, %v3670
    %v3772 = vpack.c.b16 %v3673, %v3672
    %v3773 = vpack.c.b16 %v3675, %v3674
    %v3774 = vpack.c.b16 %v3677, %v3676
    %v3775 = vpack.c.b16 %v3679, %v3678
    %v3776 = vpack.c.b16 %v3681, %v3680
    %v3777 = vpack.c.b16 %v3683, %v3682
    %v3778 = vpack.c.b16 %v3685, %v3684
    %v3779 = vpack.c.b16 %v3687, %v3686
    %v3780 = vpack.c.b16 %v3689, %v3688
    %v3781 = vpack.c.b16 %v3691, %v3690
    %v3782 = vpack.c.b16 %v3693, %v3692
    %v3783 = vpack.c.b16 %v3695, %v3694
    %v3784 = vpack.c.b16 %v3697, %v3696
    %v3785 = vpack.c.b16 %v3699, %v3698
    %v3786 = vpack.c.b16 %v3701, %v3700
    %v3787 = vpack.c.b16 %v3703, %v3702
    %v3788 = vpack.c.b16 %v3705, %v3704
    %v3789 = vpack.c.b16 %v3707, %v3706
    %v3790 = vpack.c.b16 %v3709, %v3708
    %v3791 = vpack.c.b16 %v3711, %v3710
    %v3792 = vpack.c.b16 %v3713, %v3712
    %v3793 = vpack.c.b16 %v3715, %v3714
    %v3794 = vpack.c.b16 %v3717, %v3716
    %v3795 = vpack.c.b16 %v3719, %v3718
    %v3796 = vpack.c.b16 %v3721, %v3720
    %v3797 = vpack.c.b16 %v3723, %v3722
    %v3798 = vpack.c.b16 %v3725, %v3724
    %v3799 = vpack.c.b16 %v3727, %v3726
    %v3800 = vpack.c.b16 %v3729, %v3728
    %v3801 = vpack.c.b16 %v3731, %v3730
    %v3802 = vpack.c.b16 %v3733, %v3732
    %v3803 = vpack.c.b16 %v3735, %v3734
    %v3804 = vpack.c.b16 %v3737, %v3736
    %v3805 = vpack.c.b16 %v3739, %v3738
    %v3806 = vpack.c.b16 %v3741, %v3740
    %v3807 = vpack.c.b16 %v3743, %v3742
    %3872 = vmatprep.subr.bf16.mxu0 0
    %3873 = vmatpush1.bf16.msra.mxu0 %v3751
    %3874 = vmatprep.subr.bf16.mxu0 0
    %3875 = vmatpush1.bf16.msra.mxu0 %v3750
    %3876 = vmatprep.subr.bf16.mxu0 0
    %3877 = vmatpush1.bf16.msra.mxu0 %v3749
    %3878 = vmatprep.subr.bf16.mxu0 0
    %3879 = vmatpush1.bf16.msra.mxu0 %v3748
    %3880 = vmatprep.subr.bf16.mxu0 0
    %3881 = vmatpush1.bf16.msra.mxu0 %v3747
    %3882 = vmatprep.subr.bf16.mxu0 0
    %3883 = vmatpush1.bf16.msra.mxu0 %v3746
    %3884 = vmatprep.subr.bf16.mxu0 0
    %3885 = vmatpush1.bf16.msra.mxu0 %v3745
    %3886 = vmatprep.subr.bf16.mxu0 0
    %3887 = vmatpush1.bf16.msra.mxu0 %v3744
    %3888 = vmatprep.subr.bf16.mxu0 0
    %3889 = vmatpush2.bf16.msra.mxu0 %v3759
    %3890 = vmatprep.subr.bf16.mxu0 0
    %3891 = vmatpush2.bf16.msra.mxu0 %v3758
    %3892 = vmatprep.subr.bf16.mxu0 0
    %3893 = vmatpush2.bf16.msra.mxu0 %v3757
    %3894 = vmatprep.subr.bf16.mxu0 0
    %3895 = vmatpush2.bf16.msra.mxu0 %v3756
    %3896 = vmatprep.subr.bf16.mxu0 0
    %3897 = vmatpush2.bf16.msra.mxu0 %v3755
    %3898 = vmatprep.subr.bf16.mxu0 0
    %3899 = vmatpush2.bf16.msra.mxu0 %v3754
    %3900 = vmatprep.subr.bf16.mxu0 0
    %3901 = vmatpush2.bf16.msra.mxu0 %v3753
    %3902 = vmatprep.subr.bf16.mxu0 0
    %3903 = vmatpush2.bf16.msra.mxu0 %v3752
    %3904 = vmatprep.mubr.bf16.mxu0 %v3346
    %3905 = vmatmul.mubr.bf16.gmra.mxu0 %v3345
    %v3906 = vpop.f32.mrf.mxu0
    %v3907 = vadd.f32 %v3486, %v3906
    %v3908 = vpop.f32.mrf.mxu0
    %v3909 = vpop.f32.mrf.mxu0
    %v3910 = vpop.f32.mrf.mxu0
    %3911 = vdwg.mxu0
    %3912 = vmatprep.subr.bf16.mxu0 0
    %3913 = vmatpush1.bf16.msra.mxu0 %v3767
    %3914 = vmatprep.subr.bf16.mxu0 0
    %3915 = vmatpush1.bf16.msra.mxu0 %v3766
    %3916 = vmatprep.subr.bf16.mxu0 0
    %3917 = vmatpush1.bf16.msra.mxu0 %v3765
    %3918 = vmatprep.subr.bf16.mxu0 0
    %3919 = vmatpush1.bf16.msra.mxu0 %v3764
    %3920 = vmatprep.subr.bf16.mxu0 0
    %3921 = vmatpush1.bf16.msra.mxu0 %v3763
    %3922 = vmatprep.subr.bf16.mxu0 0
    %3923 = vmatpush1.bf16.msra.mxu0 %v3762
    %3924 = vmatprep.subr.bf16.mxu0 0
    %3925 = vmatpush1.bf16.msra.mxu0 %v3761
    %3926 = vmatprep.subr.bf16.mxu0 0
    %3927 = vmatpush1.bf16.msra.mxu0 %v3760
    %3928 = vmatprep.subr.bf16.mxu0 0
    %3929 = vmatpush2.bf16.msra.mxu0 %v3775
    %3930 = vmatprep.subr.bf16.mxu0 0
    %3931 = vmatpush2.bf16.msra.mxu0 %v3774
    %3932 = vmatprep.subr.bf16.mxu0 0
    %3933 = vmatpush2.bf16.msra.mxu0 %v3773
    %3934 = vmatprep.subr.bf16.mxu0 0
    %3935 = vmatpush2.bf16.msra.mxu0 %v3772
    %3936 = vmatprep.subr.bf16.mxu0 0
    %3937 = vmatpush2.bf16.msra.mxu0 %v3771
    %3938 = vmatprep.subr.bf16.mxu0 0
    %3939 = vmatpush2.bf16.msra.mxu0 %v3770
    %3940 = vmatprep.subr.bf16.mxu0 0
    %3941 = vmatpush2.bf16.msra.mxu0 %v3769
    %3942 = vmatprep.subr.bf16.mxu0 0
    %3943 = vmatpush2.bf16.msra.mxu0 %v3768
    %3944 = vmatprep.mubr.bf16.mxu0 %v3348
    %3945 = vmatmul.mubr.bf16.gmra.mxu0 %v3347
    %v3946 = vpop.f32.mrf.mxu0
    %v3947 = vadd.f32 %v3907, %v3946
    %v3948 = vpop.f32.mrf.mxu0
    %v3949 = vpop.f32.mrf.mxu0
    %v3950 = vpop.f32.mrf.mxu0
    %3951 = vdwg.mxu0
    %3952 = vmatprep.subr.bf16.mxu0 0
    %3953 = vmatpush1.bf16.msra.mxu0 %v3783
    %3954 = vmatprep.subr.bf16.mxu0 0
    %3955 = vmatpush1.bf16.msra.mxu0 %v3782
    %3956 = vmatprep.subr.bf16.mxu0 0
    %3957 = vmatpush1.bf16.msra.mxu0 %v3781
    %3958 = vmatprep.subr.bf16.mxu0 0
    %3959 = vmatpush1.bf16.msra.mxu0 %v3780
    %3960 = vmatprep.subr.bf16.mxu0 0
    %3961 = vmatpush1.bf16.msra.mxu0 %v3779
    %3962 = vmatprep.subr.bf16.mxu0 0
    %3963 = vmatpush1.bf16.msra.mxu0 %v3778
    %3964 = vmatprep.subr.bf16.mxu0 0
    %3965 = vmatpush1.bf16.msra.mxu0 %v3777
    %3966 = vmatprep.subr.bf16.mxu0 0
    %3967 = vmatpush1.bf16.msra.mxu0 %v3776
    %3968 = vmatprep.subr.bf16.mxu0 0
    %3969 = vmatpush2.bf16.msra.mxu0 %v3791
    %3970 = vmatprep.subr.bf16.mxu0 0
    %3971 = vmatpush2.bf16.msra.mxu0 %v3790
    %3972 = vmatprep.subr.bf16.mxu0 0
    %3973 = vmatpush2.bf16.msra.mxu0 %v3789
    %3974 = vmatprep.subr.bf16.mxu0 0
    %3975 = vmatpush2.bf16.msra.mxu0 %v3788
    %3976 = vmatprep.subr.bf16.mxu0 0
    %3977 = vmatpush2.bf16.msra.mxu0 %v3787
    %3978 = vmatprep.subr.bf16.mxu0 0
    %3979 = vmatpush2.bf16.msra.mxu0 %v3786
    %3980 = vmatprep.subr.bf16.mxu0 0
    %3981 = vmatpush2.bf16.msra.mxu0 %v3785
    %3982 = vmatprep.subr.bf16.mxu0 0
    %3983 = vmatpush2.bf16.msra.mxu0 %v3784
    %3984 = vmatprep.mubr.bf16.mxu0 %v3350
    %3985 = vmatmul.mubr.bf16.gmra.mxu0 %v3349
    %v3986 = vpop.f32.mrf.mxu0
    %v3987 = vadd.f32 %v3947, %v3986
    %v3988 = vpop.f32.mrf.mxu0
    %v3989 = vpop.f32.mrf.mxu0
    %v3990 = vpop.f32.mrf.mxu0
    %3991 = vdwg.mxu0
    %3992 = vmatprep.subr.bf16.mxu0 0
    %3993 = vmatpush1.bf16.msra.mxu0 %v3799
    %3994 = vmatprep.subr.bf16.mxu0 0
    %3995 = vmatpush1.bf16.msra.mxu0 %v3798
    %3996 = vmatprep.subr.bf16.mxu0 0
    %3997 = vmatpush1.bf16.msra.mxu0 %v3797
    %3998 = vmatprep.subr.bf16.mxu0 0
    %3999 = vmatpush1.bf16.msra.mxu0 %v3796
    %4000 = vmatprep.subr.bf16.mxu0 0
    %4001 = vmatpush1.bf16.msra.mxu0 %v3795
    %4002 = vmatprep.subr.bf16.mxu0 0
    %4003 = vmatpush1.bf16.msra.mxu0 %v3794
    %4004 = vmatprep.subr.bf16.mxu0 0
    %4005 = vmatpush1.bf16.msra.mxu0 %v3793
    %4006 = vmatprep.subr.bf16.mxu0 0
    %4007 = vmatpush1.bf16.msra.mxu0 %v3792
    %4008 = vmatprep.subr.bf16.mxu0 0
    %4009 = vmatpush2.bf16.msra.mxu0 %v3807
    %4010 = vmatprep.subr.bf16.mxu0 0
    %4011 = vmatpush2.bf16.msra.mxu0 %v3806
    %4012 = vmatprep.subr.bf16.mxu0 0
    %4013 = vmatpush2.bf16.msra.mxu0 %v3805
    %4014 = vmatprep.subr.bf16.mxu0 0
    %4015 = vmatpush2.bf16.msra.mxu0 %v3804
    %4016 = vmatprep.subr.bf16.mxu0 0
    %4017 = vmatpush2.bf16.msra.mxu0 %v3803
    %4018 = vmatprep.subr.bf16.mxu0 0
    %4019 = vmatpush2.bf16.msra.mxu0 %v3802
    %4020 = vmatprep.subr.bf16.mxu0 0
    %4021 = vmatpush2.bf16.msra.mxu0 %v3801
    %4022 = vmatprep.subr.bf16.mxu0 0
    %4023 = vmatpush2.bf16.msra.mxu0 %v3800
    %4024 = vmatprep.mubr.bf16.mxu0 %v3352
    %4025 = vmatmul.mubr.bf16.gmra.mxu0 %v3351
    %v4026 = vpop.f32.mrf.mxu0
    %v4027 = vadd.f32 %v3987, %v4026
    %v4028 = vpop.f32.mrf.mxu0
    %v4029 = vpop.f32.mrf.mxu0
    %v4030 = vpop.f32.mrf.mxu0
    %4031 = vdwg.mxu0
    %v4032 = vtanh.pop %v4027
    %4033 = vst [vmem:[#allocation10] sm:$0xff] %v4032
    // Predicated region
    $region74: #{simple_generator.1} parent=1 // pred_check
      _
    $region75: #{simple_generator.1} parent=1 // pred_check_branch
      %4035 = sbr.rel (0) target = $region77
    $region76: #{simple_generator.1} parent=1 // pred_region
      %s4037 = ssub.s32 128, 128
      %4038 = vsyncadd [#allocation4], %s4037
      %s4040 = sshll.u32 [#allocation10], 4
      %s4041 = int_to_ptr.vmem [resolvable:$true] %s4040
      %4043 = dma.vmem_to_hbm [thread:$0]  %s4041, 128, %s14, [#allocation4]
    $region77: #{simple_generator.1} parent=1 // pred_fallthru
      _
    // Predicated region
    $region78: #{simple_generator.1} parent=1 // pred_check
      _
    $region79: #{simple_generator.1} parent=1 // pred_check_branch
      %4045 = sbr.rel (0) target = $region81
    $region80: #{simple_generator.1} parent=1 // pred_region
      %4046 = dma.done [#allocation4], 128
    $region81: #{simple_generator.1} parent=1 // pred_fallthru
      _
    %4047 = vsyncpa [#allocation3], 1
    %4048 = vsyncpa [#allocation6], 1
    %4049 = vsyncpa [#allocation9], 1
    %4050 = vsyncpa [#allocation4], 1

</llo_original>
